<compile_context>
chip_gen: v7x
topology: tpu7x:2x2x1
jax: 0.10.0
libtpu: 0.0.40
codegen_flags: <defaults>
</compile_context>

<pallas_src>
import jax
import jax.numpy as jnp
from jax import lax
from jax.experimental import pallas as pl
from jax.experimental.pallas import tpu as pltpu


# ---------------------------------------------------------------------------
# One InvertedResidualBlock(expand_ratio=1) + fused MaxPool2d(2,2) on ONE
# image in w-packed layout.  fin_ref holds the zero-guarded packed input with
# the data region starting at (row r0, col c0).
# ---------------------------------------------------------------------------
def _block_body(fin_ref, r0, c0, zz_ref, out_ref, fnext_ref, prm,
                H, W, Cin, Cout):
    dwt_ref, s1t_ref, b1t_ref, pwe_ref, pwo_ref, s2t_ref, b2t_ref = prm
    L = W * Cin
    H2, W2 = H // 2, W // 2
    Lo = W2 * Cout

    # --- depthwise 3x3, stride 1, pad 1: 9 statically shifted windows -------
    # Zero guard ring handles all spatial boundaries -> no masks/selects.
    y = jnp.zeros((H, L), jnp.float32)
    for dh in (-1, 0, 1):
        for dwd in (-1, 0, 1):
            k = (dh + 1) * 3 + (dwd + 1)
            tap = fin_ref[r0 + dh:r0 + dh + H,
                          c0 + dwd * Cin:c0 + dwd * Cin + L]
            y = y + tap * dwt_ref[k:k + 1, :]

    # folded BatchNorm1 + ReLU6
    y = jnp.clip(y * s1t_ref[...] + b1t_ref[...], 0.0, 6.0)

    # --- pointwise 1x1 conv + folded BatchNorm2 -----------------------------
    # Evaluated separately at even / odd w; the w-decimation of the 2x2 pool
    # is folded into the host-built weights -> two lane-dense MXU matmuls.
    ze = jnp.dot(y, pwe_ref[...], preferred_element_type=jnp.float32)
    zo = jnp.dot(y, pwo_ref[...], preferred_element_type=jnp.float32)
    ze = ze * s2t_ref[...] + b2t_ref[...]
    zo = zo * s2t_ref[...] + b2t_ref[...]

    # --- fused MaxPool2d(2, 2) ----------------------------------------------
    # w-direction max in registers; h-direction max via two stride-2 sublane
    # reads (no selection matmul, no overlapping reload round trip).
    zz_ref[...] = jnp.maximum(ze, zo)                           # (H, W2*Cout)
    pooled = jnp.maximum(zz_ref[pl.ds(0, H2, stride=2), :],
                         zz_ref[pl.ds(1, H2, stride=2), :])     # (H2, W2*Cout)

    out_ref[...] = pooled                        # lane-dense HBM writeback
    if fnext_ref is not None:                    # hand-off is already in the
        fnext_ref[1:1 + H2, Cout:Cout + Lo] = pooled  # next block's layout


def _make_kernel(cfg):
    n = len(cfg)

    def kernel(*refs):
        x_ref = refs[0]
        prm = [refs[1 + 7 * i:1 + 7 * (i + 1)] for i in range(n)]
        outs = refs[1 + 7 * n:1 + 8 * n]
        scratch = refs[1 + 8 * n:]
        zz = scratch[:n]
        fnxt = list(scratch[n:]) + [None]   # fnxt[i] = block i+1's input buffer

        # Zero the hand-off buffers (guard ring included) so the 3x3 taps of
        # blocks 2..n never read uninitialised VMEM (correctness-review fix).
        for f in fnxt[:-1]:
            f[...] = jnp.zeros_like(f)

        fin, r0, c0 = x_ref, 1, cfg[0]["Cin"]
        for i, blk in enumerate(cfg):
            _block_body(fin, r0, c0, zz[i], outs[i], fnxt[i], prm[i],
                        blk["H"], blk["W"], blk["Cin"], blk["Cout"])
            fin, r0, c0 = fnxt[i], 1, blk["Cout"]

    return kernel


# ---------------------------------------------------------------------------
# Deterministic synthetic parameters (BatchNorm folded to inference form)
# ---------------------------------------------------------------------------
def _fold_bn(key, c, eps=1e-5):
    k1, k2, k3, k4 = jax.random.split(key, 4)
    gamma = 1.0 + 0.1 * jax.random.normal(k1, (c,), jnp.float32)
    beta = 0.1 * jax.random.normal(k2, (c,), jnp.float32)
    mean = 0.1 * jax.random.normal(k3, (c,), jnp.float32)
    var = 1.0 + 0.1 * jax.random.uniform(k4, (c,), jnp.float32)
    scale = gamma / jnp.sqrt(var + eps)
    bias = beta - mean * scale
    return scale.reshape(1, c), bias.reshape(1, c)


def init_block_params(key, inp, oup):
    # expand_ratio == 1 branch: hidden_dim == inp
    kdw, kpw, kb1, kb2 = jax.random.split(key, 4)
    dw = 0.2 * jax.random.normal(kdw, (9, inp), jnp.float32)    # 3x3 depthwise
    pw = 0.2 * jax.random.normal(kpw, (inp, oup), jnp.float32)  # 1x1 pointwise
    s1, b1 = _fold_bn(kb1, inp)
    s2, b2 = _fold_bn(kb2, oup)
    return dict(dw=dw, pw=pw, s1=s1, b1=b1, s2=s2, b2=b2)


def _pad_block_cin(p, cin_pad):
    """Zero-pad block1's Cin=3 to a friendlier lane count (zero rows/cols)."""
    cin = p["dw"].shape[1]
    if cin == cin_pad:
        return p
    extra = cin_pad - cin
    return dict(
        dw=jnp.pad(p["dw"], ((0, 0), (0, extra))),
        pw=jnp.pad(p["pw"], ((0, extra), (0, 0))),
        s1=jnp.pad(p["s1"], ((0, 0), (0, extra))),
        b1=jnp.pad(p["b1"], ((0, 0), (0, extra))),
        s2=p["s2"],
        b2=p["b2"],
    )


def _pack_block(p, W):
    """Host-side repack of one block's parameters into w-packed form."""
    dw, pw = p["dw"], p["pw"]
    Cin, Cout = pw.shape
    W2 = W // 2
    dwt = jnp.tile(dw, (1, W))                     # (9, W*Cin)
    s1t = jnp.tile(p["s1"], (1, W))                # (1, W*Cin)
    b1t = jnp.tile(p["b1"], (1, W))
    w2 = jnp.arange(W2)
    sel_e = jnp.zeros((W, W2), jnp.float32).at[2 * w2, w2].set(1.0)
    sel_o = jnp.zeros((W, W2), jnp.float32).at[2 * w2 + 1, w2].set(1.0)
    pwe = jnp.kron(sel_e, pw)                      # (W*Cin, W2*Cout) even w
    pwo = jnp.kron(sel_o, pw)                      # (W*Cin, W2*Cout) odd  w
    s2t = jnp.tile(p["s2"], (1, W2))               # (1, W2*Cout)
    b2t = jnp.tile(p["b2"], (1, W2))
    return [dwt, s1t, b1t, pwe, pwo, s2t, b2t]


# ---------------------------------------------------------------------------
# BaseEncoder forward (single fused pallas_call, grid over batch)
# ---------------------------------------------------------------------------
def base_encoder(x, params):
    """x: (B, H, W, 3) float32 NHWC -> (x1, x2, x3, x4) NHWC."""
    nb, H0, W0, cin0 = x.shape
    cin_pad = 8
    blocks = [_pad_block_cin(params["block1"], cin_pad),
              params["block2"], params["block3"], params["block4"]]

    # static per-block configuration
    cfg, H, W = [], H0, W0
    for p in blocks:
        cin, cout = p["pw"].shape
        cfg.append(dict(H=H, W=W, Cin=cin, Cout=cout))
        H, W = H // 2, W // 2

    # w-packed per-image input with the zero guard ring folded in host-side
    # (removes the old in-kernel staging copy).
    xp = jnp.pad(x, ((0, 0), (0, 0), (0, 0), (0, cin_pad - cin0)))
    xp = xp.reshape(nb, H0, W0 * cin_pad)
    xp = jnp.pad(xp, ((0, 0), (1, 1), (cin_pad, cin_pad)))
    # xp: (nb, H0 + 2, (W0 + 2) * cin_pad)

    flat_params, in_specs = [], []
    in_specs.append(pl.BlockSpec((None, H0 + 2, (W0 + 2) * cin_pad),
                                 lambda b: (b, 0, 0)))
    for p, blk in zip(blocks, cfg):
        pk = _pack_block(p, blk["W"])
        flat_params += pk
        for arr in pk:
            in_specs.append(pl.BlockSpec(arr.shape, lambda b: (0, 0)))

    out_shape, out_specs = [], []
    for blk in cfg:
        H2, W2 = blk["H"] // 2, blk["W"] // 2
        out_shape.append(jax.ShapeDtypeStruct((nb, H2, W2 * blk["Cout"]),
                                              jnp.float32))
        out_specs.append(pl.BlockSpec((None, H2, W2 * blk["Cout"]),
                                      lambda b: (b, 0, 0)))

    # per-image scratch: pooling staging buffers + zero-guarded hand-offs
    scratch = []
    for blk in cfg:
        scratch.append(pltpu.VMEM((blk["H"], (blk["W"] // 2) * blk["Cout"]),
                                  jnp.float32))
    for blk in cfg[1:]:
        scratch.append(pltpu.VMEM((blk["H"] + 2, (blk["W"] + 2) * blk["Cin"]),
                                  jnp.float32))

    outs = pl.pallas_call(
        _make_kernel(cfg),
        out_shape=tuple(out_shape),
        grid_spec=pltpu.PrefetchScalarGridSpec(
            num_scalar_prefetch=0,
            grid=(nb,),
            in_specs=in_specs,
            out_specs=out_specs,
            scratch_shapes=scratch),
        compiler_params=pltpu.CompilerParams(
            dimension_semantics=("parallel",),       # v7x: 2 TCs split batch
            vmem_limit_bytes=32 * 1024 * 1024),      # ~100 KiB/image actually used
    )(xp, *flat_params)

    results = []
    for o, blk in zip(outs, cfg):
        H2, W2 = blk["H"] // 2, blk["W"] // 2
        results.append(o.reshape(nb, H2, W2, blk["Cout"]))
    return tuple(results)


# ---------------------------------------------------------------------------
# Pure-JAX reference (same folded-BN convention) for a numerical sanity check
# ---------------------------------------------------------------------------
def _reference_encoder(x, params):
    outs, h = [], x
    for name in ("block1", "block2", "block3", "block4"):
        p = params[name]
        dw, pw = p["dw"], p["pw"]
        s1, b1, s2, b2 = p["s1"][0], p["b1"][0], p["s2"][0], p["b2"][0]
        nb, H, W, _ = h.shape
        xp = jnp.pad(h, ((0, 0), (1, 1), (1, 1), (0, 0)))
        y = jnp.zeros_like(h)
        for kh in range(3):
            for kw in range(3):
                y = y + xp[:, kh:kh + H, kw:kw + W, :] * dw[kh * 3 + kw]
        y = jnp.clip(y * s1 + b1, 0.0, 6.0)
        z = jnp.einsum("bhwc,cd->bhwd", y, pw,
                       precision=lax.Precision.HIGHEST) * s2 + b2
        cout = z.shape[-1]
        z = z.reshape(nb, H // 2, 2, W // 2, 2, cout).max(axis=(2, 4))
        outs.append(z)
        h = z
    return tuple(outs)


if __name__ == "__main__":
    key = jax.random.PRNGKey(0)
    kx, k1, k2, k3, k4 = jax.random.split(key, 5)

    # Small shapes consistent with the module: batch=2, 3 input channels, 16x16.
    x_nchw = jax.random.normal(kx, (2, 3, 16, 16), jnp.float32)  # PyTorch NCHW
    x = jnp.transpose(x_nchw, (0, 2, 3, 1))                      # -> NHWC

    params = {
        "block1": init_block_params(k1, 3, 16),
        "block2": init_block_params(k2, 16, 32),
        "block3": init_block_params(k3, 32, 64),
        "block4": init_block_params(k4, 64, 128),
    }

    outs = jax.block_until_ready(jax.jit(base_encoder)(x, params))

    expected = [(2, 8, 8, 16), (2, 4, 4, 32), (2, 2, 2, 64), (2, 1, 1, 128)]
    assert [tuple(o.shape) for o in outs] == expected, \
        [tuple(o.shape) for o in outs]

    refs = _reference_encoder(x, params)
    for o, r in zip(outs, refs):
        assert bool(jnp.all(jnp.isfinite(o)))
        err = float(jnp.max(jnp.abs(o - r)))
        assert err < 1e-2, f"max abs err {err}"

    print("KERNEL_OK")
</pallas_src>

<mosaic_0001>
module attributes {stable_mosaic.version = 11 : i64} {
  func.func @kernel(%arg0: i32, %arg1: memref<1x18x144xf32, #tpu.memory_space<vmem>>, %arg2: memref<9x128xf32, #tpu.memory_space<vmem>>, %arg3: memref<1x128xf32, #tpu.memory_space<vmem>>, %arg4: memref<1x128xf32, #tpu.memory_space<vmem>>, %arg5: memref<128x128xf32, #tpu.memory_space<vmem>>, %arg6: memref<128x128xf32, #tpu.memory_space<vmem>>, %arg7: memref<1x128xf32, #tpu.memory_space<vmem>>, %arg8: memref<1x128xf32, #tpu.memory_space<vmem>>, %arg9: memref<9x128xf32, #tpu.memory_space<vmem>>, %arg10: memref<1x128xf32, #tpu.memory_space<vmem>>, %arg11: memref<1x128xf32, #tpu.memory_space<vmem>>, %arg12: memref<128x128xf32, #tpu.memory_space<vmem>>, %arg13: memref<128x128xf32, #tpu.memory_space<vmem>>, %arg14: memref<1x128xf32, #tpu.memory_space<vmem>>, %arg15: memref<1x128xf32, #tpu.memory_space<vmem>>, %arg16: memref<9x128xf32, #tpu.memory_space<vmem>>, %arg17: memref<1x128xf32, #tpu.memory_space<vmem>>, %arg18: memref<1x128xf32, #tpu.memory_space<vmem>>, %arg19: memref<128x128xf32, #tpu.memory_space<vmem>>, %arg20: memref<128x128xf32, #tpu.memory_space<vmem>>, %arg21: memref<1x128xf32, #tpu.memory_space<vmem>>, %arg22: memref<1x128xf32, #tpu.memory_space<vmem>>, %arg23: memref<9x128xf32, #tpu.memory_space<vmem>>, %arg24: memref<1x128xf32, #tpu.memory_space<vmem>>, %arg25: memref<1x128xf32, #tpu.memory_space<vmem>>, %arg26: memref<128x128xf32, #tpu.memory_space<vmem>>, %arg27: memref<128x128xf32, #tpu.memory_space<vmem>>, %arg28: memref<1x128xf32, #tpu.memory_space<vmem>>, %arg29: memref<1x128xf32, #tpu.memory_space<vmem>>, %arg30: memref<1x8x128xf32, #tpu.memory_space<vmem>>, %arg31: memref<1x4x128xf32, #tpu.memory_space<vmem>>, %arg32: memref<1x2x128xf32, #tpu.memory_space<vmem>>, %arg33: memref<1x1x128xf32, #tpu.memory_space<vmem>>, %arg34: memref<16x128xf32, #tpu.memory_space<vmem>>, %arg35: memref<8x128xf32, #tpu.memory_space<vmem>>, %arg36: memref<4x128xf32, #tpu.memory_space<vmem>>, %arg37: memref<2x128xf32, #tpu.memory_space<vmem>>, %arg38: memref<10x160xf32, #tpu.memory_space<vmem>>, %arg39: memref<6x192xf32, #tpu.memory_space<vmem>>, %arg40: memref<4x256xf32, #tpu.memory_space<vmem>>) attributes {dimension_semantics = [#tpu.dimension_semantics<parallel>], iteration_bounds = array<i64: 2>, scalar_prefetch = 0 : i64, scratch_operands = 7 : i64, tpu.core_type = #tpu.core_type<tc>, window_params = [{transform_indices = @transform_0, window_bounds = array<i64: 1, 18, 144>}, {pipeline_mode = #tpu.pipeline_mode<synchronous>, transform_indices = @transform_1, window_bounds = array<i64: 9, 128>}, {pipeline_mode = #tpu.pipeline_mode<synchronous>, transform_indices = @transform_2, window_bounds = array<i64: 1, 128>}, {pipeline_mode = #tpu.pipeline_mode<synchronous>, transform_indices = @transform_3, window_bounds = array<i64: 1, 128>}, {pipeline_mode = #tpu.pipeline_mode<synchronous>, transform_indices = @transform_4, window_bounds = array<i64: 128, 128>}, {pipeline_mode = #tpu.pipeline_mode<synchronous>, transform_indices = @transform_5, window_bounds = array<i64: 128, 128>}, {pipeline_mode = #tpu.pipeline_mode<synchronous>, transform_indices = @transform_6, window_bounds = array<i64: 1, 128>}, {pipeline_mode = #tpu.pipeline_mode<synchronous>, transform_indices = @transform_7, window_bounds = array<i64: 1, 128>}, {pipeline_mode = #tpu.pipeline_mode<synchronous>, transform_indices = @transform_8, window_bounds = array<i64: 9, 128>}, {pipeline_mode = #tpu.pipeline_mode<synchronous>, transform_indices = @transform_9, window_bounds = array<i64: 1, 128>}, {pipeline_mode = #tpu.pipeline_mode<synchronous>, transform_indices = @transform_10, window_bounds = array<i64: 1, 128>}, {pipeline_mode = #tpu.pipeline_mode<synchronous>, transform_indices = @transform_11, window_bounds = array<i64: 128, 128>}, {pipeline_mode = #tpu.pipeline_mode<synchronous>, transform_indices = @transform_12, window_bounds = array<i64: 128, 128>}, {pipeline_mode = #tpu.pipeline_mode<synchronous>, transform_indices = @transform_13, window_bounds = array<i64: 1, 128>}, {pipeline_mode = #tpu.pipeline_mode<synchronous>, transform_indices = @transform_14, window_bounds = array<i64: 1, 128>}, {pipeline_mode = #tpu.pipeline_mode<synchronous>, transform_indices = @transform_15, window_bounds = array<i64: 9, 128>}, {pipeline_mode = #tpu.pipeline_mode<synchronous>, transform_indices = @transform_16, window_bounds = array<i64: 1, 128>}, {pipeline_mode = #tpu.pipeline_mode<synchronous>, transform_indices = @transform_17, window_bounds = array<i64: 1, 128>}, {pipeline_mode = #tpu.pipeline_mode<synchronous>, transform_indices = @transform_18, window_bounds = array<i64: 128, 128>}, {pipeline_mode = #tpu.pipeline_mode<synchronous>, transform_indices = @transform_19, window_bounds = array<i64: 128, 128>}, {pipeline_mode = #tpu.pipeline_mode<synchronous>, transform_indices = @transform_20, window_bounds = array<i64: 1, 128>}, {pipeline_mode = #tpu.pipeline_mode<synchronous>, transform_indices = @transform_21, window_bounds = array<i64: 1, 128>}, {pipeline_mode = #tpu.pipeline_mode<synchronous>, transform_indices = @transform_22, window_bounds = array<i64: 9, 128>}, {pipeline_mode = #tpu.pipeline_mode<synchronous>, transform_indices = @transform_23, window_bounds = array<i64: 1, 128>}, {pipeline_mode = #tpu.pipeline_mode<synchronous>, transform_indices = @transform_24, window_bounds = array<i64: 1, 128>}, {pipeline_mode = #tpu.pipeline_mode<synchronous>, transform_indices = @transform_25, window_bounds = array<i64: 128, 128>}, {pipeline_mode = #tpu.pipeline_mode<synchronous>, transform_indices = @transform_26, window_bounds = array<i64: 128, 128>}, {pipeline_mode = #tpu.pipeline_mode<synchronous>, transform_indices = @transform_27, window_bounds = array<i64: 1, 128>}, {pipeline_mode = #tpu.pipeline_mode<synchronous>, transform_indices = @transform_28, window_bounds = array<i64: 1, 128>}, {transform_indices = @transform_29, window_bounds = array<i64: 1, 8, 128>}, {transform_indices = @transform_30, window_bounds = array<i64: 1, 4, 128>}, {transform_indices = @transform_31, window_bounds = array<i64: 1, 2, 128>}, {transform_indices = @transform_32, window_bounds = array<i64: 1, 1, 128>}]} {
    %cst = arith.constant 0.000000e+00 : f32
    %0 = vector.broadcast %cst : f32 to vector<10x160xf32>
    %c0 = arith.constant 0 : index
    %c0_0 = arith.constant 0 : index
    %1 = vector.load %arg38[%c0, %c0_0] : memref<10x160xf32, #tpu.memory_space<vmem>>, vector<10x160xf32>
    tpu.vector_store %arg38[%c0, %c0_0], %0 {strides = array<i32>} : memref<10x160xf32, #tpu.memory_space<vmem>>, vector<10x160xf32>,
    %cst_1 = arith.constant 0.000000e+00 : f32
    %2 = vector.broadcast %cst_1 : f32 to vector<6x192xf32>
    %c0_2 = arith.constant 0 : index
    %c0_3 = arith.constant 0 : index
    %3 = vector.load %arg39[%c0_2, %c0_3] : memref<6x192xf32, #tpu.memory_space<vmem>>, vector<6x192xf32>
    tpu.vector_store %arg39[%c0_2, %c0_3], %2 {strides = array<i32>} : memref<6x192xf32, #tpu.memory_space<vmem>>, vector<6x192xf32>,
    %cst_4 = arith.constant 0.000000e+00 : f32
    %4 = vector.broadcast %cst_4 : f32 to vector<4x256xf32>
    %c0_5 = arith.constant 0 : index
    %c0_6 = arith.constant 0 : index
    %5 = vector.load %arg40[%c0_5, %c0_6] : memref<4x256xf32, #tpu.memory_space<vmem>>, vector<4x256xf32>
    tpu.vector_store %arg40[%c0_5, %c0_6], %4 {strides = array<i32>} : memref<4x256xf32, #tpu.memory_space<vmem>>, vector<4x256xf32>,
    %cst_7 = arith.constant 0.000000e+00 : f32
    %6 = vector.broadcast %cst_7 : f32 to vector<16x128xf32>
    %c0_8 = arith.constant 0 : index
    %c0_9 = arith.constant 0 : index
    %c0_10 = arith.constant 0 : index
    %7 = vector.load %arg1[%c0_8, %c0_9, %c0_10] : memref<1x18x144xf32, #tpu.memory_space<vmem>>, vector<1x16x128xf32>
    %8 = vector.shape_cast %7 : vector<1x16x128xf32> to vector<16x128xf32>
    %c0_11 = arith.constant 0 : index
    %c0_12 = arith.constant 0 : index
    %9 = vector.load %arg2[%c0_11, %c0_12] : memref<9x128xf32, #tpu.memory_space<vmem>>, vector<1x128xf32>
    %10 = vector.broadcast %9 : vector<1x128xf32> to vector<16x128xf32>
    %11 = arith.mulf %8, %10 : vector<16x128xf32>
    %12 = arith.addf %6, %11 : vector<16x128xf32>
    %c0_13 = arith.constant 0 : index
    %c0_14 = arith.constant 0 : index
    %c8 = arith.constant 8 : index
    %13 = vector.load %arg1[%c0_13, %c0_14, %c8] : memref<1x18x144xf32, #tpu.memory_space<vmem>>, vector<1x16x128xf32>
    %14 = vector.shape_cast %13 : vector<1x16x128xf32> to vector<16x128xf32>
    %c1 = arith.constant 1 : index
    %c0_15 = arith.constant 0 : index
    %15 = vector.load %arg2[%c1, %c0_15] : memref<9x128xf32, #tpu.memory_space<vmem>>, vector<1x128xf32>
    %16 = vector.broadcast %15 : vector<1x128xf32> to vector<16x128xf32>
    %17 = arith.mulf %14, %16 : vector<16x128xf32>
    %18 = arith.addf %12, %17 : vector<16x128xf32>
    %c0_16 = arith.constant 0 : index
    %c0_17 = arith.constant 0 : index
    %c16 = arith.constant 16 : index
    %19 = vector.load %arg1[%c0_16, %c0_17, %c16] : memref<1x18x144xf32, #tpu.memory_space<vmem>>, vector<1x16x128xf32>
    %20 = vector.shape_cast %19 : vector<1x16x128xf32> to vector<16x128xf32>
    %c2 = arith.constant 2 : index
    %c0_18 = arith.constant 0 : index
    %21 = vector.load %arg2[%c2, %c0_18] : memref<9x128xf32, #tpu.memory_space<vmem>>, vector<1x128xf32>
    %22 = vector.broadcast %21 : vector<1x128xf32> to vector<16x128xf32>
    %23 = arith.mulf %20, %22 : vector<16x128xf32>
    %24 = arith.addf %18, %23 : vector<16x128xf32>
    %c0_19 = arith.constant 0 : index
    %c1_20 = arith.constant 1 : index
    %c0_21 = arith.constant 0 : index
    %25 = vector.load %arg1[%c0_19, %c1_20, %c0_21] : memref<1x18x144xf32, #tpu.memory_space<vmem>>, vector<1x16x128xf32>
    %26 = vector.shape_cast %25 : vector<1x16x128xf32> to vector<16x128xf32>
    %c3 = arith.constant 3 : index
    %c0_22 = arith.constant 0 : index
    %27 = vector.load %arg2[%c3, %c0_22] : memref<9x128xf32, #tpu.memory_space<vmem>>, vector<1x128xf32>
    %28 = vector.broadcast %27 : vector<1x128xf32> to vector<16x128xf32>
    %29 = arith.mulf %26, %28 : vector<16x128xf32>
    %30 = arith.addf %24, %29 : vector<16x128xf32>
    %c0_23 = arith.constant 0 : index
    %c1_24 = arith.constant 1 : index
    %c8_25 = arith.constant 8 : index
    %31 = vector.load %arg1[%c0_23, %c1_24, %c8_25] : memref<1x18x144xf32, #tpu.memory_space<vmem>>, vector<1x16x128xf32>
    %32 = vector.shape_cast %31 : vector<1x16x128xf32> to vector<16x128xf32>
    %c4 = arith.constant 4 : index
    %c0_26 = arith.constant 0 : index
    %33 = vector.load %arg2[%c4, %c0_26] : memref<9x128xf32, #tpu.memory_space<vmem>>, vector<1x128xf32>
    %34 = vector.broadcast %33 : vector<1x128xf32> to vector<16x128xf32>
    %35 = arith.mulf %32, %34 : vector<16x128xf32>
    %36 = arith.addf %30, %35 : vector<16x128xf32>
    %c0_27 = arith.constant 0 : index
    %c1_28 = arith.constant 1 : index
    %c16_29 = arith.constant 16 : index
    %37 = vector.load %arg1[%c0_27, %c1_28, %c16_29] : memref<1x18x144xf32, #tpu.memory_space<vmem>>, vector<1x16x128xf32>
    %38 = vector.shape_cast %37 : vector<1x16x128xf32> to vector<16x128xf32>
    %c5 = arith.constant 5 : index
    %c0_30 = arith.constant 0 : index
    %39 = vector.load %arg2[%c5, %c0_30] : memref<9x128xf32, #tpu.memory_space<vmem>>, vector<1x128xf32>
    %40 = vector.broadcast %39 : vector<1x128xf32> to vector<16x128xf32>
    %41 = arith.mulf %38, %40 : vector<16x128xf32>
    %42 = arith.addf %36, %41 : vector<16x128xf32>
    %c0_31 = arith.constant 0 : index
    %c2_32 = arith.constant 2 : index
    %c0_33 = arith.constant 0 : index
    %43 = vector.load %arg1[%c0_31, %c2_32, %c0_33] : memref<1x18x144xf32, #tpu.memory_space<vmem>>, vector<1x16x128xf32>
    %44 = vector.shape_cast %43 : vector<1x16x128xf32> to vector<16x128xf32>
    %c6 = arith.constant 6 : index
    %c0_34 = arith.constant 0 : index
    %45 = vector.load %arg2[%c6, %c0_34] : memref<9x128xf32, #tpu.memory_space<vmem>>, vector<1x128xf32>
    %46 = vector.broadcast %45 : vector<1x128xf32> to vector<16x128xf32>
    %47 = arith.mulf %44, %46 : vector<16x128xf32>
    %48 = arith.addf %42, %47 : vector<16x128xf32>
    %c0_35 = arith.constant 0 : index
    %c2_36 = arith.constant 2 : index
    %c8_37 = arith.constant 8 : index
    %49 = vector.load %arg1[%c0_35, %c2_36, %c8_37] : memref<1x18x144xf32, #tpu.memory_space<vmem>>, vector<1x16x128xf32>
    %50 = vector.shape_cast %49 : vector<1x16x128xf32> to vector<16x128xf32>
    %c7 = arith.constant 7 : index
    %c0_38 = arith.constant 0 : index
    %51 = vector.load %arg2[%c7, %c0_38] : memref<9x128xf32, #tpu.memory_space<vmem>>, vector<1x128xf32>
    %52 = vector.broadcast %51 : vector<1x128xf32> to vector<16x128xf32>
    %53 = arith.mulf %50, %52 : vector<16x128xf32>
    %54 = arith.addf %48, %53 : vector<16x128xf32>
    %c0_39 = arith.constant 0 : index
    %c2_40 = arith.constant 2 : index
    %c16_41 = arith.constant 16 : index
    %55 = vector.load %arg1[%c0_39, %c2_40, %c16_41] : memref<1x18x144xf32, #tpu.memory_space<vmem>>, vector<1x16x128xf32>
    %56 = vector.shape_cast %55 : vector<1x16x128xf32> to vector<16x128xf32>
    %c8_42 = arith.constant 8 : index
    %c0_43 = arith.constant 0 : index
    %57 = vector.load %arg2[%c8_42, %c0_43] : memref<9x128xf32, #tpu.memory_space<vmem>>, vector<1x128xf32>
    %58 = vector.broadcast %57 : vector<1x128xf32> to vector<16x128xf32>
    %59 = arith.mulf %56, %58 : vector<16x128xf32>
    %60 = arith.addf %54, %59 : vector<16x128xf32>
    %c0_44 = arith.constant 0 : index
    %c0_45 = arith.constant 0 : index
    %61 = vector.load %arg3[%c0_44, %c0_45] : memref<1x128xf32, #tpu.memory_space<vmem>>, vector<1x128xf32>
    %62 = vector.broadcast %61 : vector<1x128xf32> to vector<16x128xf32>
    %63 = arith.mulf %60, %62 : vector<16x128xf32>
    %c0_46 = arith.constant 0 : index
    %c0_47 = arith.constant 0 : index
    %64 = vector.load %arg4[%c0_46, %c0_47] : memref<1x128xf32, #tpu.memory_space<vmem>>, vector<1x128xf32>
    %65 = vector.broadcast %64 : vector<1x128xf32> to vector<16x128xf32>
    %66 = arith.addf %63, %65 : vector<16x128xf32>
    %cst_48 = arith.constant 0.000000e+00 : f32
    %cst_49 = arith.constant 6.000000e+00 : f32
    %67 = vector.broadcast %cst_48 : f32 to vector<16x128xf32>
    %68 = arith.maximumf %67, %66 : vector<16x128xf32>
    %69 = vector.broadcast %cst_49 : f32 to vector<16x128xf32>
    %70 = arith.minimumf %69, %68 : vector<16x128xf32>
    %c0_50 = arith.constant 0 : index
    %c0_51 = arith.constant 0 : index
    %71 = vector.load %arg5[%c0_50, %c0_51] : memref<128x128xf32, #tpu.memory_space<vmem>>, vector<128x128xf32>
    %cst_52 = arith.constant dense<0.000000e+00> : vector<16x128xf32>
    %72 = tpu.matmul %70, %71, %cst_52 {dimension_numbers = #tpu.dot_dimension_numbers<[1], [0], [0], [1], [0, 0, 1, 1], [], []>} : vector<16x128xf32>, vector<128x128xf32>, vector<16x128xf32> -> vector<16x128xf32>
    %c0_53 = arith.constant 0 : index
    %c0_54 = arith.constant 0 : index
    %73 = vector.load %arg6[%c0_53, %c0_54] : memref<128x128xf32, #tpu.memory_space<vmem>>, vector<128x128xf32>
    %cst_55 = arith.constant dense<0.000000e+00> : vector<16x128xf32>
    %74 = tpu.matmul %70, %73, %cst_55 {dimension_numbers = #tpu.dot_dimension_numbers<[1], [0], [0], [1], [0, 0, 1, 1], [], []>} : vector<16x128xf32>, vector<128x128xf32>, vector<16x128xf32> -> vector<16x128xf32>
    %c0_56 = arith.constant 0 : index
    %c0_57 = arith.constant 0 : index
    %75 = vector.load %arg7[%c0_56, %c0_57] : memref<1x128xf32, #tpu.memory_space<vmem>>, vector<1x128xf32>
    %76 = vector.broadcast %75 : vector<1x128xf32> to vector<16x128xf32>
    %77 = arith.mulf %72, %76 : vector<16x128xf32>
    %c0_58 = arith.constant 0 : index
    %c0_59 = arith.constant 0 : index
    %78 = vector.load %arg8[%c0_58, %c0_59] : memref<1x128xf32, #tpu.memory_space<vmem>>, vector<1x128xf32>
    %79 = vector.broadcast %78 : vector<1x128xf32> to vector<16x128xf32>
    %80 = arith.addf %77, %79 : vector<16x128xf32>
    %c0_60 = arith.constant 0 : index
    %c0_61 = arith.constant 0 : index
    %81 = vector.load %arg7[%c0_60, %c0_61] : memref<1x128xf32, #tpu.memory_space<vmem>>, vector<1x128xf32>
    %82 = vector.broadcast %81 : vector<1x128xf32> to vector<16x128xf32>
    %83 = arith.mulf %74, %82 : vector<16x128xf32>
    %c0_62 = arith.constant 0 : index
    %c0_63 = arith.constant 0 : index
    %84 = vector.load %arg8[%c0_62, %c0_63] : memref<1x128xf32, #tpu.memory_space<vmem>>, vector<1x128xf32>
    %85 = vector.broadcast %84 : vector<1x128xf32> to vector<16x128xf32>
    %86 = arith.addf %83, %85 : vector<16x128xf32>
    %87 = arith.maximumf %80, %86 : vector<16x128xf32>
    %c0_64 = arith.constant 0 : index
    %c0_65 = arith.constant 0 : index
    %88 = vector.load %arg34[%c0_64, %c0_65] : memref<16x128xf32, #tpu.memory_space<vmem>>, vector<16x128xf32>
    tpu.vector_store %arg34[%c0_64, %c0_65], %87 {strides = array<i32>} : memref<16x128xf32, #tpu.memory_space<vmem>>, vector<16x128xf32>,
    %c0_66 = arith.constant 0 : index
    %c0_67 = arith.constant 0 : index
    %89 = tpu.strided_load %arg34[%c0_66, %c0_67] {strides = array<i32: 2, 1>} : memref<16x128xf32, #tpu.memory_space<vmem>>, vector<8x128xf32>
    %c1_68 = arith.constant 1 : index
    %c0_69 = arith.constant 0 : index
    %90 = tpu.strided_load %arg34[%c1_68, %c0_69] {strides = array<i32: 2, 1>} : memref<16x128xf32, #tpu.memory_space<vmem>>, vector<8x128xf32>
    %91 = arith.maximumf %89, %90 : vector<8x128xf32>
    %c0_70 = arith.constant 0 : index
    %c0_71 = arith.constant 0 : index
    %c0_72 = arith.constant 0 : index
    %92 = vector.load %arg30[%c0_70, %c0_71, %c0_72] : memref<1x8x128xf32, #tpu.memory_space<vmem>>, vector<1x8x128xf32>
    %93 = vector.shape_cast %92 : vector<1x8x128xf32> to vector<8x128xf32>
    %94 = vector.shape_cast %91 : vector<8x128xf32> to vector<1x8x128xf32>
    tpu.vector_store %arg30[%c0_70, %c0_71, %c0_72], %94 {strides = array<i32>} : memref<1x8x128xf32, #tpu.memory_space<vmem>>, vector<1x8x128xf32>,
    %c1_73 = arith.constant 1 : index
    %c16_74 = arith.constant 16 : index
    %95 = vector.load %arg38[%c1_73, %c16_74] : memref<10x160xf32, #tpu.memory_space<vmem>>, vector<8x128xf32>
    tpu.vector_store %arg38[%c1_73, %c16_74], %91 {strides = array<i32>} : memref<10x160xf32, #tpu.memory_space<vmem>>, vector<8x128xf32>,
    %cst_75 = arith.constant 0.000000e+00 : f32
    %96 = vector.broadcast %cst_75 : f32 to vector<8x128xf32>
    %c0_76 = arith.constant 0 : index
    %c0_77 = arith.constant 0 : index
    %97 = vector.load %arg38[%c0_76, %c0_77] : memref<10x160xf32, #tpu.memory_space<vmem>>, vector<8x128xf32>
    %c0_78 = arith.constant 0 : index
    %c0_79 = arith.constant 0 : index
    %98 = vector.load %arg9[%c0_78, %c0_79] : memref<9x128xf32, #tpu.memory_space<vmem>>, vector<1x128xf32>
    %99 = vector.broadcast %98 : vector<1x128xf32> to vector<8x128xf32>
    %100 = arith.mulf %97, %99 : vector<8x128xf32>
    %101 = arith.addf %96, %100 : vector<8x128xf32>
    %c0_80 = arith.constant 0 : index
    %c16_81 = arith.constant 16 : index
    %102 = vector.load %arg38[%c0_80, %c16_81] : memref<10x160xf32, #tpu.memory_space<vmem>>, vector<8x128xf32>
    %c1_82 = arith.constant 1 : index
    %c0_83 = arith.constant 0 : index
    %103 = vector.load %arg9[%c1_82, %c0_83] : memref<9x128xf32, #tpu.memory_space<vmem>>, vector<1x128xf32>
    %104 = vector.broadcast %103 : vector<1x128xf32> to vector<8x128xf32>
    %105 = arith.mulf %102, %104 : vector<8x128xf32>
    %106 = arith.addf %101, %105 : vector<8x128xf32>
    %c0_84 = arith.constant 0 : index
    %c32 = arith.constant 32 : index
    %107 = vector.load %arg38[%c0_84, %c32] : memref<10x160xf32, #tpu.memory_space<vmem>>, vector<8x128xf32>
    %c2_85 = arith.constant 2 : index
    %c0_86 = arith.constant 0 : index
    %108 = vector.load %arg9[%c2_85, %c0_86] : memref<9x128xf32, #tpu.memory_space<vmem>>, vector<1x128xf32>
    %109 = vector.broadcast %108 : vector<1x128xf32> to vector<8x128xf32>
    %110 = arith.mulf %107, %109 : vector<8x128xf32>
    %111 = arith.addf %106, %110 : vector<8x128xf32>
    %c1_87 = arith.constant 1 : index
    %c0_88 = arith.constant 0 : index
    %112 = vector.load %arg38[%c1_87, %c0_88] : memref<10x160xf32, #tpu.memory_space<vmem>>, vector<8x128xf32>
    %c3_89 = arith.constant 3 : index
    %c0_90 = arith.constant 0 : index
    %113 = vector.load %arg9[%c3_89, %c0_90] : memref<9x128xf32, #tpu.memory_space<vmem>>, vector<1x128xf32>
    %114 = vector.broadcast %113 : vector<1x128xf32> to vector<8x128xf32>
    %115 = arith.mulf %112, %114 : vector<8x128xf32>
    %116 = arith.addf %111, %115 : vector<8x128xf32>
    %c1_91 = arith.constant 1 : index
    %c16_92 = arith.constant 16 : index
    %117 = vector.load %arg38[%c1_91, %c16_92] : memref<10x160xf32, #tpu.memory_space<vmem>>, vector<8x128xf32>
    %c4_93 = arith.constant 4 : index
    %c0_94 = arith.constant 0 : index
    %118 = vector.load %arg9[%c4_93, %c0_94] : memref<9x128xf32, #tpu.memory_space<vmem>>, vector<1x128xf32>
    %119 = vector.broadcast %118 : vector<1x128xf32> to vector<8x128xf32>
    %120 = arith.mulf %117, %119 : vector<8x128xf32>
    %121 = arith.addf %116, %120 : vector<8x128xf32>
    %c1_95 = arith.constant 1 : index
    %c32_96 = arith.constant 32 : index
    %122 = vector.load %arg38[%c1_95, %c32_96] : memref<10x160xf32, #tpu.memory_space<vmem>>, vector<8x128xf32>
    %c5_97 = arith.constant 5 : index
    %c0_98 = arith.constant 0 : index
    %123 = vector.load %arg9[%c5_97, %c0_98] : memref<9x128xf32, #tpu.memory_space<vmem>>, vector<1x128xf32>
    %124 = vector.broadcast %123 : vector<1x128xf32> to vector<8x128xf32>
    %125 = arith.mulf %122, %124 : vector<8x128xf32>
    %126 = arith.addf %121, %125 : vector<8x128xf32>
    %c2_99 = arith.constant 2 : index
    %c0_100 = arith.constant 0 : index
    %127 = vector.load %arg38[%c2_99, %c0_100] : memref<10x160xf32, #tpu.memory_space<vmem>>, vector<8x128xf32>
    %c6_101 = arith.constant 6 : index
    %c0_102 = arith.constant 0 : index
    %128 = vector.load %arg9[%c6_101, %c0_102] : memref<9x128xf32, #tpu.memory_space<vmem>>, vector<1x128xf32>
    %129 = vector.broadcast %128 : vector<1x128xf32> to vector<8x128xf32>
    %130 = arith.mulf %127, %129 : vector<8x128xf32>
    %131 = arith.addf %126, %130 : vector<8x128xf32>
    %c2_103 = arith.constant 2 : index
    %c16_104 = arith.constant 16 : index
    %132 = vector.load %arg38[%c2_103, %c16_104] : memref<10x160xf32, #tpu.memory_space<vmem>>, vector<8x128xf32>
    %c7_105 = arith.constant 7 : index
    %c0_106 = arith.constant 0 : index
    %133 = vector.load %arg9[%c7_105, %c0_106] : memref<9x128xf32, #tpu.memory_space<vmem>>, vector<1x128xf32>
    %134 = vector.broadcast %133 : vector<1x128xf32> to vector<8x128xf32>
    %135 = arith.mulf %132, %134 : vector<8x128xf32>
    %136 = arith.addf %131, %135 : vector<8x128xf32>
    %c2_107 = arith.constant 2 : index
    %c32_108 = arith.constant 32 : index
    %137 = vector.load %arg38[%c2_107, %c32_108] : memref<10x160xf32, #tpu.memory_space<vmem>>, vector<8x128xf32>
    %c8_109 = arith.constant 8 : index
    %c0_110 = arith.constant 0 : index
    %138 = vector.load %arg9[%c8_109, %c0_110] : memref<9x128xf32, #tpu.memory_space<vmem>>, vector<1x128xf32>
    %139 = vector.broadcast %138 : vector<1x128xf32> to vector<8x128xf32>
    %140 = arith.mulf %137, %139 : vector<8x128xf32>
    %141 = arith.addf %136, %140 : vector<8x128xf32>
    %c0_111 = arith.constant 0 : index
    %c0_112 = arith.constant 0 : index
    %142 = vector.load %arg10[%c0_111, %c0_112] : memref<1x128xf32, #tpu.memory_space<vmem>>, vector<1x128xf32>
    %143 = vector.broadcast %142 : vector<1x128xf32> to vector<8x128xf32>
    %144 = arith.mulf %141, %143 : vector<8x128xf32>
    %c0_113 = arith.constant 0 : index
    %c0_114 = arith.constant 0 : index
    %145 = vector.load %arg11[%c0_113, %c0_114] : memref<1x128xf32, #tpu.memory_space<vmem>>, vector<1x128xf32>
    %146 = vector.broadcast %145 : vector<1x128xf32> to vector<8x128xf32>
    %147 = arith.addf %144, %146 : vector<8x128xf32>
    %cst_115 = arith.constant 0.000000e+00 : f32
    %cst_116 = arith.constant 6.000000e+00 : f32
    %148 = vector.broadcast %cst_115 : f32 to vector<8x128xf32>
    %149 = arith.maximumf %148, %147 : vector<8x128xf32>
    %150 = vector.broadcast %cst_116 : f32 to vector<8x128xf32>
    %151 = arith.minimumf %150, %149 : vector<8x128xf32>
    %c0_117 = arith.constant 0 : index
    %c0_118 = arith.constant 0 : index
    %152 = vector.load %arg12[%c0_117, %c0_118] : memref<128x128xf32, #tpu.memory_space<vmem>>, vector<128x128xf32>
    %cst_119 = arith.constant dense<0.000000e+00> : vector<8x128xf32>
    %153 = tpu.matmul %151, %152, %cst_119 {dimension_numbers = #tpu.dot_dimension_numbers<[1], [0], [0], [1], [0, 0, 1, 1], [], []>} : vector<8x128xf32>, vector<128x128xf32>, vector<8x128xf32> -> vector<8x128xf32>
    %c0_120 = arith.constant 0 : index
    %c0_121 = arith.constant 0 : index
    %154 = vector.load %arg13[%c0_120, %c0_121] : memref<128x128xf32, #tpu.memory_space<vmem>>, vector<128x128xf32>
    %cst_122 = arith.constant dense<0.000000e+00> : vector<8x128xf32>
    %155 = tpu.matmul %151, %154, %cst_122 {dimension_numbers = #tpu.dot_dimension_numbers<[1], [0], [0], [1], [0, 0, 1, 1], [], []>} : vector<8x128xf32>, vector<128x128xf32>, vector<8x128xf32> -> vector<8x128xf32>
    %c0_123 = arith.constant 0 : index
    %c0_124 = arith.constant 0 : index
    %156 = vector.load %arg14[%c0_123, %c0_124] : memref<1x128xf32, #tpu.memory_space<vmem>>, vector<1x128xf32>
    %157 = vector.broadcast %156 : vector<1x128xf32> to vector<8x128xf32>
    %158 = arith.mulf %153, %157 : vector<8x128xf32>
    %c0_125 = arith.constant 0 : index
    %c0_126 = arith.constant 0 : index
    %159 = vector.load %arg15[%c0_125, %c0_126] : memref<1x128xf32, #tpu.memory_space<vmem>>, vector<1x128xf32>
    %160 = vector.broadcast %159 : vector<1x128xf32> to vector<8x128xf32>
    %161 = arith.addf %158, %160 : vector<8x128xf32>
    %c0_127 = arith.constant 0 : index
    %c0_128 = arith.constant 0 : index
    %162 = vector.load %arg14[%c0_127, %c0_128] : memref<1x128xf32, #tpu.memory_space<vmem>>, vector<1x128xf32>
    %163 = vector.broadcast %162 : vector<1x128xf32> to vector<8x128xf32>
    %164 = arith.mulf %155, %163 : vector<8x128xf32>
    %c0_129 = arith.constant 0 : index
    %c0_130 = arith.constant 0 : index
    %165 = vector.load %arg15[%c0_129, %c0_130] : memref<1x128xf32, #tpu.memory_space<vmem>>, vector<1x128xf32>
    %166 = vector.broadcast %165 : vector<1x128xf32> to vector<8x128xf32>
    %167 = arith.addf %164, %166 : vector<8x128xf32>
    %168 = arith.maximumf %161, %167 : vector<8x128xf32>
    %c0_131 = arith.constant 0 : index
    %c0_132 = arith.constant 0 : index
    %169 = vector.load %arg35[%c0_131, %c0_132] : memref<8x128xf32, #tpu.memory_space<vmem>>, vector<8x128xf32>
    tpu.vector_store %arg35[%c0_131, %c0_132], %168 {strides = array<i32>} : memref<8x128xf32, #tpu.memory_space<vmem>>, vector<8x128xf32>,
    %c0_133 = arith.constant 0 : index
    %c0_134 = arith.constant 0 : index
    %170 = tpu.strided_load %arg35[%c0_133, %c0_134] {strides = array<i32: 2, 1>} : memref<8x128xf32, #tpu.memory_space<vmem>>, vector<4x128xf32>
    %c1_135 = arith.constant 1 : index
    %c0_136 = arith.constant 0 : index
    %171 = tpu.strided_load %arg35[%c1_135, %c0_136] {strides = array<i32: 2, 1>} : memref<8x128xf32, #tpu.memory_space<vmem>>, vector<4x128xf32>
    %172 = arith.maximumf %170, %171 : vector<4x128xf32>
    %c0_137 = arith.constant 0 : index
    %c0_138 = arith.constant 0 : index
    %c0_139 = arith.constant 0 : index
    %173 = vector.load %arg31[%c0_137, %c0_138, %c0_139] : memref<1x4x128xf32, #tpu.memory_space<vmem>>, vector<1x4x128xf32>
    %174 = vector.shape_cast %173 : vector<1x4x128xf32> to vector<4x128xf32>
    %175 = vector.shape_cast %172 : vector<4x128xf32> to vector<1x4x128xf32>
    tpu.vector_store %arg31[%c0_137, %c0_138, %c0_139], %175 {strides = array<i32>} : memref<1x4x128xf32, #tpu.memory_space<vmem>>, vector<1x4x128xf32>,
    %c1_140 = arith.constant 1 : index
    %c32_141 = arith.constant 32 : index
    %176 = vector.load %arg39[%c1_140, %c32_141] : memref<6x192xf32, #tpu.memory_space<vmem>>, vector<4x128xf32>
    tpu.vector_store %arg39[%c1_140, %c32_141], %172 {strides = array<i32>} : memref<6x192xf32, #tpu.memory_space<vmem>>, vector<4x128xf32>,
    %cst_142 = arith.constant 0.000000e+00 : f32
    %177 = vector.broadcast %cst_142 : f32 to vector<4x128xf32>
    %c0_143 = arith.constant 0 : index
    %c0_144 = arith.constant 0 : index
    %178 = vector.load %arg39[%c0_143, %c0_144] : memref<6x192xf32, #tpu.memory_space<vmem>>, vector<4x128xf32>
    %c0_145 = arith.constant 0 : index
    %c0_146 = arith.constant 0 : index
    %179 = vector.load %arg16[%c0_145, %c0_146] : memref<9x128xf32, #tpu.memory_space<vmem>>, vector<1x128xf32>
    %180 = vector.broadcast %179 : vector<1x128xf32> to vector<4x128xf32>
    %181 = arith.mulf %178, %180 : vector<4x128xf32>
    %182 = arith.addf %177, %181 : vector<4x128xf32>
    %c0_147 = arith.constant 0 : index
    %c32_148 = arith.constant 32 : index
    %183 = vector.load %arg39[%c0_147, %c32_148] : memref<6x192xf32, #tpu.memory_space<vmem>>, vector<4x128xf32>
    %c1_149 = arith.constant 1 : index
    %c0_150 = arith.constant 0 : index
    %184 = vector.load %arg16[%c1_149, %c0_150] : memref<9x128xf32, #tpu.memory_space<vmem>>, vector<1x128xf32>
    %185 = vector.broadcast %184 : vector<1x128xf32> to vector<4x128xf32>
    %186 = arith.mulf %183, %185 : vector<4x128xf32>
    %187 = arith.addf %182, %186 : vector<4x128xf32>
    %c0_151 = arith.constant 0 : index
    %c64 = arith.constant 64 : index
    %188 = vector.load %arg39[%c0_151, %c64] : memref<6x192xf32, #tpu.memory_space<vmem>>, vector<4x128xf32>
    %c2_152 = arith.constant 2 : index
    %c0_153 = arith.constant 0 : index
    %189 = vector.load %arg16[%c2_152, %c0_153] : memref<9x128xf32, #tpu.memory_space<vmem>>, vector<1x128xf32>
    %190 = vector.broadcast %189 : vector<1x128xf32> to vector<4x128xf32>
    %191 = arith.mulf %188, %190 : vector<4x128xf32>
    %192 = arith.addf %187, %191 : vector<4x128xf32>
    %c1_154 = arith.constant 1 : index
    %c0_155 = arith.constant 0 : index
    %193 = vector.load %arg39[%c1_154, %c0_155] : memref<6x192xf32, #tpu.memory_space<vmem>>, vector<4x128xf32>
    %c3_156 = arith.constant 3 : index
    %c0_157 = arith.constant 0 : index
    %194 = vector.load %arg16[%c3_156, %c0_157] : memref<9x128xf32, #tpu.memory_space<vmem>>, vector<1x128xf32>
    %195 = vector.broadcast %194 : vector<1x128xf32> to vector<4x128xf32>
    %196 = arith.mulf %193, %195 : vector<4x128xf32>
    %197 = arith.addf %192, %196 : vector<4x128xf32>
    %c1_158 = arith.constant 1 : index
    %c32_159 = arith.constant 32 : index
    %198 = vector.load %arg39[%c1_158, %c32_159] : memref<6x192xf32, #tpu.memory_space<vmem>>, vector<4x128xf32>
    %c4_160 = arith.constant 4 : index
    %c0_161 = arith.constant 0 : index
    %199 = vector.load %arg16[%c4_160, %c0_161] : memref<9x128xf32, #tpu.memory_space<vmem>>, vector<1x128xf32>
    %200 = vector.broadcast %199 : vector<1x128xf32> to vector<4x128xf32>
    %201 = arith.mulf %198, %200 : vector<4x128xf32>
    %202 = arith.addf %197, %201 : vector<4x128xf32>
    %c1_162 = arith.constant 1 : index
    %c64_163 = arith.constant 64 : index
    %203 = vector.load %arg39[%c1_162, %c64_163] : memref<6x192xf32, #tpu.memory_space<vmem>>, vector<4x128xf32>
    %c5_164 = arith.constant 5 : index
    %c0_165 = arith.constant 0 : index
    %204 = vector.load %arg16[%c5_164, %c0_165] : memref<9x128xf32, #tpu.memory_space<vmem>>, vector<1x128xf32>
    %205 = vector.broadcast %204 : vector<1x128xf32> to vector<4x128xf32>
    %206 = arith.mulf %203, %205 : vector<4x128xf32>
    %207 = arith.addf %202, %206 : vector<4x128xf32>
    %c2_166 = arith.constant 2 : index
    %c0_167 = arith.constant 0 : index
    %208 = vector.load %arg39[%c2_166, %c0_167] : memref<6x192xf32, #tpu.memory_space<vmem>>, vector<4x128xf32>
    %c6_168 = arith.constant 6 : index
    %c0_169 = arith.constant 0 : index
    %209 = vector.load %arg16[%c6_168, %c0_169] : memref<9x128xf32, #tpu.memory_space<vmem>>, vector<1x128xf32>
    %210 = vector.broadcast %209 : vector<1x128xf32> to vector<4x128xf32>
    %211 = arith.mulf %208, %210 : vector<4x128xf32>
    %212 = arith.addf %207, %211 : vector<4x128xf32>
    %c2_170 = arith.constant 2 : index
    %c32_171 = arith.constant 32 : index
    %213 = vector.load %arg39[%c2_170, %c32_171] : memref<6x192xf32, #tpu.memory_space<vmem>>, vector<4x128xf32>
    %c7_172 = arith.constant 7 : index
    %c0_173 = arith.constant 0 : index
    %214 = vector.load %arg16[%c7_172, %c0_173] : memref<9x128xf32, #tpu.memory_space<vmem>>, vector<1x128xf32>
    %215 = vector.broadcast %214 : vector<1x128xf32> to vector<4x128xf32>
    %216 = arith.mulf %213, %215 : vector<4x128xf32>
    %217 = arith.addf %212, %216 : vector<4x128xf32>
    %c2_174 = arith.constant 2 : index
    %c64_175 = arith.constant 64 : index
    %218 = vector.load %arg39[%c2_174, %c64_175] : memref<6x192xf32, #tpu.memory_space<vmem>>, vector<4x128xf32>
    %c8_176 = arith.constant 8 : index
    %c0_177 = arith.constant 0 : index
    %219 = vector.load %arg16[%c8_176, %c0_177] : memref<9x128xf32, #tpu.memory_space<vmem>>, vector<1x128xf32>
    %220 = vector.broadcast %219 : vector<1x128xf32> to vector<4x128xf32>
    %221 = arith.mulf %218, %220 : vector<4x128xf32>
    %222 = arith.addf %217, %221 : vector<4x128xf32>
    %c0_178 = arith.constant 0 : index
    %c0_179 = arith.constant 0 : index
    %223 = vector.load %arg17[%c0_178, %c0_179] : memref<1x128xf32, #tpu.memory_space<vmem>>, vector<1x128xf32>
    %224 = vector.broadcast %223 : vector<1x128xf32> to vector<4x128xf32>
    %225 = arith.mulf %222, %224 : vector<4x128xf32>
    %c0_180 = arith.constant 0 : index
    %c0_181 = arith.constant 0 : index
    %226 = vector.load %arg18[%c0_180, %c0_181] : memref<1x128xf32, #tpu.memory_space<vmem>>, vector<1x128xf32>
    %227 = vector.broadcast %226 : vector<1x128xf32> to vector<4x128xf32>
    %228 = arith.addf %225, %227 : vector<4x128xf32>
    %cst_182 = arith.constant 0.000000e+00 : f32
    %cst_183 = arith.constant 6.000000e+00 : f32
    %229 = vector.broadcast %cst_182 : f32 to vector<4x128xf32>
    %230 = arith.maximumf %229, %228 : vector<4x128xf32>
    %231 = vector.broadcast %cst_183 : f32 to vector<4x128xf32>
    %232 = arith.minimumf %231, %230 : vector<4x128xf32>
    %c0_184 = arith.constant 0 : index
    %c0_185 = arith.constant 0 : index
    %233 = vector.load %arg19[%c0_184, %c0_185] : memref<128x128xf32, #tpu.memory_space<vmem>>, vector<128x128xf32>
    %cst_186 = arith.constant dense<0.000000e+00> : vector<4x128xf32>
    %234 = tpu.matmul %232, %233, %cst_186 {dimension_numbers = #tpu.dot_dimension_numbers<[1], [0], [0], [1], [0, 0, 1, 1], [], []>} : vector<4x128xf32>, vector<128x128xf32>, vector<4x128xf32> -> vector<4x128xf32>
    %c0_187 = arith.constant 0 : index
    %c0_188 = arith.constant 0 : index
    %235 = vector.load %arg20[%c0_187, %c0_188] : memref<128x128xf32, #tpu.memory_space<vmem>>, vector<128x128xf32>
    %cst_189 = arith.constant dense<0.000000e+00> : vector<4x128xf32>
    %236 = tpu.matmul %232, %235, %cst_189 {dimension_numbers = #tpu.dot_dimension_numbers<[1], [0], [0], [1], [0, 0, 1, 1], [], []>} : vector<4x128xf32>, vector<128x128xf32>, vector<4x128xf32> -> vector<4x128xf32>
    %c0_190 = arith.constant 0 : index
    %c0_191 = arith.constant 0 : index
    %237 = vector.load %arg21[%c0_190, %c0_191] : memref<1x128xf32, #tpu.memory_space<vmem>>, vector<1x128xf32>
    %238 = vector.broadcast %237 : vector<1x128xf32> to vector<4x128xf32>
    %239 = arith.mulf %234, %238 : vector<4x128xf32>
    %c0_192 = arith.constant 0 : index
    %c0_193 = arith.constant 0 : index
    %240 = vector.load %arg22[%c0_192, %c0_193] : memref<1x128xf32, #tpu.memory_space<vmem>>, vector<1x128xf32>
    %241 = vector.broadcast %240 : vector<1x128xf32> to vector<4x128xf32>
    %242 = arith.addf %239, %241 : vector<4x128xf32>
    %c0_194 = arith.constant 0 : index
    %c0_195 = arith.constant 0 : index
    %243 = vector.load %arg21[%c0_194, %c0_195] : memref<1x128xf32, #tpu.memory_space<vmem>>, vector<1x128xf32>
    %244 = vector.broadcast %243 : vector<1x128xf32> to vector<4x128xf32>
    %245 = arith.mulf %236, %244 : vector<4x128xf32>
    %c0_196 = arith.constant 0 : index
    %c0_197 = arith.constant 0 : index
    %246 = vector.load %arg22[%c0_196, %c0_197] : memref<1x128xf32, #tpu.memory_space<vmem>>, vector<1x128xf32>
    %247 = vector.broadcast %246 : vector<1x128xf32> to vector<4x128xf32>
    %248 = arith.addf %245, %247 : vector<4x128xf32>
    %249 = arith.maximumf %242, %248 : vector<4x128xf32>
    %c0_198 = arith.constant 0 : index
    %c0_199 = arith.constant 0 : index
    %250 = vector.load %arg36[%c0_198, %c0_199] : memref<4x128xf32, #tpu.memory_space<vmem>>, vector<4x128xf32>
    tpu.vector_store %arg36[%c0_198, %c0_199], %249 {strides = array<i32>} : memref<4x128xf32, #tpu.memory_space<vmem>>, vector<4x128xf32>,
    %c0_200 = arith.constant 0 : index
    %c0_201 = arith.constant 0 : index
    %251 = tpu.strided_load %arg36[%c0_200, %c0_201] {strides = array<i32: 2, 1>} : memref<4x128xf32, #tpu.memory_space<vmem>>, vector<2x128xf32>
    %c1_202 = arith.constant 1 : index
    %c0_203 = arith.constant 0 : index
    %252 = tpu.strided_load %arg36[%c1_202, %c0_203] {strides = array<i32: 2, 1>} : memref<4x128xf32, #tpu.memory_space<vmem>>, vector<2x128xf32>
    %253 = arith.maximumf %251, %252 : vector<2x128xf32>
    %c0_204 = arith.constant 0 : index
    %c0_205 = arith.constant 0 : index
    %c0_206 = arith.constant 0 : index
    %254 = vector.load %arg32[%c0_204, %c0_205, %c0_206] : memref<1x2x128xf32, #tpu.memory_space<vmem>>, vector<1x2x128xf32>
    %255 = vector.shape_cast %254 : vector<1x2x128xf32> to vector<2x128xf32>
    %256 = vector.shape_cast %253 : vector<2x128xf32> to vector<1x2x128xf32>
    tpu.vector_store %arg32[%c0_204, %c0_205, %c0_206], %256 {strides = array<i32>} : memref<1x2x128xf32, #tpu.memory_space<vmem>>, vector<1x2x128xf32>,
    %c1_207 = arith.constant 1 : index
    %c64_208 = arith.constant 64 : index
    %257 = vector.load %arg40[%c1_207, %c64_208] : memref<4x256xf32, #tpu.memory_space<vmem>>, vector<2x128xf32>
    tpu.vector_store %arg40[%c1_207, %c64_208], %253 {strides = array<i32>} : memref<4x256xf32, #tpu.memory_space<vmem>>, vector<2x128xf32>,
    %cst_209 = arith.constant 0.000000e+00 : f32
    %258 = vector.broadcast %cst_209 : f32 to vector<2x128xf32>
    %c0_210 = arith.constant 0 : index
    %c0_211 = arith.constant 0 : index
    %259 = vector.load %arg40[%c0_210, %c0_211] : memref<4x256xf32, #tpu.memory_space<vmem>>, vector<2x128xf32>
    %c0_212 = arith.constant 0 : index
    %c0_213 = arith.constant 0 : index
    %260 = vector.load %arg23[%c0_212, %c0_213] : memref<9x128xf32, #tpu.memory_space<vmem>>, vector<1x128xf32>
    %261 = vector.broadcast %260 : vector<1x128xf32> to vector<2x128xf32>
    %262 = arith.mulf %259, %261 : vector<2x128xf32>
    %263 = arith.addf %258, %262 : vector<2x128xf32>
    %c0_214 = arith.constant 0 : index
    %c64_215 = arith.constant 64 : index
    %264 = vector.load %arg40[%c0_214, %c64_215] : memref<4x256xf32, #tpu.memory_space<vmem>>, vector<2x128xf32>
    %c1_216 = arith.constant 1 : index
    %c0_217 = arith.constant 0 : index
    %265 = vector.load %arg23[%c1_216, %c0_217] : memref<9x128xf32, #tpu.memory_space<vmem>>, vector<1x128xf32>
    %266 = vector.broadcast %265 : vector<1x128xf32> to vector<2x128xf32>
    %267 = arith.mulf %264, %266 : vector<2x128xf32>
    %268 = arith.addf %263, %267 : vector<2x128xf32>
    %c0_218 = arith.constant 0 : index
    %c128 = arith.constant 128 : index
    %269 = vector.load %arg40[%c0_218, %c128] : memref<4x256xf32, #tpu.memory_space<vmem>>, vector<2x128xf32>
    %c2_219 = arith.constant 2 : index
    %c0_220 = arith.constant 0 : index
    %270 = vector.load %arg23[%c2_219, %c0_220] : memref<9x128xf32, #tpu.memory_space<vmem>>, vector<1x128xf32>
    %271 = vector.broadcast %270 : vector<1x128xf32> to vector<2x128xf32>
    %272 = arith.mulf %269, %271 : vector<2x128xf32>
    %273 = arith.addf %268, %272 : vector<2x128xf32>
    %c1_221 = arith.constant 1 : index
    %c0_222 = arith.constant 0 : index
    %274 = vector.load %arg40[%c1_221, %c0_222] : memref<4x256xf32, #tpu.memory_space<vmem>>, vector<2x128xf32>
    %c3_223 = arith.constant 3 : index
    %c0_224 = arith.constant 0 : index
    %275 = vector.load %arg23[%c3_223, %c0_224] : memref<9x128xf32, #tpu.memory_space<vmem>>, vector<1x128xf32>
    %276 = vector.broadcast %275 : vector<1x128xf32> to vector<2x128xf32>
    %277 = arith.mulf %274, %276 : vector<2x128xf32>
    %278 = arith.addf %273, %277 : vector<2x128xf32>
    %c1_225 = arith.constant 1 : index
    %c64_226 = arith.constant 64 : index
    %279 = vector.load %arg40[%c1_225, %c64_226] : memref<4x256xf32, #tpu.memory_space<vmem>>, vector<2x128xf32>
    %c4_227 = arith.constant 4 : index
    %c0_228 = arith.constant 0 : index
    %280 = vector.load %arg23[%c4_227, %c0_228] : memref<9x128xf32, #tpu.memory_space<vmem>>, vector<1x128xf32>
    %281 = vector.broadcast %280 : vector<1x128xf32> to vector<2x128xf32>
    %282 = arith.mulf %279, %281 : vector<2x128xf32>
    %283 = arith.addf %278, %282 : vector<2x128xf32>
    %c1_229 = arith.constant 1 : index
    %c128_230 = arith.constant 128 : index
    %284 = vector.load %arg40[%c1_229, %c128_230] : memref<4x256xf32, #tpu.memory_space<vmem>>, vector<2x128xf32>
    %c5_231 = arith.constant 5 : index
    %c0_232 = arith.constant 0 : index
    %285 = vector.load %arg23[%c5_231, %c0_232] : memref<9x128xf32, #tpu.memory_space<vmem>>, vector<1x128xf32>
    %286 = vector.broadcast %285 : vector<1x128xf32> to vector<2x128xf32>
    %287 = arith.mulf %284, %286 : vector<2x128xf32>
    %288 = arith.addf %283, %287 : vector<2x128xf32>
    %c2_233 = arith.constant 2 : index
    %c0_234 = arith.constant 0 : index
    %289 = vector.load %arg40[%c2_233, %c0_234] : memref<4x256xf32, #tpu.memory_space<vmem>>, vector<2x128xf32>
    %c6_235 = arith.constant 6 : index
    %c0_236 = arith.constant 0 : index
    %290 = vector.load %arg23[%c6_235, %c0_236] : memref<9x128xf32, #tpu.memory_space<vmem>>, vector<1x128xf32>
    %291 = vector.broadcast %290 : vector<1x128xf32> to vector<2x128xf32>
    %292 = arith.mulf %289, %291 : vector<2x128xf32>
    %293 = arith.addf %288, %292 : vector<2x128xf32>
    %c2_237 = arith.constant 2 : index
    %c64_238 = arith.constant 64 : index
    %294 = vector.load %arg40[%c2_237, %c64_238] : memref<4x256xf32, #tpu.memory_space<vmem>>, vector<2x128xf32>
    %c7_239 = arith.constant 7 : index
    %c0_240 = arith.constant 0 : index
    %295 = vector.load %arg23[%c7_239, %c0_240] : memref<9x128xf32, #tpu.memory_space<vmem>>, vector<1x128xf32>
    %296 = vector.broadcast %295 : vector<1x128xf32> to vector<2x128xf32>
    %297 = arith.mulf %294, %296 : vector<2x128xf32>
    %298 = arith.addf %293, %297 : vector<2x128xf32>
    %c2_241 = arith.constant 2 : index
    %c128_242 = arith.constant 128 : index
    %299 = vector.load %arg40[%c2_241, %c128_242] : memref<4x256xf32, #tpu.memory_space<vmem>>, vector<2x128xf32>
    %c8_243 = arith.constant 8 : index
    %c0_244 = arith.constant 0 : index
    %300 = vector.load %arg23[%c8_243, %c0_244] : memref<9x128xf32, #tpu.memory_space<vmem>>, vector<1x128xf32>
    %301 = vector.broadcast %300 : vector<1x128xf32> to vector<2x128xf32>
    %302 = arith.mulf %299, %301 : vector<2x128xf32>
    %303 = arith.addf %298, %302 : vector<2x128xf32>
    %c0_245 = arith.constant 0 : index
    %c0_246 = arith.constant 0 : index
    %304 = vector.load %arg24[%c0_245, %c0_246] : memref<1x128xf32, #tpu.memory_space<vmem>>, vector<1x128xf32>
    %305 = vector.broadcast %304 : vector<1x128xf32> to vector<2x128xf32>
    %306 = arith.mulf %303, %305 : vector<2x128xf32>
    %c0_247 = arith.constant 0 : index
    %c0_248 = arith.constant 0 : index
    %307 = vector.load %arg25[%c0_247, %c0_248] : memref<1x128xf32, #tpu.memory_space<vmem>>, vector<1x128xf32>
    %308 = vector.broadcast %307 : vector<1x128xf32> to vector<2x128xf32>
    %309 = arith.addf %306, %308 : vector<2x128xf32>
    %cst_249 = arith.constant 0.000000e+00 : f32
    %cst_250 = arith.constant 6.000000e+00 : f32
    %310 = vector.broadcast %cst_249 : f32 to vector<2x128xf32>
    %311 = arith.maximumf %310, %309 : vector<2x128xf32>
    %312 = vector.broadcast %cst_250 : f32 to vector<2x128xf32>
    %313 = arith.minimumf %312, %311 : vector<2x128xf32>
    %c0_251 = arith.constant 0 : index
    %c0_252 = arith.constant 0 : index
    %314 = vector.load %arg26[%c0_251, %c0_252] : memref<128x128xf32, #tpu.memory_space<vmem>>, vector<128x128xf32>
    %cst_253 = arith.constant dense<0.000000e+00> : vector<2x128xf32>
    %315 = tpu.matmul %313, %314, %cst_253 {dimension_numbers = #tpu.dot_dimension_numbers<[1], [0], [0], [1], [0, 0, 1, 1], [], []>} : vector<2x128xf32>, vector<128x128xf32>, vector<2x128xf32> -> vector<2x128xf32>
    %c0_254 = arith.constant 0 : index
    %c0_255 = arith.constant 0 : index
    %316 = vector.load %arg27[%c0_254, %c0_255] : memref<128x128xf32, #tpu.memory_space<vmem>>, vector<128x128xf32>
    %cst_256 = arith.constant dense<0.000000e+00> : vector<2x128xf32>
    %317 = tpu.matmul %313, %316, %cst_256 {dimension_numbers = #tpu.dot_dimension_numbers<[1], [0], [0], [1], [0, 0, 1, 1], [], []>} : vector<2x128xf32>, vector<128x128xf32>, vector<2x128xf32> -> vector<2x128xf32>
    %c0_257 = arith.constant 0 : index
    %c0_258 = arith.constant 0 : index
    %318 = vector.load %arg28[%c0_257, %c0_258] : memref<1x128xf32, #tpu.memory_space<vmem>>, vector<1x128xf32>
    %319 = vector.broadcast %318 : vector<1x128xf32> to vector<2x128xf32>
    %320 = arith.mulf %315, %319 : vector<2x128xf32>
    %c0_259 = arith.constant 0 : index
    %c0_260 = arith.constant 0 : index
    %321 = vector.load %arg29[%c0_259, %c0_260] : memref<1x128xf32, #tpu.memory_space<vmem>>, vector<1x128xf32>
    %322 = vector.broadcast %321 : vector<1x128xf32> to vector<2x128xf32>
    %323 = arith.addf %320, %322 : vector<2x128xf32>
    %c0_261 = arith.constant 0 : index
    %c0_262 = arith.constant 0 : index
    %324 = vector.load %arg28[%c0_261, %c0_262] : memref<1x128xf32, #tpu.memory_space<vmem>>, vector<1x128xf32>
    %325 = vector.broadcast %324 : vector<1x128xf32> to vector<2x128xf32>
    %326 = arith.mulf %317, %325 : vector<2x128xf32>
    %c0_263 = arith.constant 0 : index
    %c0_264 = arith.constant 0 : index
    %327 = vector.load %arg29[%c0_263, %c0_264] : memref<1x128xf32, #tpu.memory_space<vmem>>, vector<1x128xf32>
    %328 = vector.broadcast %327 : vector<1x128xf32> to vector<2x128xf32>
    %329 = arith.addf %326, %328 : vector<2x128xf32>
    %330 = arith.maximumf %323, %329 : vector<2x128xf32>
    %c0_265 = arith.constant 0 : index
    %c0_266 = arith.constant 0 : index
    %331 = vector.load %arg37[%c0_265, %c0_266] : memref<2x128xf32, #tpu.memory_space<vmem>>, vector<2x128xf32>
    tpu.vector_store %arg37[%c0_265, %c0_266], %330 {strides = array<i32>} : memref<2x128xf32, #tpu.memory_space<vmem>>, vector<2x128xf32>,
    %c0_267 = arith.constant 0 : index
    %c0_268 = arith.constant 0 : index
    %332 = tpu.strided_load %arg37[%c0_267, %c0_268] {strides = array<i32: 2, 1>} : memref<2x128xf32, #tpu.memory_space<vmem>>, vector<1x128xf32>
    %c1_269 = arith.constant 1 : index
    %c0_270 = arith.constant 0 : index
    %333 = tpu.strided_load %arg37[%c1_269, %c0_270] {strides = array<i32: 2, 1>} : memref<2x128xf32, #tpu.memory_space<vmem>>, vector<1x128xf32>
    %334 = arith.maximumf %332, %333 : vector<1x128xf32>
    %c0_271 = arith.constant 0 : index
    %c0_272 = arith.constant 0 : index
    %c0_273 = arith.constant 0 : index
    %335 = vector.load %arg33[%c0_271, %c0_272, %c0_273] : memref<1x1x128xf32, #tpu.memory_space<vmem>>, vector<1x1x128xf32>
    %336 = vector.shape_cast %335 : vector<1x1x128xf32> to vector<1x128xf32>
    %337 = vector.shape_cast %334 : vector<1x128xf32> to vector<1x1x128xf32>
    tpu.vector_store %arg33[%c0_271, %c0_272, %c0_273], %337 {strides = array<i32>} : memref<1x1x128xf32, #tpu.memory_space<vmem>>, vector<1x1x128xf32>,
    return
  }
  func.func @transform_0(%arg0: i32) -> (i32, i32, i32) {
    %c0_i32 = arith.constant 0 : i32
    %c0_i32_0 = arith.constant 0 : i32
    %c0_i32_1 = arith.constant 0 : i32
    return %arg0, %c0_i32, %c0_i32_0 : i32, i32, i32
  }
  func.func @transform_1(%arg0: i32) -> (i32, i32) {
    %c0_i32 = arith.constant 0 : i32
    %c0_i32_0 = arith.constant 0 : i32
    %c0_i32_1 = arith.constant 0 : i32
    return %c0_i32, %c0_i32_0 : i32, i32
  }
  func.func @transform_2(%arg0: i32) -> (i32, i32) {
    %c0_i32 = arith.constant 0 : i32
    %c0_i32_0 = arith.constant 0 : i32
    %c0_i32_1 = arith.constant 0 : i32
    return %c0_i32, %c0_i32_0 : i32, i32
  }
  func.func @transform_3(%arg0: i32) -> (i32, i32) {
    %c0_i32 = arith.constant 0 : i32
    %c0_i32_0 = arith.constant 0 : i32
    %c0_i32_1 = arith.constant 0 : i32
    return %c0_i32, %c0_i32_0 : i32, i32
  }
  func.func @transform_4(%arg0: i32) -> (i32, i32) {
    %c0_i32 = arith.constant 0 : i32
    %c0_i32_0 = arith.constant 0 : i32
    %c0_i32_1 = arith.constant 0 : i32
    return %c0_i32, %c0_i32_0 : i32, i32
  }
  func.func @transform_5(%arg0: i32) -> (i32, i32) {
    %c0_i32 = arith.constant 0 : i32
    %c0_i32_0 = arith.constant 0 : i32
    %c0_i32_1 = arith.constant 0 : i32
    return %c0_i32, %c0_i32_0 : i32, i32
  }
  func.func @transform_6(%arg0: i32) -> (i32, i32) {
    %c0_i32 = arith.constant 0 : i32
    %c0_i32_0 = arith.constant 0 : i32
    %c0_i32_1 = arith.constant 0 : i32
    return %c0_i32, %c0_i32_0 : i32, i32
  }
  func.func @transform_7(%arg0: i32) -> (i32, i32) {
    %c0_i32 = arith.constant 0 : i32
    %c0_i32_0 = arith.constant 0 : i32
    %c0_i32_1 = arith.constant 0 : i32
    return %c0_i32, %c0_i32_0 : i32, i32
  }
  func.func @transform_8(%arg0: i32) -> (i32, i32) {
    %c0_i32 = arith.constant 0 : i32
    %c0_i32_0 = arith.constant 0 : i32
    %c0_i32_1 = arith.constant 0 : i32
    return %c0_i32, %c0_i32_0 : i32, i32
  }
  func.func @transform_9(%arg0: i32) -> (i32, i32) {
    %c0_i32 = arith.constant 0 : i32
    %c0_i32_0 = arith.constant 0 : i32
    %c0_i32_1 = arith.constant 0 : i32
    return %c0_i32, %c0_i32_0 : i32, i32
  }
  func.func @transform_10(%arg0: i32) -> (i32, i32) {
    %c0_i32 = arith.constant 0 : i32
    %c0_i32_0 = arith.constant 0 : i32
    %c0_i32_1 = arith.constant 0 : i32
    return %c0_i32, %c0_i32_0 : i32, i32
  }
  func.func @transform_11(%arg0: i32) -> (i32, i32) {
    %c0_i32 = arith.constant 0 : i32
    %c0_i32_0 = arith.constant 0 : i32
    %c0_i32_1 = arith.constant 0 : i32
    return %c0_i32, %c0_i32_0 : i32, i32
  }
  func.func @transform_12(%arg0: i32) -> (i32, i32) {
    %c0_i32 = arith.constant 0 : i32
    %c0_i32_0 = arith.constant 0 : i32
    %c0_i32_1 = arith.constant 0 : i32
    return %c0_i32, %c0_i32_0 : i32, i32
  }
  func.func @transform_13(%arg0: i32) -> (i32, i32) {
    %c0_i32 = arith.constant 0 : i32
    %c0_i32_0 = arith.constant 0 : i32
    %c0_i32_1 = arith.constant 0 : i32
    return %c0_i32, %c0_i32_0 : i32, i32
  }
  func.func @transform_14(%arg0: i32) -> (i32, i32) {
    %c0_i32 = arith.constant 0 : i32
    %c0_i32_0 = arith.constant 0 : i32
    %c0_i32_1 = arith.constant 0 : i32
    return %c0_i32, %c0_i32_0 : i32, i32
  }
  func.func @transform_15(%arg0: i32) -> (i32, i32) {
    %c0_i32 = arith.constant 0 : i32
    %c0_i32_0 = arith.constant 0 : i32
    %c0_i32_1 = arith.constant 0 : i32
    return %c0_i32, %c0_i32_0 : i32, i32
  }
  func.func @transform_16(%arg0: i32) -> (i32, i32) {
    %c0_i32 = arith.constant 0 : i32
    %c0_i32_0 = arith.constant 0 : i32
    %c0_i32_1 = arith.constant 0 : i32
    return %c0_i32, %c0_i32_0 : i32, i32
  }
  func.func @transform_17(%arg0: i32) -> (i32, i32) {
    %c0_i32 = arith.constant 0 : i32
    %c0_i32_0 = arith.constant 0 : i32
    %c0_i32_1 = arith.constant 0 : i32
    return %c0_i32, %c0_i32_0 : i32, i32
  }
  func.func @transform_18(%arg0: i32) -> (i32, i32) {
    %c0_i32 = arith.constant 0 : i32
    %c0_i32_0 = arith.constant 0 : i32
    %c0_i32_1 = arith.constant 0 : i32
    return %c0_i32, %c0_i32_0 : i32, i32
  }
  func.func @transform_19(%arg0: i32) -> (i32, i32) {
    %c0_i32 = arith.constant 0 : i32
    %c0_i32_0 = arith.constant 0 : i32
    %c0_i32_1 = arith.constant 0 : i32
    return %c0_i32, %c0_i32_0 : i32, i32
  }
  func.func @transform_20(%arg0: i32) -> (i32, i32) {
    %c0_i32 = arith.constant 0 : i32
    %c0_i32_0 = arith.constant 0 : i32
    %c0_i32_1 = arith.constant 0 : i32
    return %c0_i32, %c0_i32_0 : i32, i32
  }
  func.func @transform_21(%arg0: i32) -> (i32, i32) {
    %c0_i32 = arith.constant 0 : i32
    %c0_i32_0 = arith.constant 0 : i32
    %c0_i32_1 = arith.constant 0 : i32
    return %c0_i32, %c0_i32_0 : i32, i32
  }
  func.func @transform_22(%arg0: i32) -> (i32, i32) {
    %c0_i32 = arith.constant 0 : i32
    %c0_i32_0 = arith.constant 0 : i32
    %c0_i32_1 = arith.constant 0 : i32
    return %c0_i32, %c0_i32_0 : i32, i32
  }
  func.func @transform_23(%arg0: i32) -> (i32, i32) {
    %c0_i32 = arith.constant 0 : i32
    %c0_i32_0 = arith.constant 0 : i32
    %c0_i32_1 = arith.constant 0 : i32
    return %c0_i32, %c0_i32_0 : i32, i32
  }
  func.func @transform_24(%arg0: i32) -> (i32, i32) {
    %c0_i32 = arith.constant 0 : i32
    %c0_i32_0 = arith.constant 0 : i32
    %c0_i32_1 = arith.constant 0 : i32
    return %c0_i32, %c0_i32_0 : i32, i32
  }
  func.func @transform_25(%arg0: i32) -> (i32, i32) {
    %c0_i32 = arith.constant 0 : i32
    %c0_i32_0 = arith.constant 0 : i32
    %c0_i32_1 = arith.constant 0 : i32
    return %c0_i32, %c0_i32_0 : i32, i32
  }
  func.func @transform_26(%arg0: i32) -> (i32, i32) {
    %c0_i32 = arith.constant 0 : i32
    %c0_i32_0 = arith.constant 0 : i32
    %c0_i32_1 = arith.constant 0 : i32
    return %c0_i32, %c0_i32_0 : i32, i32
  }
  func.func @transform_27(%arg0: i32) -> (i32, i32) {
    %c0_i32 = arith.constant 0 : i32
    %c0_i32_0 = arith.constant 0 : i32
    %c0_i32_1 = arith.constant 0 : i32
    return %c0_i32, %c0_i32_0 : i32, i32
  }
  func.func @transform_28(%arg0: i32) -> (i32, i32) {
    %c0_i32 = arith.constant 0 : i32
    %c0_i32_0 = arith.constant 0 : i32
    %c0_i32_1 = arith.constant 0 : i32
    return %c0_i32, %c0_i32_0 : i32, i32
  }
  func.func @transform_29(%arg0: i32) -> (i32, i32, i32) {
    %c0_i32 = arith.constant 0 : i32
    %c0_i32_0 = arith.constant 0 : i32
    %c0_i32_1 = arith.constant 0 : i32
    return %arg0, %c0_i32, %c0_i32_0 : i32, i32, i32
  }
  func.func @transform_30(%arg0: i32) -> (i32, i32, i32) {
    %c0_i32 = arith.constant 0 : i32
    %c0_i32_0 = arith.constant 0 : i32
    %c0_i32_1 = arith.constant 0 : i32
    return %arg0, %c0_i32, %c0_i32_0 : i32, i32, i32
  }
  func.func @transform_31(%arg0: i32) -> (i32, i32, i32) {
    %c0_i32 = arith.constant 0 : i32
    %c0_i32_0 = arith.constant 0 : i32
    %c0_i32_1 = arith.constant 0 : i32
    return %arg0, %c0_i32, %c0_i32_0 : i32, i32, i32
  }
  func.func @transform_32(%arg0: i32) -> (i32, i32, i32) {
    %c0_i32 = arith.constant 0 : i32
    %c0_i32_0 = arith.constant 0 : i32
    %c0_i32_1 = arith.constant 0 : i32
    return %arg0, %c0_i32, %c0_i32_0 : i32, i32, i32
  }
}

</mosaic_0001>

<llo_original>
// kernel: tile.94
$region0: #{tile.94}
  %s0 = inlined_call_operand.vmem [shape: f32[9,16,8], index: 0, kind: input, shape index: {}]
  %s1 = inlined_call_operand.vmem [shape: f32[9,128], index: 1, kind: output, shape index: {}]
  %s2 = smov 3
  %v3 = vld [vmem:[%s0] ss:$16 sm:%s2]
  %s4 = smov 12
  %v5 = vld [vmem:[%s0] ss:$16 sm:%s4]
  %vm6 = vcmask 1043458
  %v7 = vsel %vm6, %v5, %v3
  %s8 = smov 48
  %v9 = vld [vmem:[%s0] ss:$16 sm:%s8]
  %vm10 = vcmask 1045508
  %v11 = vsel %vm10, %v9, %v7
  %s12 = smov 192
  %v13 = vld [vmem:[%s0] ss:$16 sm:%s12]
  %vm14 = vcmask 1047558
  %v15 = vsel %vm14, %v13, %v11
  %vm16 = vcmask 64512
  %17 = vst.msk [vmem:[%s1] sm:$0xff] %vm16, %v15
  %s18 = scalar_lea.vmem %s0, 128
  %v19 = vld [vmem:[%s18] sm:$0x1]
  %vm20 = vcmask 64512
  %s21 = scalar_lea.vmem %s1, 8
  %22 = vst.msk [vmem:[%s21] sm:$0x1] %vm20, %v19
  %s23 = scalar_lea.vmem %s0, 15
  %s24 = smov 3
  %v25 = vld [vmem:[%s23] ss:$16 sm:%s24]
  %s26 = scalar_lea.vmem %s0, 15
  %s27 = smov 12
  %v28 = vld [vmem:[%s26] ss:$16 sm:%s27]
  %vm29 = vcmask 1043458
  %v30 = vsel %vm29, %v28, %v25
  %s31 = scalar_lea.vmem %s0, 15
  %s32 = smov 48
  %v33 = vld [vmem:[%s31] ss:$16 sm:%s32]
  %vm34 = vcmask 1045508
  %v35 = vsel %vm34, %v33, %v30
  %s36 = scalar_lea.vmem %s0, 15
  %s37 = smov 192
  %v38 = vld [vmem:[%s36] ss:$16 sm:%s37]
  %vm39 = vcmask 1047558
  %v40 = vsel %vm39, %v38, %v35
  %41 = vrot.lane.b32.xlu0 %v40, 120
  %v42 = vpop.permute.xlu0 %41
  %vm43 = vcmask 1048512
  %44 = vst.msk [vmem:[%s1] sm:$0xff] %vm43, %v42
  %s45 = scalar_lea.vmem %s0, 143
  %v46 = vld [vmem:[%s45] sm:$0x1]
  %47 = vrot.lane.b32.xlu0 %v46, 120
  %v48 = vpop.permute.xlu0 %47
  %vm49 = vcmask 1048512
  %s50 = scalar_lea.vmem %s1, 8
  %51 = vst.msk [vmem:[%s50] sm:$0x1] %vm49, %v48
  %s52 = scalar_lea.vmem %s0, 14
  %s53 = smov 3
  %v54 = vld [vmem:[%s52] ss:$16 sm:%s53]
  %s55 = scalar_lea.vmem %s0, 14
  %s56 = smov 12
  %v57 = vld [vmem:[%s55] ss:$16 sm:%s56]
  %vm58 = vcmask 1043458
  %v59 = vsel %vm58, %v57, %v54
  %s60 = scalar_lea.vmem %s0, 14
  %s61 = smov 48
  %v62 = vld [vmem:[%s60] ss:$16 sm:%s61]
  %vm63 = vcmask 1045508
  %v64 = vsel %vm63, %v62, %v59
  %s65 = scalar_lea.vmem %s0, 14
  %s66 = smov 192
  %v67 = vld [vmem:[%s65] ss:$16 sm:%s66]
  %vm68 = vcmask 1047558
  %v69 = vsel %vm68, %v67, %v64
  %70 = vrot.lane.b32.xlu0 %v69, 112
  %v71 = vpop.permute.xlu0 %70
  %vm72 = vcmask 982912
  %73 = vst.msk [vmem:[%s1] sm:$0xff] %vm72, %v71
  %s74 = scalar_lea.vmem %s0, 142
  %v75 = vld [vmem:[%s74] sm:$0x1]
  %76 = vrot.lane.b32.xlu0 %v75, 112
  %v77 = vpop.permute.xlu0 %76
  %vm78 = vcmask 982912
  %s79 = scalar_lea.vmem %s1, 8
  %80 = vst.msk [vmem:[%s79] sm:$0x1] %vm78, %v77
  %s81 = scalar_lea.vmem %s0, 13
  %s82 = smov 3
  %v83 = vld [vmem:[%s81] ss:$16 sm:%s82]
  %s84 = scalar_lea.vmem %s0, 13
  %s85 = smov 12
  %v86 = vld [vmem:[%s84] ss:$16 sm:%s85]
  %vm87 = vcmask 1043458
  %v88 = vsel %vm87, %v86, %v83
  %s89 = scalar_lea.vmem %s0, 13
  %s90 = smov 48
  %v91 = vld [vmem:[%s89] ss:$16 sm:%s90]
  %vm92 = vcmask 1045508
  %v93 = vsel %vm92, %v91, %v88
  %s94 = scalar_lea.vmem %s0, 13
  %s95 = smov 192
  %v96 = vld [vmem:[%s94] ss:$16 sm:%s95]
  %vm97 = vcmask 1047558
  %v98 = vsel %vm97, %v96, %v93
  %99 = vrot.lane.b32.xlu0 %v98, 104
  %v100 = vpop.permute.xlu0 %99
  %vm101 = vcmask 917312
  %102 = vst.msk [vmem:[%s1] sm:$0xff] %vm101, %v100
  %s103 = scalar_lea.vmem %s0, 141
  %v104 = vld [vmem:[%s103] sm:$0x1]
  %105 = vrot.lane.b32.xlu0 %v104, 104
  %v106 = vpop.permute.xlu0 %105
  %vm107 = vcmask 917312
  %s108 = scalar_lea.vmem %s1, 8
  %109 = vst.msk [vmem:[%s108] sm:$0x1] %vm107, %v106
  %s110 = scalar_lea.vmem %s0, 12
  %s111 = smov 3
  %v112 = vld [vmem:[%s110] ss:$16 sm:%s111]
  %s113 = scalar_lea.vmem %s0, 12
  %s114 = smov 12
  %v115 = vld [vmem:[%s113] ss:$16 sm:%s114]
  %vm116 = vcmask 1043458
  %v117 = vsel %vm116, %v115, %v112
  %s118 = scalar_lea.vmem %s0, 12
  %s119 = smov 48
  %v120 = vld [vmem:[%s118] ss:$16 sm:%s119]
  %vm121 = vcmask 1045508
  %v122 = vsel %vm121, %v120, %v117
  %s123 = scalar_lea.vmem %s0, 12
  %s124 = smov 192
  %v125 = vld [vmem:[%s123] ss:$16 sm:%s124]
  %vm126 = vcmask 1047558
  %v127 = vsel %vm126, %v125, %v122
  %128 = vrot.lane.b32.xlu0 %v127, 96
  %v129 = vpop.permute.xlu0 %128
  %vm130 = vcmask 851712
  %131 = vst.msk [vmem:[%s1] sm:$0xff] %vm130, %v129
  %s132 = scalar_lea.vmem %s0, 140
  %v133 = vld [vmem:[%s132] sm:$0x1]
  %134 = vrot.lane.b32.xlu0 %v133, 96
  %v135 = vpop.permute.xlu0 %134
  %vm136 = vcmask 851712
  %s137 = scalar_lea.vmem %s1, 8
  %138 = vst.msk [vmem:[%s137] sm:$0x1] %vm136, %v135
  %s139 = scalar_lea.vmem %s0, 11
  %s140 = smov 3
  %v141 = vld [vmem:[%s139] ss:$16 sm:%s140]
  %s142 = scalar_lea.vmem %s0, 11
  %s143 = smov 12
  %v144 = vld [vmem:[%s142] ss:$16 sm:%s143]
  %vm145 = vcmask 1043458
  %v146 = vsel %vm145, %v144, %v141
  %s147 = scalar_lea.vmem %s0, 11
  %s148 = smov 48
  %v149 = vld [vmem:[%s147] ss:$16 sm:%s148]
  %vm150 = vcmask 1045508
  %v151 = vsel %vm150, %v149, %v146
  %s152 = scalar_lea.vmem %s0, 11
  %s153 = smov 192
  %v154 = vld [vmem:[%s152] ss:$16 sm:%s153]
  %vm155 = vcmask 1047558
  %v156 = vsel %vm155, %v154, %v151
  %157 = vrot.lane.b32.xlu0 %v156, 88
  %v158 = vpop.permute.xlu0 %157
  %vm159 = vcmask 786112
  %160 = vst.msk [vmem:[%s1] sm:$0xff] %vm159, %v158
  %s161 = scalar_lea.vmem %s0, 139
  %v162 = vld [vmem:[%s161] sm:$0x1]
  %163 = vrot.lane.b32.xlu0 %v162, 88
  %v164 = vpop.permute.xlu0 %163
  %vm165 = vcmask 786112
  %s166 = scalar_lea.vmem %s1, 8
  %167 = vst.msk [vmem:[%s166] sm:$0x1] %vm165, %v164
  %s168 = scalar_lea.vmem %s0, 10
  %s169 = smov 3
  %v170 = vld [vmem:[%s168] ss:$16 sm:%s169]
  %s171 = scalar_lea.vmem %s0, 10
  %s172 = smov 12
  %v173 = vld [vmem:[%s171] ss:$16 sm:%s172]
  %vm174 = vcmask 1043458
  %v175 = vsel %vm174, %v173, %v170
  %s176 = scalar_lea.vmem %s0, 10
  %s177 = smov 48
  %v178 = vld [vmem:[%s176] ss:$16 sm:%s177]
  %vm179 = vcmask 1045508
  %v180 = vsel %vm179, %v178, %v175
  %s181 = scalar_lea.vmem %s0, 10
  %s182 = smov 192
  %v183 = vld [vmem:[%s181] ss:$16 sm:%s182]
  %vm184 = vcmask 1047558
  %v185 = vsel %vm184, %v183, %v180
  %186 = vrot.lane.b32.xlu0 %v185, 80
  %v187 = vpop.permute.xlu0 %186
  %vm188 = vcmask 720512
  %189 = vst.msk [vmem:[%s1] sm:$0xff] %vm188, %v187
  %s190 = scalar_lea.vmem %s0, 138
  %v191 = vld [vmem:[%s190] sm:$0x1]
  %192 = vrot.lane.b32.xlu0 %v191, 80
  %v193 = vpop.permute.xlu0 %192
  %vm194 = vcmask 720512
  %s195 = scalar_lea.vmem %s1, 8
  %196 = vst.msk [vmem:[%s195] sm:$0x1] %vm194, %v193
  %s197 = scalar_lea.vmem %s0, 9
  %s198 = smov 3
  %v199 = vld [vmem:[%s197] ss:$16 sm:%s198]
  %s200 = scalar_lea.vmem %s0, 9
  %s201 = smov 12
  %v202 = vld [vmem:[%s200] ss:$16 sm:%s201]
  %vm203 = vcmask 1043458
  %v204 = vsel %vm203, %v202, %v199
  %s205 = scalar_lea.vmem %s0, 9
  %s206 = smov 48
  %v207 = vld [vmem:[%s205] ss:$16 sm:%s206]
  %vm208 = vcmask 1045508
  %v209 = vsel %vm208, %v207, %v204
  %s210 = scalar_lea.vmem %s0, 9
  %s211 = smov 192
  %v212 = vld [vmem:[%s210] ss:$16 sm:%s211]
  %vm213 = vcmask 1047558
  %v214 = vsel %vm213, %v212, %v209
  %215 = vrot.lane.b32.xlu0 %v214, 72
  %v216 = vpop.permute.xlu0 %215
  %vm217 = vcmask 654912
  %218 = vst.msk [vmem:[%s1] sm:$0xff] %vm217, %v216
  %s219 = scalar_lea.vmem %s0, 137
  %v220 = vld [vmem:[%s219] sm:$0x1]
  %221 = vrot.lane.b32.xlu0 %v220, 72
  %v222 = vpop.permute.xlu0 %221
  %vm223 = vcmask 654912
  %s224 = scalar_lea.vmem %s1, 8
  %225 = vst.msk [vmem:[%s224] sm:$0x1] %vm223, %v222
  %s226 = scalar_lea.vmem %s0, 8
  %s227 = smov 3
  %v228 = vld [vmem:[%s226] ss:$16 sm:%s227]
  %s229 = scalar_lea.vmem %s0, 8
  %s230 = smov 12
  %v231 = vld [vmem:[%s229] ss:$16 sm:%s230]
  %vm232 = vcmask 1043458
  %v233 = vsel %vm232, %v231, %v228
  %s234 = scalar_lea.vmem %s0, 8
  %s235 = smov 48
  %v236 = vld [vmem:[%s234] ss:$16 sm:%s235]
  %vm237 = vcmask 1045508
  %v238 = vsel %vm237, %v236, %v233
  %s239 = scalar_lea.vmem %s0, 8
  %s240 = smov 192
  %v241 = vld [vmem:[%s239] ss:$16 sm:%s240]
  %vm242 = vcmask 1047558
  %v243 = vsel %vm242, %v241, %v238
  %244 = vrot.lane.b32.xlu0 %v243, 64
  %v245 = vpop.permute.xlu0 %244
  %vm246 = vcmask 589312
  %247 = vst.msk [vmem:[%s1] sm:$0xff] %vm246, %v245
  %s248 = scalar_lea.vmem %s0, 136
  %v249 = vld [vmem:[%s248] sm:$0x1]
  %250 = vrot.lane.b32.xlu0 %v249, 64
  %v251 = vpop.permute.xlu0 %250
  %vm252 = vcmask 589312
  %s253 = scalar_lea.vmem %s1, 8
  %254 = vst.msk [vmem:[%s253] sm:$0x1] %vm252, %v251
  %s255 = scalar_lea.vmem %s0, 7
  %s256 = smov 3
  %v257 = vld [vmem:[%s255] ss:$16 sm:%s256]
  %s258 = scalar_lea.vmem %s0, 7
  %s259 = smov 12
  %v260 = vld [vmem:[%s258] ss:$16 sm:%s259]
  %vm261 = vcmask 1043458
  %v262 = vsel %vm261, %v260, %v257
  %s263 = scalar_lea.vmem %s0, 7
  %s264 = smov 48
  %v265 = vld [vmem:[%s263] ss:$16 sm:%s264]
  %vm266 = vcmask 1045508
  %v267 = vsel %vm266, %v265, %v262
  %s268 = scalar_lea.vmem %s0, 7
  %s269 = smov 192
  %v270 = vld [vmem:[%s268] ss:$16 sm:%s269]
  %vm271 = vcmask 1047558
  %v272 = vsel %vm271, %v270, %v267
  %273 = vrot.lane.b32.xlu0 %v272, 56
  %v274 = vpop.permute.xlu0 %273
  %vm275 = vcmask 523712
  %276 = vst.msk [vmem:[%s1] sm:$0xff] %vm275, %v274
  %s277 = scalar_lea.vmem %s0, 135
  %v278 = vld [vmem:[%s277] sm:$0x1]
  %279 = vrot.lane.b32.xlu0 %v278, 56
  %v280 = vpop.permute.xlu0 %279
  %vm281 = vcmask 523712
  %s282 = scalar_lea.vmem %s1, 8
  %283 = vst.msk [vmem:[%s282] sm:$0x1] %vm281, %v280
  %s284 = scalar_lea.vmem %s0, 6
  %s285 = smov 3
  %v286 = vld [vmem:[%s284] ss:$16 sm:%s285]
  %s287 = scalar_lea.vmem %s0, 6
  %s288 = smov 12
  %v289 = vld [vmem:[%s287] ss:$16 sm:%s288]
  %vm290 = vcmask 1043458
  %v291 = vsel %vm290, %v289, %v286
  %s292 = scalar_lea.vmem %s0, 6
  %s293 = smov 48
  %v294 = vld [vmem:[%s292] ss:$16 sm:%s293]
  %vm295 = vcmask 1045508
  %v296 = vsel %vm295, %v294, %v291
  %s297 = scalar_lea.vmem %s0, 6
  %s298 = smov 192
  %v299 = vld [vmem:[%s297] ss:$16 sm:%s298]
  %vm300 = vcmask 1047558
  %v301 = vsel %vm300, %v299, %v296
  %302 = vrot.lane.b32.xlu0 %v301, 48
  %v303 = vpop.permute.xlu0 %302
  %vm304 = vcmask 458112
  %305 = vst.msk [vmem:[%s1] sm:$0xff] %vm304, %v303
  %s306 = scalar_lea.vmem %s0, 134
  %v307 = vld [vmem:[%s306] sm:$0x1]
  %308 = vrot.lane.b32.xlu0 %v307, 48
  %v309 = vpop.permute.xlu0 %308
  %vm310 = vcmask 458112
  %s311 = scalar_lea.vmem %s1, 8
  %312 = vst.msk [vmem:[%s311] sm:$0x1] %vm310, %v309
  %s313 = scalar_lea.vmem %s0, 5
  %s314 = smov 3
  %v315 = vld [vmem:[%s313] ss:$16 sm:%s314]
  %s316 = scalar_lea.vmem %s0, 5
  %s317 = smov 12
  %v318 = vld [vmem:[%s316] ss:$16 sm:%s317]
  %vm319 = vcmask 1043458
  %v320 = vsel %vm319, %v318, %v315
  %s321 = scalar_lea.vmem %s0, 5
  %s322 = smov 48
  %v323 = vld [vmem:[%s321] ss:$16 sm:%s322]
  %vm324 = vcmask 1045508
  %v325 = vsel %vm324, %v323, %v320
  %s326 = scalar_lea.vmem %s0, 5
  %s327 = smov 192
  %v328 = vld [vmem:[%s326] ss:$16 sm:%s327]
  %vm329 = vcmask 1047558
  %v330 = vsel %vm329, %v328, %v325
  %331 = vrot.lane.b32.xlu0 %v330, 40
  %v332 = vpop.permute.xlu0 %331
  %vm333 = vcmask 392512
  %334 = vst.msk [vmem:[%s1] sm:$0xff] %vm333, %v332
  %s335 = scalar_lea.vmem %s0, 133
  %v336 = vld [vmem:[%s335] sm:$0x1]
  %337 = vrot.lane.b32.xlu0 %v336, 40
  %v338 = vpop.permute.xlu0 %337
  %vm339 = vcmask 392512
  %s340 = scalar_lea.vmem %s1, 8
  %341 = vst.msk [vmem:[%s340] sm:$0x1] %vm339, %v338
  %s342 = scalar_lea.vmem %s0, 4
  %s343 = smov 3
  %v344 = vld [vmem:[%s342] ss:$16 sm:%s343]
  %s345 = scalar_lea.vmem %s0, 4
  %s346 = smov 12
  %v347 = vld [vmem:[%s345] ss:$16 sm:%s346]
  %vm348 = vcmask 1043458
  %v349 = vsel %vm348, %v347, %v344
  %s350 = scalar_lea.vmem %s0, 4
  %s351 = smov 48
  %v352 = vld [vmem:[%s350] ss:$16 sm:%s351]
  %vm353 = vcmask 1045508
  %v354 = vsel %vm353, %v352, %v349
  %s355 = scalar_lea.vmem %s0, 4
  %s356 = smov 192
  %v357 = vld [vmem:[%s355] ss:$16 sm:%s356]
  %vm358 = vcmask 1047558
  %v359 = vsel %vm358, %v357, %v354
  %360 = vrot.lane.b32.xlu0 %v359, 32
  %v361 = vpop.permute.xlu0 %360
  %vm362 = vcmask 326912
  %363 = vst.msk [vmem:[%s1] sm:$0xff] %vm362, %v361
  %s364 = scalar_lea.vmem %s0, 132
  %v365 = vld [vmem:[%s364] sm:$0x1]
  %366 = vrot.lane.b32.xlu0 %v365, 32
  %v367 = vpop.permute.xlu0 %366
  %vm368 = vcmask 326912
  %s369 = scalar_lea.vmem %s1, 8
  %370 = vst.msk [vmem:[%s369] sm:$0x1] %vm368, %v367
  %s371 = scalar_lea.vmem %s0, 3
  %s372 = smov 3
  %v373 = vld [vmem:[%s371] ss:$16 sm:%s372]
  %s374 = scalar_lea.vmem %s0, 3
  %s375 = smov 12
  %v376 = vld [vmem:[%s374] ss:$16 sm:%s375]
  %vm377 = vcmask 1043458
  %v378 = vsel %vm377, %v376, %v373
  %s379 = scalar_lea.vmem %s0, 3
  %s380 = smov 48
  %v381 = vld [vmem:[%s379] ss:$16 sm:%s380]
  %vm382 = vcmask 1045508
  %v383 = vsel %vm382, %v381, %v378
  %s384 = scalar_lea.vmem %s0, 3
  %s385 = smov 192
  %v386 = vld [vmem:[%s384] ss:$16 sm:%s385]
  %vm387 = vcmask 1047558
  %v388 = vsel %vm387, %v386, %v383
  %389 = vrot.lane.b32.xlu0 %v388, 24
  %v390 = vpop.permute.xlu0 %389
  %vm391 = vcmask 261312
  %392 = vst.msk [vmem:[%s1] sm:$0xff] %vm391, %v390
  %s393 = scalar_lea.vmem %s0, 131
  %v394 = vld [vmem:[%s393] sm:$0x1]
  %395 = vrot.lane.b32.xlu0 %v394, 24
  %v396 = vpop.permute.xlu0 %395
  %vm397 = vcmask 261312
  %s398 = scalar_lea.vmem %s1, 8
  %399 = vst.msk [vmem:[%s398] sm:$0x1] %vm397, %v396
  %s400 = scalar_lea.vmem %s0, 2
  %s401 = smov 3
  %v402 = vld [vmem:[%s400] ss:$16 sm:%s401]
  %s403 = scalar_lea.vmem %s0, 2
  %s404 = smov 12
  %v405 = vld [vmem:[%s403] ss:$16 sm:%s404]
  %vm406 = vcmask 1043458
  %v407 = vsel %vm406, %v405, %v402
  %s408 = scalar_lea.vmem %s0, 2
  %s409 = smov 48
  %v410 = vld [vmem:[%s408] ss:$16 sm:%s409]
  %vm411 = vcmask 1045508
  %v412 = vsel %vm411, %v410, %v407
  %s413 = scalar_lea.vmem %s0, 2
  %s414 = smov 192
  %v415 = vld [vmem:[%s413] ss:$16 sm:%s414]
  %vm416 = vcmask 1047558
  %v417 = vsel %vm416, %v415, %v412
  %418 = vrot.lane.b32.xlu0 %v417, 16
  %v419 = vpop.permute.xlu0 %418
  %vm420 = vcmask 195712
  %421 = vst.msk [vmem:[%s1] sm:$0xff] %vm420, %v419
  %s422 = scalar_lea.vmem %s0, 130
  %v423 = vld [vmem:[%s422] sm:$0x1]
  %424 = vrot.lane.b32.xlu0 %v423, 16
  %v425 = vpop.permute.xlu0 %424
  %vm426 = vcmask 195712
  %s427 = scalar_lea.vmem %s1, 8
  %428 = vst.msk [vmem:[%s427] sm:$0x1] %vm426, %v425
  %s429 = scalar_lea.vmem %s0, 1
  %s430 = smov 3
  %v431 = vld [vmem:[%s429] ss:$16 sm:%s430]
  %s432 = scalar_lea.vmem %s0, 1
  %s433 = smov 12
  %v434 = vld [vmem:[%s432] ss:$16 sm:%s433]
  %vm435 = vcmask 1043458
  %v436 = vsel %vm435, %v434, %v431
  %s437 = scalar_lea.vmem %s0, 1
  %s438 = smov 48
  %v439 = vld [vmem:[%s437] ss:$16 sm:%s438]
  %vm440 = vcmask 1045508
  %v441 = vsel %vm440, %v439, %v436
  %s442 = scalar_lea.vmem %s0, 1
  %s443 = smov 192
  %v444 = vld [vmem:[%s442] ss:$16 sm:%s443]
  %vm445 = vcmask 1047558
  %v446 = vsel %vm445, %v444, %v441
  %447 = vrot.lane.b32.xlu0 %v446, 8
  %v448 = vpop.permute.xlu0 %447
  %vm449 = vcmask 130112
  %450 = vst.msk [vmem:[%s1] sm:$0xff] %vm449, %v448
  %s451 = scalar_lea.vmem %s0, 129
  %v452 = vld [vmem:[%s451] sm:$0x1]
  %453 = vrot.lane.b32.xlu0 %v452, 8
  %v454 = vpop.permute.xlu0 %453
  %vm455 = vcmask 130112
  %s456 = scalar_lea.vmem %s1, 8
  %457 = vst.msk [vmem:[%s456] sm:$0x1] %vm455, %v454

// kernel: tile.119
$region0: #{tile.119}
  %s0 = inlined_call_operand.vmem [shape: f32[9,8,16], index: 0, kind: input, shape index: {}]
  %s1 = inlined_call_operand.vmem [shape: f32[9,128], index: 1, kind: output, shape index: {}]
  %v2 = vld [vmem:[%s0] ss:$8 sm:$0xf]
  %v3 = vld [vmem:[%s0] ss:$8 sm:$0xf0]
  %vm4 = vcmask 1047556
  %v5 = vsel %vm4, %v3, %v2
  %vm6 = vcmask 130048
  %7 = vst.msk [vmem:[%s1] sm:$0xff] %vm6, %v5
  %s8 = scalar_lea.vmem %s0, 64
  %v9 = vld [vmem:[%s8] sm:$0x1]
  %vm10 = vcmask 130048
  %s11 = scalar_lea.vmem %s1, 8
  %12 = vst.msk [vmem:[%s11] sm:$0x1] %vm10, %v9
  %s13 = scalar_lea.vmem %s0, 7
  %v14 = vld [vmem:[%s13] ss:$8 sm:$0xf]
  %s15 = scalar_lea.vmem %s0, 7
  %v16 = vld [vmem:[%s15] ss:$8 sm:$0xf0]
  %vm17 = vcmask 1047556
  %v18 = vsel %vm17, %v16, %v14
  %19 = vrot.lane.b32.xlu0 %v18, 112
  %v20 = vpop.permute.xlu0 %19
  %vm21 = vcmask 1048448
  %22 = vst.msk [vmem:[%s1] sm:$0xff] %vm21, %v20
  %s23 = scalar_lea.vmem %s0, 71
  %v24 = vld [vmem:[%s23] sm:$0x1]
  %25 = vrot.lane.b32.xlu0 %v24, 112
  %v26 = vpop.permute.xlu0 %25
  %vm27 = vcmask 1048448
  %s28 = scalar_lea.vmem %s1, 8
  %29 = vst.msk [vmem:[%s28] sm:$0x1] %vm27, %v26
  %s30 = scalar_lea.vmem %s0, 6
  %v31 = vld [vmem:[%s30] ss:$8 sm:$0xf]
  %s32 = scalar_lea.vmem %s0, 6
  %v33 = vld [vmem:[%s32] ss:$8 sm:$0xf0]
  %vm34 = vcmask 1047556
  %v35 = vsel %vm34, %v33, %v31
  %36 = vrot.lane.b32.xlu0 %v35, 96
  %v37 = vpop.permute.xlu0 %36
  %vm38 = vcmask 917248
  %39 = vst.msk [vmem:[%s1] sm:$0xff] %vm38, %v37
  %s40 = scalar_lea.vmem %s0, 70
  %v41 = vld [vmem:[%s40] sm:$0x1]
  %42 = vrot.lane.b32.xlu0 %v41, 96
  %v43 = vpop.permute.xlu0 %42
  %vm44 = vcmask 917248
  %s45 = scalar_lea.vmem %s1, 8
  %46 = vst.msk [vmem:[%s45] sm:$0x1] %vm44, %v43
  %s47 = scalar_lea.vmem %s0, 5
  %v48 = vld [vmem:[%s47] ss:$8 sm:$0xf]
  %s49 = scalar_lea.vmem %s0, 5
  %v50 = vld [vmem:[%s49] ss:$8 sm:$0xf0]
  %vm51 = vcmask 1047556
  %v52 = vsel %vm51, %v50, %v48
  %53 = vrot.lane.b32.xlu0 %v52, 80
  %v54 = vpop.permute.xlu0 %53
  %vm55 = vcmask 786048
  %56 = vst.msk [vmem:[%s1] sm:$0xff] %vm55, %v54
  %s57 = scalar_lea.vmem %s0, 69
  %v58 = vld [vmem:[%s57] sm:$0x1]
  %59 = vrot.lane.b32.xlu0 %v58, 80
  %v60 = vpop.permute.xlu0 %59
  %vm61 = vcmask 786048
  %s62 = scalar_lea.vmem %s1, 8
  %63 = vst.msk [vmem:[%s62] sm:$0x1] %vm61, %v60
  %s64 = scalar_lea.vmem %s0, 4
  %v65 = vld [vmem:[%s64] ss:$8 sm:$0xf]
  %s66 = scalar_lea.vmem %s0, 4
  %v67 = vld [vmem:[%s66] ss:$8 sm:$0xf0]
  %vm68 = vcmask 1047556
  %v69 = vsel %vm68, %v67, %v65
  %70 = vrot.lane.b32.xlu0 %v69, 64
  %v71 = vpop.permute.xlu0 %70
  %vm72 = vcmask 654848
  %73 = vst.msk [vmem:[%s1] sm:$0xff] %vm72, %v71
  %s74 = scalar_lea.vmem %s0, 68
  %v75 = vld [vmem:[%s74] sm:$0x1]
  %76 = vrot.lane.b32.xlu0 %v75, 64
  %v77 = vpop.permute.xlu0 %76
  %vm78 = vcmask 654848
  %s79 = scalar_lea.vmem %s1, 8
  %80 = vst.msk [vmem:[%s79] sm:$0x1] %vm78, %v77
  %s81 = scalar_lea.vmem %s0, 3
  %v82 = vld [vmem:[%s81] ss:$8 sm:$0xf]
  %s83 = scalar_lea.vmem %s0, 3
  %v84 = vld [vmem:[%s83] ss:$8 sm:$0xf0]
  %vm85 = vcmask 1047556
  %v86 = vsel %vm85, %v84, %v82
  %87 = vrot.lane.b32.xlu0 %v86, 48
  %v88 = vpop.permute.xlu0 %87
  %vm89 = vcmask 523648
  %90 = vst.msk [vmem:[%s1] sm:$0xff] %vm89, %v88
  %s91 = scalar_lea.vmem %s0, 67
  %v92 = vld [vmem:[%s91] sm:$0x1]
  %93 = vrot.lane.b32.xlu0 %v92, 48
  %v94 = vpop.permute.xlu0 %93
  %vm95 = vcmask 523648
  %s96 = scalar_lea.vmem %s1, 8
  %97 = vst.msk [vmem:[%s96] sm:$0x1] %vm95, %v94
  %s98 = scalar_lea.vmem %s0, 2
  %v99 = vld [vmem:[%s98] ss:$8 sm:$0xf]
  %s100 = scalar_lea.vmem %s0, 2
  %v101 = vld [vmem:[%s100] ss:$8 sm:$0xf0]
  %vm102 = vcmask 1047556
  %v103 = vsel %vm102, %v101, %v99
  %104 = vrot.lane.b32.xlu0 %v103, 32
  %v105 = vpop.permute.xlu0 %104
  %vm106 = vcmask 392448
  %107 = vst.msk [vmem:[%s1] sm:$0xff] %vm106, %v105
  %s108 = scalar_lea.vmem %s0, 66
  %v109 = vld [vmem:[%s108] sm:$0x1]
  %110 = vrot.lane.b32.xlu0 %v109, 32
  %v111 = vpop.permute.xlu0 %110
  %vm112 = vcmask 392448
  %s113 = scalar_lea.vmem %s1, 8
  %114 = vst.msk [vmem:[%s113] sm:$0x1] %vm112, %v111
  %s115 = scalar_lea.vmem %s0, 1
  %v116 = vld [vmem:[%s115] ss:$8 sm:$0xf]
  %s117 = scalar_lea.vmem %s0, 1
  %v118 = vld [vmem:[%s117] ss:$8 sm:$0xf0]
  %vm119 = vcmask 1047556
  %v120 = vsel %vm119, %v118, %v116
  %121 = vrot.lane.b32.xlu0 %v120, 16
  %v122 = vpop.permute.xlu0 %121
  %vm123 = vcmask 261248
  %124 = vst.msk [vmem:[%s1] sm:$0xff] %vm123, %v122
  %s125 = scalar_lea.vmem %s0, 65
  %v126 = vld [vmem:[%s125] sm:$0x1]
  %127 = vrot.lane.b32.xlu0 %v126, 16
  %v128 = vpop.permute.xlu0 %127
  %vm129 = vcmask 261248
  %s130 = scalar_lea.vmem %s1, 8
  %131 = vst.msk [vmem:[%s130] sm:$0x1] %vm129, %v128

// kernel: tile.144
$region0: #{tile.144}
  %s0 = inlined_call_operand.vmem [shape: f32[9,4,32], index: 0, kind: input, shape index: {}]
  %s1 = inlined_call_operand.vmem [shape: f32[9,128], index: 1, kind: output, shape index: {}]
  $region1: #{tile.144} parent=0
    #allocation0 [shape = 'u8[36864]{0}', space=vmem, size = 0x9000, scoped, tag = 'scoped mem for input reshape']
    %s3 = sshllo.u32 0, 4
    %s4 = smul.addr 4, 8
    %s5 = scalar_lea.vmem %s0, %s4
    %v6 = vld [vmem:[%s5] sm:%s3]
    %s7 = scalar_lea.vmem [#allocation0], 64
    %8 = vst [vmem:[%s7] sm:%s3] %v6
    %s9 = smul.addr 4, 7
    %s10 = scalar_lea.vmem %s0, %s9
    %v11 = vld [vmem:[%s10] sm:%s3]
    %s12 = scalar_lea.vmem [#allocation0], 56
    %13 = vst [vmem:[%s12] sm:%s3] %v11
    %s14 = smul.addr 4, 6
    %s15 = scalar_lea.vmem %s0, %s14
    %v16 = vld [vmem:[%s15] sm:%s3]
    %s17 = scalar_lea.vmem [#allocation0], 48
    %18 = vst [vmem:[%s17] sm:%s3] %v16
    %s19 = smul.addr 4, 5
    %s20 = scalar_lea.vmem %s0, %s19
    %v21 = vld [vmem:[%s20] sm:%s3]
    %s22 = scalar_lea.vmem [#allocation0], 40
    %23 = vst [vmem:[%s22] sm:%s3] %v21
    %s24 = smul.addr 4, 4
    %s25 = scalar_lea.vmem %s0, %s24
    %v26 = vld [vmem:[%s25] sm:%s3]
    %s27 = scalar_lea.vmem [#allocation0], 32
    %28 = vst [vmem:[%s27] sm:%s3] %v26
    %s29 = smul.addr 4, 3
    %s30 = scalar_lea.vmem %s0, %s29
    %v31 = vld [vmem:[%s30] sm:%s3]
    %s32 = scalar_lea.vmem [#allocation0], 24
    %33 = vst [vmem:[%s32] sm:%s3] %v31
    %s34 = smul.addr 4, 2
    %s35 = scalar_lea.vmem %s0, %s34
    %v36 = vld [vmem:[%s35] sm:%s3]
    %s37 = scalar_lea.vmem [#allocation0], 16
    %38 = vst [vmem:[%s37] sm:%s3] %v36
    %s39 = scalar_lea.vmem %s0, 4
    %v40 = vld [vmem:[%s39] sm:%s3]
    %s41 = scalar_lea.vmem [#allocation0], 8
    %42 = vst [vmem:[%s41] sm:%s3] %v40
    %v43 = vld [vmem:[%s0] sm:%s3]
    %44 = vst [vmem:[#allocation0] sm:%s3] %v43
    %v45 = vld [vmem:[#allocation0] ss:$8 sm:$0xf]
    %v46 = vld [vmem:[#allocation0] ss:$8 sm:$0xf0]
    %vm47 = vcmask 1047556
    %v48 = vsel %vm47, %v46, %v45
    %vm49 = vcmask 261120
    %50 = vst.msk [vmem:[%s1] sm:$0xff] %vm49, %v48
    %s51 = scalar_lea.vmem [#allocation0], 64
    %v52 = vld [vmem:[%s51] sm:$0x1]
    %vm53 = vcmask 261120
    %s54 = scalar_lea.vmem %s1, 8
    %55 = vst.msk [vmem:[%s54] sm:$0x1] %vm53, %v52
    %s56 = scalar_lea.vmem [#allocation0], 3
    %v57 = vld [vmem:[%s56] ss:$8 sm:$0xf]
    %s58 = scalar_lea.vmem [#allocation0], 3
    %v59 = vld [vmem:[%s58] ss:$8 sm:$0xf0]
    %vm60 = vcmask 1047556
    %v61 = vsel %vm60, %v59, %v57
    %62 = vrot.lane.b32.xlu0 %v61, 96
    %v63 = vpop.permute.xlu0 %62
    %vm64 = vcmask 1048320
    %65 = vst.msk [vmem:[%s1] sm:$0xff] %vm64, %v63
    %s66 = scalar_lea.vmem [#allocation0], 67
    %v67 = vld [vmem:[%s66] sm:$0x1]
    %68 = vrot.lane.b32.xlu0 %v67, 96
    %v69 = vpop.permute.xlu0 %68
    %vm70 = vcmask 1048320
    %s71 = scalar_lea.vmem %s1, 8
    %72 = vst.msk [vmem:[%s71] sm:$0x1] %vm70, %v69
    %s73 = scalar_lea.vmem [#allocation0], 2
    %v74 = vld [vmem:[%s73] ss:$8 sm:$0xf]
    %s75 = scalar_lea.vmem [#allocation0], 2
    %v76 = vld [vmem:[%s75] ss:$8 sm:$0xf0]
    %vm77 = vcmask 1047556
    %v78 = vsel %vm77, %v76, %v74
    %79 = vrot.lane.b32.xlu0 %v78, 64
    %v80 = vpop.permute.xlu0 %79
    %vm81 = vcmask 785920
    %82 = vst.msk [vmem:[%s1] sm:$0xff] %vm81, %v80
    %s83 = scalar_lea.vmem [#allocation0], 66
    %v84 = vld [vmem:[%s83] sm:$0x1]
    %85 = vrot.lane.b32.xlu0 %v84, 64
    %v86 = vpop.permute.xlu0 %85
    %vm87 = vcmask 785920
    %s88 = scalar_lea.vmem %s1, 8
    %89 = vst.msk [vmem:[%s88] sm:$0x1] %vm87, %v86
    %s90 = scalar_lea.vmem [#allocation0], 1
    %v91 = vld [vmem:[%s90] ss:$8 sm:$0xf]
    %s92 = scalar_lea.vmem [#allocation0], 1
    %v93 = vld [vmem:[%s92] ss:$8 sm:$0xf0]
    %vm94 = vcmask 1047556
    %v95 = vsel %vm94, %v93, %v91
    %96 = vrot.lane.b32.xlu0 %v95, 32
    %v97 = vpop.permute.xlu0 %96
    %vm98 = vcmask 523520
    %99 = vst.msk [vmem:[%s1] sm:$0xff] %vm98, %v97
    %s100 = scalar_lea.vmem [#allocation0], 65
    %v101 = vld [vmem:[%s100] sm:$0x1]
    %102 = vrot.lane.b32.xlu0 %v101, 32
    %v103 = vpop.permute.xlu0 %102
    %vm104 = vcmask 523520
    %s105 = scalar_lea.vmem %s1, 8
    %106 = vst.msk [vmem:[%s105] sm:$0x1] %vm104, %v103

// kernel: tile.169
$region0: #{tile.169}
  %s0 = inlined_call_operand.vmem [shape: f32[9,2,64], index: 0, kind: input, shape index: {}]
  %s1 = inlined_call_operand.vmem [shape: f32[9,128], index: 1, kind: output, shape index: {}]
  $region1: #{tile.169} parent=0
    #allocation0 [shape = 'u8[36864]{0}', space=vmem, size = 0x9000, scoped, tag = 'scoped mem for input reshape']
    %s3 = sshllo.u32 0, 2
    %s4 = smul.addr 2, 8
    %s5 = scalar_lea.vmem %s0, %s4
    %v6 = vld [vmem:[%s5] sm:%s3]
    %s7 = scalar_lea.vmem [#allocation0], 64
    %8 = vst [vmem:[%s7] sm:%s3] %v6
    %s9 = smul.addr 2, 7
    %s10 = scalar_lea.vmem %s0, %s9
    %v11 = vld [vmem:[%s10] sm:%s3]
    %s12 = scalar_lea.vmem [#allocation0], 56
    %13 = vst [vmem:[%s12] sm:%s3] %v11
    %s14 = smul.addr 2, 6
    %s15 = scalar_lea.vmem %s0, %s14
    %v16 = vld [vmem:[%s15] sm:%s3]
    %s17 = scalar_lea.vmem [#allocation0], 48
    %18 = vst [vmem:[%s17] sm:%s3] %v16
    %s19 = smul.addr 2, 5
    %s20 = scalar_lea.vmem %s0, %s19
    %v21 = vld [vmem:[%s20] sm:%s3]
    %s22 = scalar_lea.vmem [#allocation0], 40
    %23 = vst [vmem:[%s22] sm:%s3] %v21
    %s24 = smul.addr 2, 4
    %s25 = scalar_lea.vmem %s0, %s24
    %v26 = vld [vmem:[%s25] sm:%s3]
    %s27 = scalar_lea.vmem [#allocation0], 32
    %28 = vst [vmem:[%s27] sm:%s3] %v26
    %s29 = smul.addr 2, 3
    %s30 = scalar_lea.vmem %s0, %s29
    %v31 = vld [vmem:[%s30] sm:%s3]
    %s32 = scalar_lea.vmem [#allocation0], 24
    %33 = vst [vmem:[%s32] sm:%s3] %v31
    %s34 = smul.addr 2, 2
    %s35 = scalar_lea.vmem %s0, %s34
    %v36 = vld [vmem:[%s35] sm:%s3]
    %s37 = scalar_lea.vmem [#allocation0], 16
    %38 = vst [vmem:[%s37] sm:%s3] %v36
    %s39 = scalar_lea.vmem %s0, 2
    %v40 = vld [vmem:[%s39] sm:%s3]
    %s41 = scalar_lea.vmem [#allocation0], 8
    %42 = vst [vmem:[%s41] sm:%s3] %v40
    %v43 = vld [vmem:[%s0] sm:%s3]
    %44 = vst [vmem:[#allocation0] sm:%s3] %v43
    %v45 = vld [vmem:[#allocation0] ss:$8 sm:$0xf]
    %v46 = vld [vmem:[#allocation0] ss:$8 sm:$0xf0]
    %vm47 = vcmask 1047556
    %v48 = vsel %vm47, %v46, %v45
    %vm49 = vcmask 523264
    %50 = vst.msk [vmem:[%s1] sm:$0xff] %vm49, %v48
    %s51 = scalar_lea.vmem [#allocation0], 64
    %v52 = vld [vmem:[%s51] sm:$0x1]
    %vm53 = vcmask 523264
    %s54 = scalar_lea.vmem %s1, 8
    %55 = vst.msk [vmem:[%s54] sm:$0x1] %vm53, %v52
    %s56 = scalar_lea.vmem [#allocation0], 1
    %v57 = vld [vmem:[%s56] ss:$8 sm:$0xf]
    %s58 = scalar_lea.vmem [#allocation0], 1
    %v59 = vld [vmem:[%s58] ss:$8 sm:$0xf0]
    %vm60 = vcmask 1047556
    %v61 = vsel %vm60, %v59, %v57
    %62 = vrot.lane.b32.xlu0 %v61, 64
    %v63 = vpop.permute.xlu0 %62
    %vm64 = vcmask 1048064
    %65 = vst.msk [vmem:[%s1] sm:$0xff] %vm64, %v63
    %s66 = scalar_lea.vmem [#allocation0], 65
    %v67 = vld [vmem:[%s66] sm:$0x1]
    %68 = vrot.lane.b32.xlu0 %v67, 64
    %v69 = vpop.permute.xlu0 %68
    %vm70 = vcmask 1048064
    %s71 = scalar_lea.vmem %s1, 8
    %72 = vst.msk [vmem:[%s71] sm:$0x1] %vm70, %v69

// kernel: base_encoder.1
$region0: #{base_encoder.1}
  #allocation0 [shape = 'u32[]', space=smem, size = 0x4, offset = 0x4, fixed_abs, tag = 'smem constant byte address 0x4 - core index']
  #allocation1 [shape = 'u32[144,128]{1,0:T(1,128)}', space=vmem, size = 0x12000, scoped, tag = 'internal scratch']
  #allocation2 [shape = 'f32[16,128]{1,0:T(8,128)}', space=vmem, size = 0x2000, scoped, tag = 'scratch operand']
  #allocation3 [shape = 'f32[8,128]{1,0:T(8,128)}', space=vmem, size = 0x1000, scoped, tag = 'scratch operand']
  #allocation4 [shape = 'f32[4,128]{1,0:T(4,128)}', space=vmem, size = 0x800, scoped, tag = 'scratch operand']
  #allocation5 [shape = 'f32[2,128]{1,0:T(2,128)}', space=vmem, size = 0x400, scoped, tag = 'scratch operand']
  #allocation6 [shape = 'f32[10,160]{1,0:T(8,128)}', space=vmem, size = 0x4000, scoped, tag = 'scratch operand']
  #allocation7 [shape = 'f32[6,192]{1,0:T(8,128)}', space=vmem, size = 0x2000, scoped, tag = 'scratch operand']
  #allocation8 [shape = 'f32[4,256]{1,0:T(4,128)}', space=vmem, size = 0x1000, scoped, tag = 'scratch operand']
  %s0 = inlined_call_operand.smem [shape: u32[33], index: -1, kind: input, shape index: {}]
  %s1 = sld [smem:[%s0]]
  %s2 = scalar_lea.smem %s0, 1
  %s3 = sld [smem:[%s2]]
  %s4 = scalar_lea.smem %s0, 2
  %s5 = sld [smem:[%s4]]
  %s6 = scalar_lea.smem %s0, 3
  %s7 = sld [smem:[%s6]]
  %s8 = scalar_lea.smem %s0, 4
  %s9 = sld [smem:[%s8]]
  %s10 = scalar_lea.smem %s0, 5
  %s11 = sld [smem:[%s10]]
  %s12 = scalar_lea.smem %s0, 6
  %s13 = sld [smem:[%s12]]
  %s14 = scalar_lea.smem %s0, 7
  %s15 = sld [smem:[%s14]]
  %s16 = scalar_lea.smem %s0, 8
  %s17 = sld [smem:[%s16]]
  %s18 = scalar_lea.smem %s0, 9
  %s19 = sld [smem:[%s18]]
  %s20 = scalar_lea.smem %s0, 10
  %s21 = sld [smem:[%s20]]
  %s22 = scalar_lea.smem %s0, 11
  %s23 = sld [smem:[%s22]]
  %s24 = scalar_lea.smem %s0, 12
  %s25 = sld [smem:[%s24]]
  %s26 = scalar_lea.smem %s0, 13
  %s27 = sld [smem:[%s26]]
  %s28 = scalar_lea.smem %s0, 14
  %s29 = sld [smem:[%s28]]
  %s30 = scalar_lea.smem %s0, 15
  %s31 = sld [smem:[%s30]]
  %s32 = scalar_lea.smem %s0, 16
  %s33 = sld [smem:[%s32]]
  %s34 = scalar_lea.smem %s0, 17
  %s35 = sld [smem:[%s34]]
  %s36 = scalar_lea.smem %s0, 18
  %s37 = sld [smem:[%s36]]
  %s38 = scalar_lea.smem %s0, 19
  %s39 = sld [smem:[%s38]]
  %s40 = scalar_lea.smem %s0, 20
  %s41 = sld [smem:[%s40]]
  %s42 = scalar_lea.smem %s0, 21
  %s43 = sld [smem:[%s42]]
  %s44 = scalar_lea.smem %s0, 22
  %s45 = sld [smem:[%s44]]
  %s46 = scalar_lea.smem %s0, 23
  %s47 = sld [smem:[%s46]]
  %s48 = scalar_lea.smem %s0, 24
  %s49 = sld [smem:[%s48]]
  %s50 = scalar_lea.smem %s0, 25
  %s51 = sld [smem:[%s50]]
  %s52 = scalar_lea.smem %s0, 26
  %s53 = sld [smem:[%s52]]
  %s54 = scalar_lea.smem %s0, 27
  %s55 = sld [smem:[%s54]]
  %s56 = scalar_lea.smem %s0, 28
  %s57 = sld [smem:[%s56]]
  %s58 = scalar_lea.smem %s0, 29
  %s59 = sld [smem:[%s58]]
  %s60 = scalar_lea.smem %s0, 30
  %s61 = sld [smem:[%s60]]
  %s62 = scalar_lea.smem %s0, 31
  %s63 = sld [smem:[%s62]]
  %s64 = scalar_lea.smem %s0, 32
  %s65 = sld [smem:[%s64]]
  %66 = xla_tuple %s59, %s61, %s63, %s65
  %s67 = sld [smem:[#allocation0]]
  $region173: #{base_encoder.1} parent=0
    _
  %s69 = ssub.s32 1, %s67
  %s70 = scalar_select 0, %s69, %s67
  $region1: #{base_encoder.1} parent=0
    #allocation9 [shape = 'u8[1024]{0}', space=vmem, size = 0x400, scoped, tag = 'output window, operand 3']
    #allocation10 [shape = 's32[2]{0}', space=sflag, size = 0x8, scoped, tag = 'scoped memory for base_encoder.1']
    %71 = vsyncpa [#allocation10], 0
    %s72 = scalar_lea.sflag [#allocation10], 1
    %73 = vsyncpa %s72, 0
    loop: start=0, step=1, limit=4
    $region2: #{base_encoder.1} parent=1 // loop_pre_header
      _
    $region3: #{base_encoder.1} parent=1 // loop_header
      %s75 = sphi 0, %s79
      %p76 = scmp.ge.s32.totalorder %s75, 4
      %s85 = sphi 0, %s87
      %s88 = sphi 0, %s85
      %s89 = sphi 0, %s88
      %s105 = sphi 0, %s89
      %s109 = sphi 0, %s109
      %s111 = sphi 0, %s109
      %s112 = sphi 0, %s111
      %s126 = sphi 0, %s112
      %s130 = sphi 0, %s130
      %s132 = sphi 0, %s130
      %s133 = sphi 0, %s132
      %s147 = sphi 0, %s133
      %s151 = sphi 0, %s151
      %s153 = sphi 0, %s151
      %s154 = sphi 0, %s153
      %s168 = sphi 0, %s154
      %s172 = sphi 0, %s172
      %s174 = sphi 0, %s172
      %s175 = sphi 0, %s174
      %s189 = sphi 0, %s175
      %s193 = sphi 0, %s193
      %s195 = sphi 0, %s193
      %s196 = sphi 0, %s195
      %s210 = sphi 0, %s196
      %s214 = sphi 0, %s214
      %s216 = sphi 0, %s214
      %s217 = sphi 0, %s216
      %s231 = sphi 0, %s217
      %s235 = sphi 0, %s235
      %s237 = sphi 0, %s235
      %s238 = sphi 0, %s237
      %s252 = sphi 0, %s238
      %s256 = sphi 0, %s256
      %s258 = sphi 0, %s256
      %s259 = sphi 0, %s258
      %s273 = sphi 0, %s259
      %s277 = sphi 0, %s277
      %s279 = sphi 0, %s277
      %s280 = sphi 0, %s279
      %s294 = sphi 0, %s280
      %s298 = sphi 0, %s298
      %s300 = sphi 0, %s298
      %s301 = sphi 0, %s300
      %s315 = sphi 0, %s301
      %s319 = sphi 0, %s319
      %s321 = sphi 0, %s319
      %s322 = sphi 0, %s321
      %s336 = sphi 0, %s322
      %s340 = sphi 0, %s340
      %s342 = sphi 0, %s340
      %s343 = sphi 0, %s342
      %s357 = sphi 0, %s343
      %s361 = sphi 0, %s361
      %s363 = sphi 0, %s361
      %s364 = sphi 0, %s363
      %s378 = sphi 0, %s364
      %s382 = sphi 0, %s382
      %s384 = sphi 0, %s382
      %s385 = sphi 0, %s384
      %s399 = sphi 0, %s385
      %s403 = sphi 0, %s403
      %s405 = sphi 0, %s403
      %s406 = sphi 0, %s405
      %s420 = sphi 0, %s406
      %s424 = sphi 0, %s424
      %s426 = sphi 0, %s424
      %s427 = sphi 0, %s426
      %s441 = sphi 0, %s427
      %s445 = sphi 0, %s445
      %s447 = sphi 0, %s445
      %s448 = sphi 0, %s447
      %s462 = sphi 0, %s448
      %s466 = sphi 0, %s466
      %s468 = sphi 0, %s466
      %s469 = sphi 0, %s468
      %s483 = sphi 0, %s469
      %s487 = sphi 0, %s487
      %s489 = sphi 0, %s487
      %s490 = sphi 0, %s489
      %s504 = sphi 0, %s490
      %s508 = sphi 0, %s508
      %s510 = sphi 0, %s508
      %s511 = sphi 0, %s510
      %s525 = sphi 0, %s511
      %s529 = sphi 0, %s529
      %s531 = sphi 0, %s529
      %s532 = sphi 0, %s531
      %s546 = sphi 0, %s532
      %s550 = sphi 0, %s550
      %s552 = sphi 0, %s550
      %s553 = sphi 0, %s552
      %s567 = sphi 0, %s553
      %s571 = sphi 0, %s571
      %s573 = sphi 0, %s571
      %s574 = sphi 0, %s573
      %s588 = sphi 0, %s574
      %s592 = sphi 0, %s592
      %s594 = sphi 0, %s592
      %s595 = sphi 0, %s594
      %s609 = sphi 0, %s595
      %s613 = sphi 0, %s613
      %s615 = sphi 0, %s613
      %s616 = sphi 0, %s615
      %s630 = sphi 0, %s616
      %s634 = sphi 0, %s634
      %s636 = sphi 0, %s634
      %s637 = sphi 0, %s636
      %s651 = sphi 0, %s637
      %s655 = sphi 0, %s655
      %s657 = sphi 0, %s655
      %s658 = sphi 0, %s657
      %s672 = sphi 0, %s658
      %s676 = sphi 0, %s676
      %s678 = sphi 0, %s676
      %s679 = sphi 0, %s678
      %s693 = sphi 0, %s679
      %s699 = sphi 0, %s701
      %s702 = sphi 0, %s699
      %s703 = sphi 0, %s702
      %s719 = sphi 0, %s703
      %s725 = sphi 0, %s727
      %s728 = sphi 0, %s725
      %s729 = sphi 0, %s728
      %s745 = sphi 0, %s729
      %s751 = sphi 0, %s753
      %s754 = sphi 0, %s751
      %s755 = sphi 0, %s754
      %s771 = sphi 0, %s755
      %s777 = sphi 0, %s779
      %s780 = sphi 0, %s777
      %s781 = sphi 0, %s780
      %s797 = sphi 0, %s781
    $region4: #{base_encoder.1} parent=1 // loop_header_branch
      %78 = sbr.rel (%p76) target = $region8
    $region5: #{base_encoder.1} parent=1 // loop_body
      %s80 = ssub.s32 %s75, 1
      %s81 = ssub.s32 %s75, 2
      %s82 = sadd.s32 %s75, 1
      %s83 = ssub.s32 %s75, %s82
      %p84 = scmp.eq.s32.totalorder %s83, 0
      %s86 = sadd.s32 %s85, 1
      %s87 = scalar_select %p84, %s85, %s86
      %p90 = pneg %p84
      %p91 = scmp.eq.s32.totalorder %s75, 1
      %p92 = por %p90, %p91
      %p93 = scmp.ne.s32.totalorder %s85, %s88
      %p94 = scmp.eq.s32.totalorder %s75, 0
      %p95 = por %p93, %p94
      %p96 = scmp.ne.s32.totalorder %s85, %s88
      %p97 = scmp.eq.s32.totalorder %s80, 1
      %p98 = por %p96, %p97
      %p99 = scmp.ne.s32.totalorder %s88, %s89
      %p100 = scmp.eq.s32.totalorder %s80, 0
      %p101 = por %p99, %p100
      %p102 = scmp.ne.s32.totalorder %s88, %s89
      %p103 = scmp.eq.s32.totalorder %s81, 1
      %p104 = por %p102, %p103
      %p106 = scmp.ne.s32.totalorder %s89, %s105
      %p107 = scmp.eq.s32.totalorder %s81, 0
      %p108 = por %p106, %p107
      %s110 = sadd.s32 %s109, 1
      %p113 = scmp.eq.s32.totalorder %s75, 1
      %p114 = scmp.ne.s32.totalorder %s109, %s111
      %p115 = scmp.eq.s32.totalorder %s75, 0
      %p116 = por %p114, %p115
      %p117 = scmp.ne.s32.totalorder %s109, %s111
      %p118 = scmp.eq.s32.totalorder %s80, 1
      %p119 = por %p117, %p118
      %p120 = scmp.ne.s32.totalorder %s111, %s112
      %p121 = scmp.eq.s32.totalorder %s80, 0
      %p122 = por %p120, %p121
      %p123 = scmp.ne.s32.totalorder %s111, %s112
      %p124 = scmp.eq.s32.totalorder %s81, 1
      %p125 = por %p123, %p124
      %p127 = scmp.ne.s32.totalorder %s112, %s126
      %p128 = scmp.eq.s32.totalorder %s81, 0
      %p129 = por %p127, %p128
      %s131 = sadd.s32 %s130, 1
      %p134 = scmp.eq.s32.totalorder %s75, 1
      %p135 = scmp.ne.s32.totalorder %s130, %s132
      %p136 = scmp.eq.s32.totalorder %s75, 0
      %p137 = por %p135, %p136
      %p138 = scmp.ne.s32.totalorder %s130, %s132
      %p139 = scmp.eq.s32.totalorder %s80, 1
      %p140 = por %p138, %p139
      %p141 = scmp.ne.s32.totalorder %s132, %s133
      %p142 = scmp.eq.s32.totalorder %s80, 0
      %p143 = por %p141, %p142
      %p144 = scmp.ne.s32.totalorder %s132, %s133
      %p145 = scmp.eq.s32.totalorder %s81, 1
      %p146 = por %p144, %p145
      %p148 = scmp.ne.s32.totalorder %s133, %s147
      %p149 = scmp.eq.s32.totalorder %s81, 0
      %p150 = por %p148, %p149
      %s152 = sadd.s32 %s151, 1
      %p155 = scmp.eq.s32.totalorder %s75, 1
      %p156 = scmp.ne.s32.totalorder %s151, %s153
      %p157 = scmp.eq.s32.totalorder %s75, 0
      %p158 = por %p156, %p157
      %p159 = scmp.ne.s32.totalorder %s151, %s153
      %p160 = scmp.eq.s32.totalorder %s80, 1
      %p161 = por %p159, %p160
      %p162 = scmp.ne.s32.totalorder %s153, %s154
      %p163 = scmp.eq.s32.totalorder %s80, 0
      %p164 = por %p162, %p163
      %p165 = scmp.ne.s32.totalorder %s153, %s154
      %p166 = scmp.eq.s32.totalorder %s81, 1
      %p167 = por %p165, %p166
      %p169 = scmp.ne.s32.totalorder %s154, %s168
      %p170 = scmp.eq.s32.totalorder %s81, 0
      %p171 = por %p169, %p170
      %s173 = sadd.s32 %s172, 1
      %p176 = scmp.eq.s32.totalorder %s75, 1
      %p177 = scmp.ne.s32.totalorder %s172, %s174
      %p178 = scmp.eq.s32.totalorder %s75, 0
      %p179 = por %p177, %p178
      %p180 = scmp.ne.s32.totalorder %s172, %s174
      %p181 = scmp.eq.s32.totalorder %s80, 1
      %p182 = por %p180, %p181
      %p183 = scmp.ne.s32.totalorder %s174, %s175
      %p184 = scmp.eq.s32.totalorder %s80, 0
      %p185 = por %p183, %p184
      %p186 = scmp.ne.s32.totalorder %s174, %s175
      %p187 = scmp.eq.s32.totalorder %s81, 1
      %p188 = por %p186, %p187
      %p190 = scmp.ne.s32.totalorder %s175, %s189
      %p191 = scmp.eq.s32.totalorder %s81, 0
      %p192 = por %p190, %p191
      %s194 = sadd.s32 %s193, 1
      %p197 = scmp.eq.s32.totalorder %s75, 1
      %p198 = scmp.ne.s32.totalorder %s193, %s195
      %p199 = scmp.eq.s32.totalorder %s75, 0
      %p200 = por %p198, %p199
      %p201 = scmp.ne.s32.totalorder %s193, %s195
      %p202 = scmp.eq.s32.totalorder %s80, 1
      %p203 = por %p201, %p202
      %p204 = scmp.ne.s32.totalorder %s195, %s196
      %p205 = scmp.eq.s32.totalorder %s80, 0
      %p206 = por %p204, %p205
      %p207 = scmp.ne.s32.totalorder %s195, %s196
      %p208 = scmp.eq.s32.totalorder %s81, 1
      %p209 = por %p207, %p208
      %p211 = scmp.ne.s32.totalorder %s196, %s210
      %p212 = scmp.eq.s32.totalorder %s81, 0
      %p213 = por %p211, %p212
      %s215 = sadd.s32 %s214, 1
      %p218 = scmp.eq.s32.totalorder %s75, 1
      %p219 = scmp.ne.s32.totalorder %s214, %s216
      %p220 = scmp.eq.s32.totalorder %s75, 0
      %p221 = por %p219, %p220
      %p222 = scmp.ne.s32.totalorder %s214, %s216
      %p223 = scmp.eq.s32.totalorder %s80, 1
      %p224 = por %p222, %p223
      %p225 = scmp.ne.s32.totalorder %s216, %s217
      %p226 = scmp.eq.s32.totalorder %s80, 0
      %p227 = por %p225, %p226
      %p228 = scmp.ne.s32.totalorder %s216, %s217
      %p229 = scmp.eq.s32.totalorder %s81, 1
      %p230 = por %p228, %p229
      %p232 = scmp.ne.s32.totalorder %s217, %s231
      %p233 = scmp.eq.s32.totalorder %s81, 0
      %p234 = por %p232, %p233
      %s236 = sadd.s32 %s235, 1
      %p239 = scmp.eq.s32.totalorder %s75, 1
      %p240 = scmp.ne.s32.totalorder %s235, %s237
      %p241 = scmp.eq.s32.totalorder %s75, 0
      %p242 = por %p240, %p241
      %p243 = scmp.ne.s32.totalorder %s235, %s237
      %p244 = scmp.eq.s32.totalorder %s80, 1
      %p245 = por %p243, %p244
      %p246 = scmp.ne.s32.totalorder %s237, %s238
      %p247 = scmp.eq.s32.totalorder %s80, 0
      %p248 = por %p246, %p247
      %p249 = scmp.ne.s32.totalorder %s237, %s238
      %p250 = scmp.eq.s32.totalorder %s81, 1
      %p251 = por %p249, %p250
      %p253 = scmp.ne.s32.totalorder %s238, %s252
      %p254 = scmp.eq.s32.totalorder %s81, 0
      %p255 = por %p253, %p254
      %s257 = sadd.s32 %s256, 1
      %p260 = scmp.eq.s32.totalorder %s75, 1
      %p261 = scmp.ne.s32.totalorder %s256, %s258
      %p262 = scmp.eq.s32.totalorder %s75, 0
      %p263 = por %p261, %p262
      %p264 = scmp.ne.s32.totalorder %s256, %s258
      %p265 = scmp.eq.s32.totalorder %s80, 1
      %p266 = por %p264, %p265
      %p267 = scmp.ne.s32.totalorder %s258, %s259
      %p268 = scmp.eq.s32.totalorder %s80, 0
      %p269 = por %p267, %p268
      %p270 = scmp.ne.s32.totalorder %s258, %s259
      %p271 = scmp.eq.s32.totalorder %s81, 1
      %p272 = por %p270, %p271
      %p274 = scmp.ne.s32.totalorder %s259, %s273
      %p275 = scmp.eq.s32.totalorder %s81, 0
      %p276 = por %p274, %p275
      %s278 = sadd.s32 %s277, 1
      %p281 = scmp.eq.s32.totalorder %s75, 1
      %p282 = scmp.ne.s32.totalorder %s277, %s279
      %p283 = scmp.eq.s32.totalorder %s75, 0
      %p284 = por %p282, %p283
      %p285 = scmp.ne.s32.totalorder %s277, %s279
      %p286 = scmp.eq.s32.totalorder %s80, 1
      %p287 = por %p285, %p286
      %p288 = scmp.ne.s32.totalorder %s279, %s280
      %p289 = scmp.eq.s32.totalorder %s80, 0
      %p290 = por %p288, %p289
      %p291 = scmp.ne.s32.totalorder %s279, %s280
      %p292 = scmp.eq.s32.totalorder %s81, 1
      %p293 = por %p291, %p292
      %p295 = scmp.ne.s32.totalorder %s280, %s294
      %p296 = scmp.eq.s32.totalorder %s81, 0
      %p297 = por %p295, %p296
      %s299 = sadd.s32 %s298, 1
      %p302 = scmp.eq.s32.totalorder %s75, 1
      %p303 = scmp.ne.s32.totalorder %s298, %s300
      %p304 = scmp.eq.s32.totalorder %s75, 0
      %p305 = por %p303, %p304
      %p306 = scmp.ne.s32.totalorder %s298, %s300
      %p307 = scmp.eq.s32.totalorder %s80, 1
      %p308 = por %p306, %p307
      %p309 = scmp.ne.s32.totalorder %s300, %s301
      %p310 = scmp.eq.s32.totalorder %s80, 0
      %p311 = por %p309, %p310
      %p312 = scmp.ne.s32.totalorder %s300, %s301
      %p313 = scmp.eq.s32.totalorder %s81, 1
      %p314 = por %p312, %p313
      %p316 = scmp.ne.s32.totalorder %s301, %s315
      %p317 = scmp.eq.s32.totalorder %s81, 0
      %p318 = por %p316, %p317
      %s320 = sadd.s32 %s319, 1
      %p323 = scmp.eq.s32.totalorder %s75, 1
      %p324 = scmp.ne.s32.totalorder %s319, %s321
      %p325 = scmp.eq.s32.totalorder %s75, 0
      %p326 = por %p324, %p325
      %p327 = scmp.ne.s32.totalorder %s319, %s321
      %p328 = scmp.eq.s32.totalorder %s80, 1
      %p329 = por %p327, %p328
      %p330 = scmp.ne.s32.totalorder %s321, %s322
      %p331 = scmp.eq.s32.totalorder %s80, 0
      %p332 = por %p330, %p331
      %p333 = scmp.ne.s32.totalorder %s321, %s322
      %p334 = scmp.eq.s32.totalorder %s81, 1
      %p335 = por %p333, %p334
      %p337 = scmp.ne.s32.totalorder %s322, %s336
      %p338 = scmp.eq.s32.totalorder %s81, 0
      %p339 = por %p337, %p338
      %s341 = sadd.s32 %s340, 1
      %p344 = scmp.eq.s32.totalorder %s75, 1
      %p345 = scmp.ne.s32.totalorder %s340, %s342
      %p346 = scmp.eq.s32.totalorder %s75, 0
      %p347 = por %p345, %p346
      %p348 = scmp.ne.s32.totalorder %s340, %s342
      %p349 = scmp.eq.s32.totalorder %s80, 1
      %p350 = por %p348, %p349
      %p351 = scmp.ne.s32.totalorder %s342, %s343
      %p352 = scmp.eq.s32.totalorder %s80, 0
      %p353 = por %p351, %p352
      %p354 = scmp.ne.s32.totalorder %s342, %s343
      %p355 = scmp.eq.s32.totalorder %s81, 1
      %p356 = por %p354, %p355
      %p358 = scmp.ne.s32.totalorder %s343, %s357
      %p359 = scmp.eq.s32.totalorder %s81, 0
      %p360 = por %p358, %p359
      %s362 = sadd.s32 %s361, 1
      %p365 = scmp.eq.s32.totalorder %s75, 1
      %p366 = scmp.ne.s32.totalorder %s361, %s363
      %p367 = scmp.eq.s32.totalorder %s75, 0
      %p368 = por %p366, %p367
      %p369 = scmp.ne.s32.totalorder %s361, %s363
      %p370 = scmp.eq.s32.totalorder %s80, 1
      %p371 = por %p369, %p370
      %p372 = scmp.ne.s32.totalorder %s363, %s364
      %p373 = scmp.eq.s32.totalorder %s80, 0
      %p374 = por %p372, %p373
      %p375 = scmp.ne.s32.totalorder %s363, %s364
      %p376 = scmp.eq.s32.totalorder %s81, 1
      %p377 = por %p375, %p376
      %p379 = scmp.ne.s32.totalorder %s364, %s378
      %p380 = scmp.eq.s32.totalorder %s81, 0
      %p381 = por %p379, %p380
      %s383 = sadd.s32 %s382, 1
      %p386 = scmp.eq.s32.totalorder %s75, 1
      %p387 = scmp.ne.s32.totalorder %s382, %s384
      %p388 = scmp.eq.s32.totalorder %s75, 0
      %p389 = por %p387, %p388
      %p390 = scmp.ne.s32.totalorder %s382, %s384
      %p391 = scmp.eq.s32.totalorder %s80, 1
      %p392 = por %p390, %p391
      %p393 = scmp.ne.s32.totalorder %s384, %s385
      %p394 = scmp.eq.s32.totalorder %s80, 0
      %p395 = por %p393, %p394
      %p396 = scmp.ne.s32.totalorder %s384, %s385
      %p397 = scmp.eq.s32.totalorder %s81, 1
      %p398 = por %p396, %p397
      %p400 = scmp.ne.s32.totalorder %s385, %s399
      %p401 = scmp.eq.s32.totalorder %s81, 0
      %p402 = por %p400, %p401
      %s404 = sadd.s32 %s403, 1
      %p407 = scmp.eq.s32.totalorder %s75, 1
      %p408 = scmp.ne.s32.totalorder %s403, %s405
      %p409 = scmp.eq.s32.totalorder %s75, 0
      %p410 = por %p408, %p409
      %p411 = scmp.ne.s32.totalorder %s403, %s405
      %p412 = scmp.eq.s32.totalorder %s80, 1
      %p413 = por %p411, %p412
      %p414 = scmp.ne.s32.totalorder %s405, %s406
      %p415 = scmp.eq.s32.totalorder %s80, 0
      %p416 = por %p414, %p415
      %p417 = scmp.ne.s32.totalorder %s405, %s406
      %p418 = scmp.eq.s32.totalorder %s81, 1
      %p419 = por %p417, %p418
      %p421 = scmp.ne.s32.totalorder %s406, %s420
      %p422 = scmp.eq.s32.totalorder %s81, 0
      %p423 = por %p421, %p422
      %s425 = sadd.s32 %s424, 1
      %p428 = scmp.eq.s32.totalorder %s75, 1
      %p429 = scmp.ne.s32.totalorder %s424, %s426
      %p430 = scmp.eq.s32.totalorder %s75, 0
      %p431 = por %p429, %p430
      %p432 = scmp.ne.s32.totalorder %s424, %s426
      %p433 = scmp.eq.s32.totalorder %s80, 1
      %p434 = por %p432, %p433
      %p435 = scmp.ne.s32.totalorder %s426, %s427
      %p436 = scmp.eq.s32.totalorder %s80, 0
      %p437 = por %p435, %p436
      %p438 = scmp.ne.s32.totalorder %s426, %s427
      %p439 = scmp.eq.s32.totalorder %s81, 1
      %p440 = por %p438, %p439
      %p442 = scmp.ne.s32.totalorder %s427, %s441
      %p443 = scmp.eq.s32.totalorder %s81, 0
      %p444 = por %p442, %p443
      %s446 = sadd.s32 %s445, 1
      %p449 = scmp.eq.s32.totalorder %s75, 1
      %p450 = scmp.ne.s32.totalorder %s445, %s447
      %p451 = scmp.eq.s32.totalorder %s75, 0
      %p452 = por %p450, %p451
      %p453 = scmp.ne.s32.totalorder %s445, %s447
      %p454 = scmp.eq.s32.totalorder %s80, 1
      %p455 = por %p453, %p454
      %p456 = scmp.ne.s32.totalorder %s447, %s448
      %p457 = scmp.eq.s32.totalorder %s80, 0
      %p458 = por %p456, %p457
      %p459 = scmp.ne.s32.totalorder %s447, %s448
      %p460 = scmp.eq.s32.totalorder %s81, 1
      %p461 = por %p459, %p460
      %p463 = scmp.ne.s32.totalorder %s448, %s462
      %p464 = scmp.eq.s32.totalorder %s81, 0
      %p465 = por %p463, %p464
      %s467 = sadd.s32 %s466, 1
      %p470 = scmp.eq.s32.totalorder %s75, 1
      %p471 = scmp.ne.s32.totalorder %s466, %s468
      %p472 = scmp.eq.s32.totalorder %s75, 0
      %p473 = por %p471, %p472
      %p474 = scmp.ne.s32.totalorder %s466, %s468
      %p475 = scmp.eq.s32.totalorder %s80, 1
      %p476 = por %p474, %p475
      %p477 = scmp.ne.s32.totalorder %s468, %s469
      %p478 = scmp.eq.s32.totalorder %s80, 0
      %p479 = por %p477, %p478
      %p480 = scmp.ne.s32.totalorder %s468, %s469
      %p481 = scmp.eq.s32.totalorder %s81, 1
      %p482 = por %p480, %p481
      %p484 = scmp.ne.s32.totalorder %s469, %s483
      %p485 = scmp.eq.s32.totalorder %s81, 0
      %p486 = por %p484, %p485
      %s488 = sadd.s32 %s487, 1
      %p491 = scmp.eq.s32.totalorder %s75, 1
      %p492 = scmp.ne.s32.totalorder %s487, %s489
      %p493 = scmp.eq.s32.totalorder %s75, 0
      %p494 = por %p492, %p493
      %p495 = scmp.ne.s32.totalorder %s487, %s489
      %p496 = scmp.eq.s32.totalorder %s80, 1
      %p497 = por %p495, %p496
      %p498 = scmp.ne.s32.totalorder %s489, %s490
      %p499 = scmp.eq.s32.totalorder %s80, 0
      %p500 = por %p498, %p499
      %p501 = scmp.ne.s32.totalorder %s489, %s490
      %p502 = scmp.eq.s32.totalorder %s81, 1
      %p503 = por %p501, %p502
      %p505 = scmp.ne.s32.totalorder %s490, %s504
      %p506 = scmp.eq.s32.totalorder %s81, 0
      %p507 = por %p505, %p506
      %s509 = sadd.s32 %s508, 1
      %p512 = scmp.eq.s32.totalorder %s75, 1
      %p513 = scmp.ne.s32.totalorder %s508, %s510
      %p514 = scmp.eq.s32.totalorder %s75, 0
      %p515 = por %p513, %p514
      %p516 = scmp.ne.s32.totalorder %s508, %s510
      %p517 = scmp.eq.s32.totalorder %s80, 1
      %p518 = por %p516, %p517
      %p519 = scmp.ne.s32.totalorder %s510, %s511
      %p520 = scmp.eq.s32.totalorder %s80, 0
      %p521 = por %p519, %p520
      %p522 = scmp.ne.s32.totalorder %s510, %s511
      %p523 = scmp.eq.s32.totalorder %s81, 1
      %p524 = por %p522, %p523
      %p526 = scmp.ne.s32.totalorder %s511, %s525
      %p527 = scmp.eq.s32.totalorder %s81, 0
      %p528 = por %p526, %p527
      %s530 = sadd.s32 %s529, 1
      %p533 = scmp.eq.s32.totalorder %s75, 1
      %p534 = scmp.ne.s32.totalorder %s529, %s531
      %p535 = scmp.eq.s32.totalorder %s75, 0
      %p536 = por %p534, %p535
      %p537 = scmp.ne.s32.totalorder %s529, %s531
      %p538 = scmp.eq.s32.totalorder %s80, 1
      %p539 = por %p537, %p538
      %p540 = scmp.ne.s32.totalorder %s531, %s532
      %p541 = scmp.eq.s32.totalorder %s80, 0
      %p542 = por %p540, %p541
      %p543 = scmp.ne.s32.totalorder %s531, %s532
      %p544 = scmp.eq.s32.totalorder %s81, 1
      %p545 = por %p543, %p544
      %p547 = scmp.ne.s32.totalorder %s532, %s546
      %p548 = scmp.eq.s32.totalorder %s81, 0
      %p549 = por %p547, %p548
      %s551 = sadd.s32 %s550, 1
      %p554 = scmp.eq.s32.totalorder %s75, 1
      %p555 = scmp.ne.s32.totalorder %s550, %s552
      %p556 = scmp.eq.s32.totalorder %s75, 0
      %p557 = por %p555, %p556
      %p558 = scmp.ne.s32.totalorder %s550, %s552
      %p559 = scmp.eq.s32.totalorder %s80, 1
      %p560 = por %p558, %p559
      %p561 = scmp.ne.s32.totalorder %s552, %s553
      %p562 = scmp.eq.s32.totalorder %s80, 0
      %p563 = por %p561, %p562
      %p564 = scmp.ne.s32.totalorder %s552, %s553
      %p565 = scmp.eq.s32.totalorder %s81, 1
      %p566 = por %p564, %p565
      %p568 = scmp.ne.s32.totalorder %s553, %s567
      %p569 = scmp.eq.s32.totalorder %s81, 0
      %p570 = por %p568, %p569
      %s572 = sadd.s32 %s571, 1
      %p575 = scmp.eq.s32.totalorder %s75, 1
      %p576 = scmp.ne.s32.totalorder %s571, %s573
      %p577 = scmp.eq.s32.totalorder %s75, 0
      %p578 = por %p576, %p577
      %p579 = scmp.ne.s32.totalorder %s571, %s573
      %p580 = scmp.eq.s32.totalorder %s80, 1
      %p581 = por %p579, %p580
      %p582 = scmp.ne.s32.totalorder %s573, %s574
      %p583 = scmp.eq.s32.totalorder %s80, 0
      %p584 = por %p582, %p583
      %p585 = scmp.ne.s32.totalorder %s573, %s574
      %p586 = scmp.eq.s32.totalorder %s81, 1
      %p587 = por %p585, %p586
      %p589 = scmp.ne.s32.totalorder %s574, %s588
      %p590 = scmp.eq.s32.totalorder %s81, 0
      %p591 = por %p589, %p590
      %s593 = sadd.s32 %s592, 1
      %p596 = scmp.eq.s32.totalorder %s75, 1
      %p597 = scmp.ne.s32.totalorder %s592, %s594
      %p598 = scmp.eq.s32.totalorder %s75, 0
      %p599 = por %p597, %p598
      %p600 = scmp.ne.s32.totalorder %s592, %s594
      %p601 = scmp.eq.s32.totalorder %s80, 1
      %p602 = por %p600, %p601
      %p603 = scmp.ne.s32.totalorder %s594, %s595
      %p604 = scmp.eq.s32.totalorder %s80, 0
      %p605 = por %p603, %p604
      %p606 = scmp.ne.s32.totalorder %s594, %s595
      %p607 = scmp.eq.s32.totalorder %s81, 1
      %p608 = por %p606, %p607
      %p610 = scmp.ne.s32.totalorder %s595, %s609
      %p611 = scmp.eq.s32.totalorder %s81, 0
      %p612 = por %p610, %p611
      %s614 = sadd.s32 %s613, 1
      %p617 = scmp.eq.s32.totalorder %s75, 1
      %p618 = scmp.ne.s32.totalorder %s613, %s615
      %p619 = scmp.eq.s32.totalorder %s75, 0
      %p620 = por %p618, %p619
      %p621 = scmp.ne.s32.totalorder %s613, %s615
      %p622 = scmp.eq.s32.totalorder %s80, 1
      %p623 = por %p621, %p622
      %p624 = scmp.ne.s32.totalorder %s615, %s616
      %p625 = scmp.eq.s32.totalorder %s80, 0
      %p626 = por %p624, %p625
      %p627 = scmp.ne.s32.totalorder %s615, %s616
      %p628 = scmp.eq.s32.totalorder %s81, 1
      %p629 = por %p627, %p628
      %p631 = scmp.ne.s32.totalorder %s616, %s630
      %p632 = scmp.eq.s32.totalorder %s81, 0
      %p633 = por %p631, %p632
      %s635 = sadd.s32 %s634, 1
      %p638 = scmp.eq.s32.totalorder %s75, 1
      %p639 = scmp.ne.s32.totalorder %s634, %s636
      %p640 = scmp.eq.s32.totalorder %s75, 0
      %p641 = por %p639, %p640
      %p642 = scmp.ne.s32.totalorder %s634, %s636
      %p643 = scmp.eq.s32.totalorder %s80, 1
      %p644 = por %p642, %p643
      %p645 = scmp.ne.s32.totalorder %s636, %s637
      %p646 = scmp.eq.s32.totalorder %s80, 0
      %p647 = por %p645, %p646
      %p648 = scmp.ne.s32.totalorder %s636, %s637
      %p649 = scmp.eq.s32.totalorder %s81, 1
      %p650 = por %p648, %p649
      %p652 = scmp.ne.s32.totalorder %s637, %s651
      %p653 = scmp.eq.s32.totalorder %s81, 0
      %p654 = por %p652, %p653
      %s656 = sadd.s32 %s655, 1
      %p659 = scmp.eq.s32.totalorder %s75, 1
      %p660 = scmp.ne.s32.totalorder %s655, %s657
      %p661 = scmp.eq.s32.totalorder %s75, 0
      %p662 = por %p660, %p661
      %p663 = scmp.ne.s32.totalorder %s655, %s657
      %p664 = scmp.eq.s32.totalorder %s80, 1
      %p665 = por %p663, %p664
      %p666 = scmp.ne.s32.totalorder %s657, %s658
      %p667 = scmp.eq.s32.totalorder %s80, 0
      %p668 = por %p666, %p667
      %p669 = scmp.ne.s32.totalorder %s657, %s658
      %p670 = scmp.eq.s32.totalorder %s81, 1
      %p671 = por %p669, %p670
      %p673 = scmp.ne.s32.totalorder %s658, %s672
      %p674 = scmp.eq.s32.totalorder %s81, 0
      %p675 = por %p673, %p674
      %s677 = sadd.s32 %s676, 1
      %p680 = scmp.eq.s32.totalorder %s75, 1
      %p681 = scmp.ne.s32.totalorder %s676, %s678
      %p682 = scmp.eq.s32.totalorder %s75, 0
      %p683 = por %p681, %p682
      %p684 = scmp.ne.s32.totalorder %s676, %s678
      %p685 = scmp.eq.s32.totalorder %s80, 1
      %p686 = por %p684, %p685
      %p687 = scmp.ne.s32.totalorder %s678, %s679
      %p688 = scmp.eq.s32.totalorder %s80, 0
      %p689 = por %p687, %p688
      %p690 = scmp.ne.s32.totalorder %s678, %s679
      %p691 = scmp.eq.s32.totalorder %s81, 1
      %p692 = por %p690, %p691
      %p694 = scmp.ne.s32.totalorder %s679, %s693
      %p695 = scmp.eq.s32.totalorder %s81, 0
      %p696 = por %p694, %p695
      %s697 = ssub.s32 %s75, %s82
      %p698 = scmp.eq.s32.totalorder %s697, 0
      %s700 = sadd.s32 %s699, 1
      %s701 = scalar_select %p698, %s699, %s700
      %p704 = pneg %p698
      %p705 = scmp.eq.s32.totalorder %s75, 1
      %p706 = por %p704, %p705
      %p707 = scmp.ne.s32.totalorder %s699, %s702
      %p708 = scmp.eq.s32.totalorder %s75, 0
      %p709 = por %p707, %p708
      %p710 = scmp.ne.s32.totalorder %s699, %s702
      %p711 = scmp.eq.s32.totalorder %s80, 1
      %p712 = por %p710, %p711
      %p713 = scmp.ne.s32.totalorder %s702, %s703
      %p714 = scmp.eq.s32.totalorder %s80, 0
      %p715 = por %p713, %p714
      %p716 = scmp.ne.s32.totalorder %s702, %s703
      %p717 = scmp.eq.s32.totalorder %s81, 1
      %p718 = por %p716, %p717
      %p720 = scmp.ne.s32.totalorder %s703, %s719
      %p721 = scmp.eq.s32.totalorder %s81, 0
      %p722 = por %p720, %p721
      %s723 = ssub.s32 %s75, %s82
      %p724 = scmp.eq.s32.totalorder %s723, 0
      %s726 = sadd.s32 %s725, 1
      %s727 = scalar_select %p724, %s725, %s726
      %p730 = pneg %p724
      %p731 = scmp.eq.s32.totalorder %s75, 1
      %p732 = por %p730, %p731
      %p733 = scmp.ne.s32.totalorder %s725, %s728
      %p734 = scmp.eq.s32.totalorder %s75, 0
      %p735 = por %p733, %p734
      %p736 = scmp.ne.s32.totalorder %s725, %s728
      %p737 = scmp.eq.s32.totalorder %s80, 1
      %p738 = por %p736, %p737
      %p739 = scmp.ne.s32.totalorder %s728, %s729
      %p740 = scmp.eq.s32.totalorder %s80, 0
      %p741 = por %p739, %p740
      %p742 = scmp.ne.s32.totalorder %s728, %s729
      %p743 = scmp.eq.s32.totalorder %s81, 1
      %p744 = por %p742, %p743
      %p746 = scmp.ne.s32.totalorder %s729, %s745
      %p747 = scmp.eq.s32.totalorder %s81, 0
      %p748 = por %p746, %p747
      %s749 = ssub.s32 %s75, %s82
      %p750 = scmp.eq.s32.totalorder %s749, 0
      %s752 = sadd.s32 %s751, 1
      %s753 = scalar_select %p750, %s751, %s752
      %p756 = pneg %p750
      %p757 = scmp.eq.s32.totalorder %s75, 1
      %p758 = por %p756, %p757
      %p759 = scmp.ne.s32.totalorder %s751, %s754
      %p760 = scmp.eq.s32.totalorder %s75, 0
      %p761 = por %p759, %p760
      %p762 = scmp.ne.s32.totalorder %s751, %s754
      %p763 = scmp.eq.s32.totalorder %s80, 1
      %p764 = por %p762, %p763
      %p765 = scmp.ne.s32.totalorder %s754, %s755
      %p766 = scmp.eq.s32.totalorder %s80, 0
      %p767 = por %p765, %p766
      %p768 = scmp.ne.s32.totalorder %s754, %s755
      %p769 = scmp.eq.s32.totalorder %s81, 1
      %p770 = por %p768, %p769
      %p772 = scmp.ne.s32.totalorder %s755, %s771
      %p773 = scmp.eq.s32.totalorder %s81, 0
      %p774 = por %p772, %p773
      %s775 = ssub.s32 %s75, %s82
      %p776 = scmp.eq.s32.totalorder %s775, 0
      %s778 = sadd.s32 %s777, 1
      %s779 = scalar_select %p776, %s777, %s778
      %p782 = pneg %p776
      %p783 = scmp.eq.s32.totalorder %s75, 1
      %p784 = por %p782, %p783
      %p785 = scmp.ne.s32.totalorder %s777, %s780
      %p786 = scmp.eq.s32.totalorder %s75, 0
      %p787 = por %p785, %p786
      %p788 = scmp.ne.s32.totalorder %s777, %s780
      %p789 = scmp.eq.s32.totalorder %s80, 1
      %p790 = por %p788, %p789
      %p791 = scmp.ne.s32.totalorder %s780, %s781
      %p792 = scmp.eq.s32.totalorder %s80, 0
      %p793 = por %p791, %p792
      %p794 = scmp.ne.s32.totalorder %s780, %s781
      %p795 = scmp.eq.s32.totalorder %s81, 1
      %p796 = por %p794, %p795
      %p798 = scmp.ne.s32.totalorder %s781, %s797
      %p799 = scmp.eq.s32.totalorder %s81, 0
      %p800 = por %p798, %p799
      %p801 = scmp.le.s32.totalorder 1, %s75
      %p802 = scmp.lt.s32.totalorder %s75, 3
      %p803 = pnand %p801, %p802
      %p804 = pneg %p803
      // Predicated region
      $region9: #{base_encoder.1} parent=5 // pred_check
        _
      $region10: #{base_encoder.1} parent=5 // pred_check_branch
        %806 = sbr.rel (%p803) target = $region12
      $region11: #{base_encoder.1} parent=5 // pred_region
        %s807 = ssub.s32 %s75, 1
        // Predicated region
        $region13: #{base_encoder.1} parent=11 // pred_check
          %p808 = pneg %p122
        $region14: #{base_encoder.1} parent=11 // pred_check_branch
          %810 = sbr.rel (%p808) target = $region16
        $region15: #{base_encoder.1} parent=11 // pred_region
          _
        $region16: #{base_encoder.1} parent=11 // pred_fallthru
          _
        // Predicated region
        $region17: #{base_encoder.1} parent=11 // pred_check
          %p811 = pneg %p143
        $region18: #{base_encoder.1} parent=11 // pred_check_branch
          %813 = sbr.rel (%p811) target = $region20
        $region19: #{base_encoder.1} parent=11 // pred_region
          _
        $region20: #{base_encoder.1} parent=11 // pred_fallthru
          _
        // Predicated region
        $region21: #{base_encoder.1} parent=11 // pred_check
          %p814 = pneg %p164
        $region22: #{base_encoder.1} parent=11 // pred_check_branch
          %816 = sbr.rel (%p814) target = $region24
        $region23: #{base_encoder.1} parent=11 // pred_region
          _
        $region24: #{base_encoder.1} parent=11 // pred_fallthru
          _
        // Predicated region
        $region25: #{base_encoder.1} parent=11 // pred_check
          %p817 = pneg %p185
        $region26: #{base_encoder.1} parent=11 // pred_check_branch
          %819 = sbr.rel (%p817) target = $region28
        $region27: #{base_encoder.1} parent=11 // pred_region
          _
        $region28: #{base_encoder.1} parent=11 // pred_fallthru
          _
        // Predicated region
        $region29: #{base_encoder.1} parent=11 // pred_check
          %p820 = pneg %p206
        $region30: #{base_encoder.1} parent=11 // pred_check_branch
          %822 = sbr.rel (%p820) target = $region32
        $region31: #{base_encoder.1} parent=11 // pred_region
          _
        $region32: #{base_encoder.1} parent=11 // pred_fallthru
          _
        // Predicated region
        $region33: #{base_encoder.1} parent=11 // pred_check
          %p823 = pneg %p227
        $region34: #{base_encoder.1} parent=11 // pred_check_branch
          %825 = sbr.rel (%p823) target = $region36
        $region35: #{base_encoder.1} parent=11 // pred_region
          _
        $region36: #{base_encoder.1} parent=11 // pred_fallthru
          _
        // Predicated region
        $region37: #{base_encoder.1} parent=11 // pred_check
          %p826 = pneg %p248
        $region38: #{base_encoder.1} parent=11 // pred_check_branch
          %828 = sbr.rel (%p826) target = $region40
        $region39: #{base_encoder.1} parent=11 // pred_region
          _
        $region40: #{base_encoder.1} parent=11 // pred_fallthru
          _
        // Predicated region
        $region41: #{base_encoder.1} parent=11 // pred_check
          %p829 = pneg %p269
        $region42: #{base_encoder.1} parent=11 // pred_check_branch
          %831 = sbr.rel (%p829) target = $region44
        $region43: #{base_encoder.1} parent=11 // pred_region
          _
        $region44: #{base_encoder.1} parent=11 // pred_fallthru
          _
        // Predicated region
        $region45: #{base_encoder.1} parent=11 // pred_check
          %p832 = pneg %p290
        $region46: #{base_encoder.1} parent=11 // pred_check_branch
          %834 = sbr.rel (%p832) target = $region48
        $region47: #{base_encoder.1} parent=11 // pred_region
          _
        $region48: #{base_encoder.1} parent=11 // pred_fallthru
          _
        // Predicated region
        $region49: #{base_encoder.1} parent=11 // pred_check
          %p835 = pneg %p311
        $region50: #{base_encoder.1} parent=11 // pred_check_branch
          %837 = sbr.rel (%p835) target = $region52
        $region51: #{base_encoder.1} parent=11 // pred_region
          _
        $region52: #{base_encoder.1} parent=11 // pred_fallthru
          _
        // Predicated region
        $region53: #{base_encoder.1} parent=11 // pred_check
          %p838 = pneg %p332
        $region54: #{base_encoder.1} parent=11 // pred_check_branch
          %840 = sbr.rel (%p838) target = $region56
        $region55: #{base_encoder.1} parent=11 // pred_region
          _
        $region56: #{base_encoder.1} parent=11 // pred_fallthru
          _
        // Predicated region
        $region57: #{base_encoder.1} parent=11 // pred_check
          %p841 = pneg %p353
        $region58: #{base_encoder.1} parent=11 // pred_check_branch
          %843 = sbr.rel (%p841) target = $region60
        $region59: #{base_encoder.1} parent=11 // pred_region
          _
        $region60: #{base_encoder.1} parent=11 // pred_fallthru
          _
        // Predicated region
        $region61: #{base_encoder.1} parent=11 // pred_check
          %p844 = pneg %p374
        $region62: #{base_encoder.1} parent=11 // pred_check_branch
          %846 = sbr.rel (%p844) target = $region64
        $region63: #{base_encoder.1} parent=11 // pred_region
          _
        $region64: #{base_encoder.1} parent=11 // pred_fallthru
          _
        // Predicated region
        $region65: #{base_encoder.1} parent=11 // pred_check
          %p847 = pneg %p395
        $region66: #{base_encoder.1} parent=11 // pred_check_branch
          %849 = sbr.rel (%p847) target = $region68
        $region67: #{base_encoder.1} parent=11 // pred_region
          _
        $region68: #{base_encoder.1} parent=11 // pred_fallthru
          _
        // Predicated region
        $region69: #{base_encoder.1} parent=11 // pred_check
          %p850 = pneg %p416
        $region70: #{base_encoder.1} parent=11 // pred_check_branch
          %852 = sbr.rel (%p850) target = $region72
        $region71: #{base_encoder.1} parent=11 // pred_region
          _
        $region72: #{base_encoder.1} parent=11 // pred_fallthru
          _
        // Predicated region
        $region73: #{base_encoder.1} parent=11 // pred_check
          %p853 = pneg %p437
        $region74: #{base_encoder.1} parent=11 // pred_check_branch
          %855 = sbr.rel (%p853) target = $region76
        $region75: #{base_encoder.1} parent=11 // pred_region
          _
        $region76: #{base_encoder.1} parent=11 // pred_fallthru
          _
        // Predicated region
        $region77: #{base_encoder.1} parent=11 // pred_check
          %p856 = pneg %p458
        $region78: #{base_encoder.1} parent=11 // pred_check_branch
          %858 = sbr.rel (%p856) target = $region80
        $region79: #{base_encoder.1} parent=11 // pred_region
          _
        $region80: #{base_encoder.1} parent=11 // pred_fallthru
          _
        // Predicated region
        $region81: #{base_encoder.1} parent=11 // pred_check
          %p859 = pneg %p479
        $region82: #{base_encoder.1} parent=11 // pred_check_branch
          %861 = sbr.rel (%p859) target = $region84
        $region83: #{base_encoder.1} parent=11 // pred_region
          _
        $region84: #{base_encoder.1} parent=11 // pred_fallthru
          _
        // Predicated region
        $region85: #{base_encoder.1} parent=11 // pred_check
          %p862 = pneg %p500
        $region86: #{base_encoder.1} parent=11 // pred_check_branch
          %864 = sbr.rel (%p862) target = $region88
        $region87: #{base_encoder.1} parent=11 // pred_region
          _
        $region88: #{base_encoder.1} parent=11 // pred_fallthru
          _
        // Predicated region
        $region89: #{base_encoder.1} parent=11 // pred_check
          %p865 = pneg %p521
        $region90: #{base_encoder.1} parent=11 // pred_check_branch
          %867 = sbr.rel (%p865) target = $region92
        $region91: #{base_encoder.1} parent=11 // pred_region
          _
        $region92: #{base_encoder.1} parent=11 // pred_fallthru
          _
        // Predicated region
        $region93: #{base_encoder.1} parent=11 // pred_check
          %p868 = pneg %p542
        $region94: #{base_encoder.1} parent=11 // pred_check_branch
          %870 = sbr.rel (%p868) target = $region96
        $region95: #{base_encoder.1} parent=11 // pred_region
          _
        $region96: #{base_encoder.1} parent=11 // pred_fallthru
          _
        // Predicated region
        $region97: #{base_encoder.1} parent=11 // pred_check
          %p871 = pneg %p563
        $region98: #{base_encoder.1} parent=11 // pred_check_branch
          %873 = sbr.rel (%p871) target = $region100
        $region99: #{base_encoder.1} parent=11 // pred_region
          _
        $region100: #{base_encoder.1} parent=11 // pred_fallthru
          _
        // Predicated region
        $region101: #{base_encoder.1} parent=11 // pred_check
          %p874 = pneg %p584
        $region102: #{base_encoder.1} parent=11 // pred_check_branch
          %876 = sbr.rel (%p874) target = $region104
        $region103: #{base_encoder.1} parent=11 // pred_region
          _
        $region104: #{base_encoder.1} parent=11 // pred_fallthru
          _
        // Predicated region
        $region105: #{base_encoder.1} parent=11 // pred_check
          %p877 = pneg %p605
        $region106: #{base_encoder.1} parent=11 // pred_check_branch
          %879 = sbr.rel (%p877) target = $region108
        $region107: #{base_encoder.1} parent=11 // pred_region
          _
        $region108: #{base_encoder.1} parent=11 // pred_fallthru
          _
        // Predicated region
        $region109: #{base_encoder.1} parent=11 // pred_check
          %p880 = pneg %p626
        $region110: #{base_encoder.1} parent=11 // pred_check_branch
          %882 = sbr.rel (%p880) target = $region112
        $region111: #{base_encoder.1} parent=11 // pred_region
          _
        $region112: #{base_encoder.1} parent=11 // pred_fallthru
          _
        // Predicated region
        $region113: #{base_encoder.1} parent=11 // pred_check
          %p883 = pneg %p647
        $region114: #{base_encoder.1} parent=11 // pred_check_branch
          %885 = sbr.rel (%p883) target = $region116
        $region115: #{base_encoder.1} parent=11 // pred_region
          _
        $region116: #{base_encoder.1} parent=11 // pred_fallthru
          _
        // Predicated region
        $region117: #{base_encoder.1} parent=11 // pred_check
          %p886 = pneg %p668
        $region118: #{base_encoder.1} parent=11 // pred_check_branch
          %888 = sbr.rel (%p886) target = $region120
        $region119: #{base_encoder.1} parent=11 // pred_region
          _
        $region120: #{base_encoder.1} parent=11 // pred_fallthru
          _
        // Predicated region
        $region121: #{base_encoder.1} parent=11 // pred_check
          %p889 = pneg %p689
        $region122: #{base_encoder.1} parent=11 // pred_check_branch
          %891 = sbr.rel (%p889) target = $region124
        $region123: #{base_encoder.1} parent=11 // pred_region
          _
        $region124: #{base_encoder.1} parent=11 // pred_fallthru
          _
      $region12: #{base_encoder.1} parent=5 // pred_fallthru
        _
      %p892 = scmp.lt.s32.totalorder %s75, 2
      // Predicated region
      $region125: #{base_encoder.1} parent=5 // pred_check
        %p893 = pneg %p892
      $region126: #{base_encoder.1} parent=5 // pred_check_branch
        %895 = sbr.rel (%p893) target = $region128
      $region127: #{base_encoder.1} parent=5 // pred_region
        // Predicated region
        $region129: #{base_encoder.1} parent=127 // pred_check
          %p896 = pneg %p95
        $region130: #{base_encoder.1} parent=127 // pred_check_branch
          %898 = sbr.rel (%p896) target = $region132
        $region131: #{base_encoder.1} parent=127 // pred_region
          %p899 = scmp.lt.s32.totalorder %s75, 1
          %s900 = scalar_select %p899, %s75, 1
          %s901 = smul.addr %s900, 6
          %s902 = smul.addr %s901, 8
          %s903 = scalar_lea.vmem %s1, %s902
        $region132: #{base_encoder.1} parent=127 // pred_fallthru
          _
      $region128: #{base_encoder.1} parent=5 // pred_fallthru
        _
      %p904 = scmp.le.s32.totalorder 1, %s75
      %p905 = scmp.lt.s32.totalorder %s75, 3
      %p906 = pnand %p904, %p905
      %p907 = pneg %p906
      // Predicated region
      $region133: #{base_encoder.1} parent=5 // pred_check
        _
      $region134: #{base_encoder.1} parent=5 // pred_check_branch
        %909 = sbr.rel (%p906) target = $region136
      $region135: #{base_encoder.1} parent=5 // pred_region
        %s910 = ssub.s32 %s75, 1
        %p911 = scmp.lt.s32.totalorder %s80, 1
        %s912 = scalar_select %p911, %s80, 1
        %s913 = smul.addr %s912, 6
        %s914 = smul.addr %s913, 8
        %s915 = scalar_lea.vmem %s1, %s914
        %p916 = pneg %p101
        %p917 = pneg %p98
        %p918 = pneg %p122
        %p919 = pneg %p119
        %p920 = pneg %p143
        %p921 = pneg %p140
        %p922 = pneg %p164
        %p923 = pneg %p161
        %p924 = pneg %p185
        %p925 = pneg %p182
        %p926 = pneg %p206
        %p927 = pneg %p203
        %p928 = pneg %p227
        %p929 = pneg %p224
        %p930 = pneg %p248
        %p931 = pneg %p245
        %p932 = pneg %p269
        %p933 = pneg %p266
        %p934 = pneg %p290
        %p935 = pneg %p287
        %p936 = pneg %p311
        %p937 = pneg %p308
        %p938 = pneg %p332
        %p939 = pneg %p329
        %p940 = pneg %p353
        %p941 = pneg %p350
        %p942 = pneg %p374
        %p943 = pneg %p371
        %p944 = pneg %p395
        %p945 = pneg %p392
        %p946 = pneg %p416
        %p947 = pneg %p413
        %p948 = pneg %p437
        %p949 = pneg %p434
        %p950 = pneg %p458
        %p951 = pneg %p455
        %p952 = pneg %p479
        %p953 = pneg %p476
        %p954 = pneg %p500
        %p955 = pneg %p497
        %p956 = pneg %p521
        %p957 = pneg %p518
        %p958 = pneg %p542
        %p959 = pneg %p539
        %p960 = pneg %p563
        %p961 = pneg %p560
        %p962 = pneg %p584
        %p963 = pneg %p581
        %p964 = pneg %p605
        %p965 = pneg %p602
        %p966 = pneg %p626
        %p967 = pneg %p623
        %p968 = pneg %p647
        %p969 = pneg %p644
        %p970 = pneg %p668
        %p971 = pneg %p665
        %p972 = pneg %p689
        %p973 = pneg %p686
        %p974 = pneg %p715
        %p975 = pneg %p712
        %p976 = scmp.lt.s32.totalorder %s80, 1
        %s977 = scalar_select %p976, %s80, 1
        %s978 = smul.addr %s977, 8
        %s979 = scalar_lea.vmem %s59, %s978
        %p980 = pneg %p741
        %p981 = pneg %p738
        %p982 = scmp.lt.s32.totalorder %s80, 1
        %s983 = scalar_select %p982, %s80, 1
        %s984 = smul.addr %s983, 4
        %s985 = scalar_lea.vmem %s61, %s984
        %p986 = pneg %p767
        %p987 = pneg %p764
        %p988 = scmp.lt.s32.totalorder %s80, 1
        %s989 = scalar_select %p988, %s80, 1
        %s990 = smul.addr %s989, 2
        %s991 = scalar_lea.vmem %s63, %s990
        %p992 = pneg %p793
        %p993 = pneg %p790
        %s994 = sand.u32 %s780, 1
        %s995 = scalar_lea.sflag [#allocation10], %s994
        %s996 = sand.u32 %s780, 1
        %s997 = scalar_lea.vmem [#allocation9], %s996
        %p998 = scmp.lt.s32.totalorder %s80, 1
        %s999 = scalar_select %p998, %s80, 1
        %s1000 = smul.addr %s999, 6
        %s1001 = smul.addr %s1000, 8
        %s1002 = scalar_lea.vmem %s1, %s1001
        %p1003 = scmp.lt.s32.totalorder %s80, 1
        %s1004 = scalar_select %p1003, %s80, 1
        %s1005 = smul.addr %s1004, 8
        %s1006 = scalar_lea.vmem %s59, %s1005
        %p1007 = scmp.lt.s32.totalorder %s80, 1
        %s1008 = scalar_select %p1007, %s80, 1
        %s1009 = smul.addr %s1008, 4
        %s1010 = scalar_lea.vmem %s61, %s1009
        %p1011 = scmp.lt.s32.totalorder %s80, 1
        %s1012 = scalar_select %p1011, %s80, 1
        %s1013 = smul.addr %s1012, 2
        %s1014 = scalar_lea.vmem %s63, %s1013
        %1015 = vst [vmem:[#allocation6] sm:$0xff] 0.0
        %vm1016 = vcmask 261120
        %1017 = vst.msk [vmem:[#allocation6 + $0x8] sm:$0xff] %vm1016, 0.0
        %1018 = vst [vmem:[#allocation6 + $0x10] sm:$0x3] 0.0
        %vm1019 = vcmask 254976
        %1020 = vst.msk [vmem:[#allocation6 + $0x18] sm:$0x3] %vm1019, 0.0
        %1021 = vst [vmem:[#allocation7] sm:$0x3f] 0.0
        %vm1022 = vcmask 521216
        %1023 = vst.msk [vmem:[#allocation7 + $0x8] sm:$0x3f] %vm1022, 0.0
        %1024 = vst [vmem:[#allocation8] sm:$0xff] 0.0
        %v1025 = vld [vmem:[%s1002] sm:$0xff]
        %v1026 = vld [vmem:[%s1002 + $0x10] sm:$0xff]
        %v1027 = vld [vmem:[%s3] sm:$0x1]
        %v1028 = vlaneseq
        %v1029 = vshrl.u32 %v1028, 7
        %v1030 = vsub.s32 0, %v1029
        %v1031 = vrot.slane %v1027, %v1030
        %v1032 = vmul.f32 %v1025, %v1031
        %v1033 = vmul.f32 %v1026, %v1031
        %v1034 = vadd.f32 %v1032, 0.0
        %v1035 = vadd.f32 %v1033, 0.0
        %v1036 = vld [vmem:[%s1002 + $0x8] sm:$0xff]
        %v1037 = vld [vmem:[%s1002 + $0x18] sm:$0xff]
        %v1038 = vld [vmem:[%s3 + $0x1] sm:$0x1]
        %v1039 = vlaneseq
        %v1040 = vshrl.u32 %v1039, 7
        %v1041 = vsub.s32 0, %v1040
        %v1042 = vrot.slane %v1038, %v1041
        %1044 = vrot.lane.b32.xlu0 %v1042, 8
        %v1045 = vpop.permute.xlu0 %1044
        %v1047 = vmul.f32 %v1025, %v1045
        %v1048 = vmul.f32 %v1036, %v1045
        %v1049 = vmul.f32 %v1026, %v1045
        %v1050 = vmul.f32 %v1037, %v1045
        %1055 = vrot.lane.b32.xlu0 %v1047, 120
        %v1056 = vpop.permute.xlu0 %1055
        %1057 = vrot.lane.b32.xlu0 %v1048, 120
        %v1058 = vpop.permute.xlu0 %1057
        %1059 = vrot.lane.b32.xlu0 %v1049, 120
        %v1060 = vpop.permute.xlu0 %1059
        %1061 = vrot.lane.b32.xlu0 %v1050, 120
        %v1062 = vpop.permute.xlu0 %1061
        %vm1063 = vcmask 982016
        %v1064 = vsel %vm1063, %v1056, %v1058
        %v1065 = vsel %vm1063, %v1060, %v1062
        %v1068 = vadd.f32 %v1034, %v1064
        %v1069 = vadd.f32 %v1035, %v1065
        %v1070 = vld [vmem:[%s3 + $0x2] sm:$0x1]
        %v1071 = vlaneseq
        %v1072 = vshrl.u32 %v1071, 7
        %v1073 = vsub.s32 0, %v1072
        %v1074 = vrot.slane %v1070, %v1073
        %1076 = vrot.lane.b32.xlu0 %v1074, 16
        %v1077 = vpop.permute.xlu0 %1076
        %v1079 = vmul.f32 %v1025, %v1077
        %v1080 = vmul.f32 %v1036, %v1077
        %v1081 = vmul.f32 %v1026, %v1077
        %v1082 = vmul.f32 %v1037, %v1077
        %1087 = vrot.lane.b32.xlu0 %v1079, 112
        %v1088 = vpop.permute.xlu0 %1087
        %1089 = vrot.lane.b32.xlu0 %v1080, 112
        %v1090 = vpop.permute.xlu0 %1089
        %1091 = vrot.lane.b32.xlu0 %v1081, 112
        %v1092 = vpop.permute.xlu0 %1091
        %1093 = vrot.lane.b32.xlu0 %v1082, 112
        %v1094 = vpop.permute.xlu0 %1093
        %vm1095 = vcmask 916480
        %v1096 = vsel %vm1095, %v1088, %v1090
        %v1097 = vsel %vm1095, %v1092, %v1094
        %v1100 = vadd.f32 %v1068, %v1096
        %v1101 = vadd.f32 %v1069, %v1097
        %v1102 = vld [vmem:[%s1002] sm:$0xfe]
        %v1103 = vld [vmem:[%s1002 + $0x20] sm:$0x1]
        %v1104 = vld [vmem:[%s3 + $0x3] sm:$0x1]
        %v1105 = vlaneseq
        %v1106 = vshrl.u32 %v1105, 7
        %v1107 = vsub.s32 0, %v1106
        %v1108 = vrot.slane %v1104, %v1107
        %v1109 = vmul.f32 %v1102, %v1108
        %v1110 = vmul.f32 %v1026, %v1108
        %v1111 = vmul.f32 %v1103, %v1108
        %vm1115 = vcmask 1046528
        %v1116 = vrot.slane %v1109, 1
        %v1117 = vrot.slane %v1110, 1
        %v1118 = vsel %vm1115, %v1116, %v1117
        %v1119 = vrot.slane %v1111, 1
        %v1120 = vsel %vm1115, %v1117, %v1119
        %v1123 = vadd.f32 %v1100, %v1118
        %v1124 = vadd.f32 %v1101, %v1120
        %v1125 = vld [vmem:[%s1002 + $0x8] sm:$0xfe]
        %v1126 = vld [vmem:[%s1002 + $0x28] sm:$0x1]
        %v1127 = vld [vmem:[%s3 + $0x4] sm:$0x1]
        %v1128 = vlaneseq
        %v1129 = vshrl.u32 %v1128, 7
        %v1130 = vsub.s32 0, %v1129
        %v1131 = vrot.slane %v1127, %v1130
        %1133 = vrot.lane.b32.xlu0 %v1131, 8
        %v1134 = vpop.permute.xlu0 %1133
        %v1136 = vmul.f32 %v1102, %v1134
        %v1137 = vmul.f32 %v1125, %v1134
        %v1138 = vmul.f32 %v1026, %v1134
        %v1139 = vmul.f32 %v1037, %v1134
        %v1140 = vmul.f32 %v1103, %v1134
        %v1141 = vmul.f32 %v1126, %v1134
        %v1148 = vrot.slane %v1136, 1
        %v1149 = vrot.slane %v1138, 1
        %v1150 = vsel %vm1115, %v1148, %v1149
        %v1151 = vrot.slane %v1137, 1
        %v1152 = vrot.slane %v1139, 1
        %v1153 = vsel %vm1115, %v1151, %v1152
        %v1154 = vrot.slane %v1140, 1
        %v1155 = vsel %vm1115, %v1149, %v1154
        %v1156 = vrot.slane %v1141, 1
        %v1157 = vsel %vm1115, %v1152, %v1156
        %1158 = vrot.lane.b32.xlu0 %v1150, 120
        %v1159 = vpop.permute.xlu0 %1158
        %1160 = vrot.lane.b32.xlu0 %v1153, 120
        %v1161 = vpop.permute.xlu0 %1160
        %1162 = vrot.lane.b32.xlu0 %v1155, 120
        %v1163 = vpop.permute.xlu0 %1162
        %1164 = vrot.lane.b32.xlu0 %v1157, 120
        %v1165 = vpop.permute.xlu0 %1164
        %v1166 = vsel %vm1063, %v1159, %v1161
        %v1167 = vsel %vm1063, %v1163, %v1165
        %v1170 = vadd.f32 %v1123, %v1166
        %v1171 = vadd.f32 %v1124, %v1167
        %v1172 = vld [vmem:[%s3 + $0x5] sm:$0x1]
        %v1173 = vlaneseq
        %v1174 = vshrl.u32 %v1173, 7
        %v1175 = vsub.s32 0, %v1174
        %v1176 = vrot.slane %v1172, %v1175
        %1178 = vrot.lane.b32.xlu0 %v1176, 16
        %v1179 = vpop.permute.xlu0 %1178
        %v1181 = vmul.f32 %v1102, %v1179
        %v1182 = vmul.f32 %v1125, %v1179
        %v1183 = vmul.f32 %v1026, %v1179
        %v1184 = vmul.f32 %v1037, %v1179
        %v1185 = vmul.f32 %v1103, %v1179
        %v1186 = vmul.f32 %v1126, %v1179
        %v1193 = vrot.slane %v1181, 1
        %v1194 = vrot.slane %v1183, 1
        %v1195 = vsel %vm1115, %v1193, %v1194
        %v1196 = vrot.slane %v1182, 1
        %v1197 = vrot.slane %v1184, 1
        %v1198 = vsel %vm1115, %v1196, %v1197
        %v1199 = vrot.slane %v1185, 1
        %v1200 = vsel %vm1115, %v1194, %v1199
        %v1201 = vrot.slane %v1186, 1
        %v1202 = vsel %vm1115, %v1197, %v1201
        %1203 = vrot.lane.b32.xlu0 %v1195, 112
        %v1204 = vpop.permute.xlu0 %1203
        %1205 = vrot.lane.b32.xlu0 %v1198, 112
        %v1206 = vpop.permute.xlu0 %1205
        %1207 = vrot.lane.b32.xlu0 %v1200, 112
        %v1208 = vpop.permute.xlu0 %1207
        %1209 = vrot.lane.b32.xlu0 %v1202, 112
        %v1210 = vpop.permute.xlu0 %1209
        %v1211 = vsel %vm1095, %v1204, %v1206
        %v1212 = vsel %vm1095, %v1208, %v1210
        %v1215 = vadd.f32 %v1170, %v1211
        %v1216 = vadd.f32 %v1171, %v1212
        %v1217 = vld [vmem:[%s1002] sm:$0xfc]
        %v1218 = vld [vmem:[%s1002 + $0x20] sm:$0x3]
        %v1219 = vld [vmem:[%s3 + $0x6] sm:$0x1]
        %v1220 = vlaneseq
        %v1221 = vshrl.u32 %v1220, 7
        %v1222 = vsub.s32 0, %v1221
        %v1223 = vrot.slane %v1219, %v1222
        %v1224 = vmul.f32 %v1217, %v1223
        %v1225 = vmul.f32 %v1026, %v1223
        %v1226 = vmul.f32 %v1218, %v1223
        %vm1230 = vcmask 1045504
        %v1231 = vrot.slane %v1224, 2
        %v1232 = vrot.slane %v1225, 2
        %v1233 = vsel %vm1230, %v1231, %v1232
        %v1234 = vrot.slane %v1226, 2
        %v1235 = vsel %vm1230, %v1232, %v1234
        %v1238 = vadd.f32 %v1215, %v1233
        %v1239 = vadd.f32 %v1216, %v1235
        %v1240 = vld [vmem:[%s1002 + $0x8] sm:$0xfc]
        %v1241 = vld [vmem:[%s1002 + $0x28] sm:$0x3]
        %v1242 = vld [vmem:[%s3 + $0x7] sm:$0x1]
        %v1243 = vlaneseq
        %v1244 = vshrl.u32 %v1243, 7
        %v1245 = vsub.s32 0, %v1244
        %v1246 = vrot.slane %v1242, %v1245
        %1248 = vrot.lane.b32.xlu0 %v1246, 8
        %v1249 = vpop.permute.xlu0 %1248
        %v1251 = vmul.f32 %v1217, %v1249
        %v1252 = vmul.f32 %v1240, %v1249
        %v1253 = vmul.f32 %v1026, %v1249
        %v1254 = vmul.f32 %v1037, %v1249
        %v1255 = vmul.f32 %v1218, %v1249
        %v1256 = vmul.f32 %v1241, %v1249
        %v1263 = vrot.slane %v1251, 2
        %v1264 = vrot.slane %v1253, 2
        %v1265 = vsel %vm1230, %v1263, %v1264
        %v1266 = vrot.slane %v1252, 2
        %v1267 = vrot.slane %v1254, 2
        %v1268 = vsel %vm1230, %v1266, %v1267
        %v1269 = vrot.slane %v1255, 2
        %v1270 = vsel %vm1230, %v1264, %v1269
        %v1271 = vrot.slane %v1256, 2
        %v1272 = vsel %vm1230, %v1267, %v1271
        %1273 = vrot.lane.b32.xlu0 %v1265, 120
        %v1274 = vpop.permute.xlu0 %1273
        %1275 = vrot.lane.b32.xlu0 %v1268, 120
        %v1276 = vpop.permute.xlu0 %1275
        %1277 = vrot.lane.b32.xlu0 %v1270, 120
        %v1278 = vpop.permute.xlu0 %1277
        %1279 = vrot.lane.b32.xlu0 %v1272, 120
        %v1280 = vpop.permute.xlu0 %1279
        %v1281 = vsel %vm1063, %v1274, %v1276
        %v1282 = vsel %vm1063, %v1278, %v1280
        %v1285 = vadd.f32 %v1238, %v1281
        %v1286 = vadd.f32 %v1239, %v1282
        %v1287 = vld [vmem:[%s3 + $0x8] sm:$0x1]
        %v1288 = vlaneseq
        %v1289 = vshrl.u32 %v1288, 7
        %v1290 = vsub.s32 0, %v1289
        %v1291 = vrot.slane %v1287, %v1290
        %1293 = vrot.lane.b32.xlu0 %v1291, 16
        %v1294 = vpop.permute.xlu0 %1293
        %v1296 = vmul.f32 %v1217, %v1294
        %v1297 = vmul.f32 %v1240, %v1294
        %v1298 = vmul.f32 %v1026, %v1294
        %v1299 = vmul.f32 %v1037, %v1294
        %v1300 = vmul.f32 %v1218, %v1294
        %v1301 = vmul.f32 %v1241, %v1294
        %v1308 = vrot.slane %v1296, 2
        %v1309 = vrot.slane %v1298, 2
        %v1310 = vsel %vm1230, %v1308, %v1309
        %v1311 = vrot.slane %v1297, 2
        %v1312 = vrot.slane %v1299, 2
        %v1313 = vsel %vm1230, %v1311, %v1312
        %v1314 = vrot.slane %v1300, 2
        %v1315 = vsel %vm1230, %v1309, %v1314
        %v1316 = vrot.slane %v1301, 2
        %v1317 = vsel %vm1230, %v1312, %v1316
        %1318 = vrot.lane.b32.xlu0 %v1310, 112
        %v1319 = vpop.permute.xlu0 %1318
        %1320 = vrot.lane.b32.xlu0 %v1313, 112
        %v1321 = vpop.permute.xlu0 %1320
        %1322 = vrot.lane.b32.xlu0 %v1315, 112
        %v1323 = vpop.permute.xlu0 %1322
        %1324 = vrot.lane.b32.xlu0 %v1317, 112
        %v1325 = vpop.permute.xlu0 %1324
        %v1326 = vsel %vm1095, %v1319, %v1321
        %v1327 = vsel %vm1095, %v1323, %v1325
        %v1330 = vadd.f32 %v1285, %v1326
        %v1331 = vadd.f32 %v1286, %v1327
        %v1332 = vld [vmem:[%s5] sm:$0x1]
        %v1334 = vlaneseq
        %v1335 = vshrl.u32 %v1334, 7
        %v1336 = vsub.s32 0, %v1335
        %v1337 = vrot.slane %v1332, %v1336
        %v1339 = vmul.f32 %v1330, %v1337
        %v1340 = vmul.f32 %v1331, %v1337
        %v1341 = vld [vmem:[%s7] sm:$0x1]
        %v1343 = vlaneseq
        %v1344 = vshrl.u32 %v1343, 7
        %v1345 = vsub.s32 0, %v1344
        %v1346 = vrot.slane %v1341, %v1345
        %v1348 = vadd.f32 %v1339, %v1346
        %v1349 = vadd.f32 %v1340, %v1346
        %v1350 = vmax.f32 %v1348, 0.0
        %v1351 = vmax.f32 %v1349, 0.0
        %v1352 = vmin.f32 %v1350, 6.0
        %v1353 = vmin.f32 %v1351, 6.0
        %v1354 = vld [vmem:[%s9] sm:$0xff]
        %v1355 = vld [vmem:[%s9 + $0x8] sm:$0xff]
        %v1356 = vld [vmem:[%s9 + $0x10] sm:$0xff]
        %v1357 = vld [vmem:[%s9 + $0x18] sm:$0xff]
        %v1358 = vld [vmem:[%s9 + $0x20] sm:$0xff]
        %v1359 = vld [vmem:[%s9 + $0x28] sm:$0xff]
        %v1360 = vld [vmem:[%s9 + $0x30] sm:$0xff]
        %v1361 = vld [vmem:[%s9 + $0x38] sm:$0xff]
        %v1362 = vld [vmem:[%s9 + $0x40] sm:$0xff]
        %v1363 = vld [vmem:[%s9 + $0x48] sm:$0xff]
        %v1364 = vld [vmem:[%s9 + $0x50] sm:$0xff]
        %v1365 = vld [vmem:[%s9 + $0x58] sm:$0xff]
        %v1366 = vld [vmem:[%s9 + $0x60] sm:$0xff]
        %v1367 = vld [vmem:[%s9 + $0x68] sm:$0xff]
        %v1368 = vld [vmem:[%s9 + $0x70] sm:$0xff]
        %v1369 = vld [vmem:[%s9 + $0x78] sm:$0xff]
        %1370 = vmatprep.subr.mxu0 0.0
        %1371 = vmatpush1.msra.mxu0 %v1354
        %1372 = vmatprep.subr.mxu0 0.0
        %1373 = vmatpush1.msra.mxu0 %v1355
        %1374 = vmatprep.subr.mxu0 0.0
        %1375 = vmatpush1.msra.mxu0 %v1356
        %1376 = vmatprep.subr.mxu0 0.0
        %1377 = vmatpush1.msra.mxu0 %v1357
        %1378 = vmatprep.subr.mxu0 0.0
        %1379 = vmatpush1.msra.mxu0 %v1358
        %1380 = vmatprep.subr.mxu0 0.0
        %1381 = vmatpush1.msra.mxu0 %v1359
        %1382 = vmatprep.subr.mxu0 0.0
        %1383 = vmatpush1.msra.mxu0 %v1360
        %1384 = vmatprep.subr.mxu0 0.0
        %1385 = vmatpush1.msra.mxu0 %v1361
        %1386 = vmatprep.subr.mxu0 0.0
        %1387 = vmatpush1.msra.mxu0 %v1362
        %1388 = vmatprep.subr.mxu0 0.0
        %1389 = vmatpush1.msra.mxu0 %v1363
        %1390 = vmatprep.subr.mxu0 0.0
        %1391 = vmatpush1.msra.mxu0 %v1364
        %1392 = vmatprep.subr.mxu0 0.0
        %1393 = vmatpush1.msra.mxu0 %v1365
        %1394 = vmatprep.subr.mxu0 0.0
        %1395 = vmatpush1.msra.mxu0 %v1366
        %1396 = vmatprep.subr.mxu0 0.0
        %1397 = vmatpush1.msra.mxu0 %v1367
        %1398 = vmatprep.subr.mxu0 0.0
        %1399 = vmatpush1.msra.mxu0 %v1368
        %1400 = vmatprep.subr.mxu0 0.0
        %1401 = vmatpush1.msra.mxu0 %v1369
        %1402 = vmatprep.subr.mxu0 0.0
        %1403 = vmatpush1.msra.mxu0 0.0
        %1404 = vmatprep.subr.mxu0 0.0
        %1405 = vmatpush1.msra.mxu0 0.0
        %1406 = vmatprep.subr.mxu0 0.0
        %1407 = vmatpush1.msra.mxu0 0.0
        %1408 = vmatprep.subr.mxu0 0.0
        %1409 = vmatpush1.msra.mxu0 0.0
        %1410 = vmatprep.subr.mxu0 0.0
        %1411 = vmatpush1.msra.mxu0 0.0
        %1412 = vmatprep.subr.mxu0 0.0
        %1413 = vmatpush1.msra.mxu0 0.0
        %1414 = vmatprep.subr.mxu0 0.0
        %1415 = vmatpush1.msra.mxu0 0.0
        %1416 = vmatprep.subr.mxu0 0.0
        %1417 = vmatpush1.msra.mxu0 0.0
        %1418 = vmatprep.subr.mxu0 0.0
        %1419 = vmatpush1.msra.mxu0 0.0
        %1420 = vmatprep.subr.mxu0 0.0
        %1421 = vmatpush1.msra.mxu0 0.0
        %1422 = vmatprep.subr.mxu0 0.0
        %1423 = vmatpush1.msra.mxu0 0.0
        %1424 = vmatprep.subr.mxu0 0.0
        %1425 = vmatpush1.msra.mxu0 0.0
        %1426 = vmatprep.subr.mxu0 0.0
        %1427 = vmatpush1.msra.mxu0 0.0
        %1428 = vmatprep.subr.mxu0 0.0
        %1429 = vmatpush1.msra.mxu0 0.0
        %1430 = vmatprep.subr.mxu0 0.0
        %1431 = vmatpush1.msra.mxu0 0.0
        %1432 = vmatprep.subr.mxu0 0.0
        %1433 = vmatpush1.msra.mxu0 0.0
        %1434 = vmatprep.mubr.f32.mxu0 0.0
        %1435 = vmatmul.mubr.f32.gmra.mrb[0].mxu0 %v1352
        %v1436 = vpop.f32.mrb[0].mxu0
        %v1437 = vadd.f32 0.0, %v1436
        %v1438 = vpop.f32.mrb[0].mxu0
        %1439 = vmatprep.mubr.f32.mxu0 0.0
        %1440 = vmatmul.mubr.f32.gmra.mrb[0].mxu0 %v1353
        %v1441 = vpop.f32.mrb[0].mxu0
        %v1442 = vadd.f32 0.0, %v1441
        %v1443 = vpop.f32.mrb[0].mxu0
        %1444 = vdwg.mxu0
        %v1445 = vld [vmem:[%s11] sm:$0xff]
        %v1446 = vld [vmem:[%s11 + $0x8] sm:$0xff]
        %v1447 = vld [vmem:[%s11 + $0x10] sm:$0xff]
        %v1448 = vld [vmem:[%s11 + $0x18] sm:$0xff]
        %v1449 = vld [vmem:[%s11 + $0x20] sm:$0xff]
        %v1450 = vld [vmem:[%s11 + $0x28] sm:$0xff]
        %v1451 = vld [vmem:[%s11 + $0x30] sm:$0xff]
        %v1452 = vld [vmem:[%s11 + $0x38] sm:$0xff]
        %v1453 = vld [vmem:[%s11 + $0x40] sm:$0xff]
        %v1454 = vld [vmem:[%s11 + $0x48] sm:$0xff]
        %v1455 = vld [vmem:[%s11 + $0x50] sm:$0xff]
        %v1456 = vld [vmem:[%s11 + $0x58] sm:$0xff]
        %v1457 = vld [vmem:[%s11 + $0x60] sm:$0xff]
        %v1458 = vld [vmem:[%s11 + $0x68] sm:$0xff]
        %v1459 = vld [vmem:[%s11 + $0x70] sm:$0xff]
        %v1460 = vld [vmem:[%s11 + $0x78] sm:$0xff]
        %1461 = vmatprep.subr.mxu0 0.0
        %1462 = vmatpush1.msra.mxu0 %v1445
        %1463 = vmatprep.subr.mxu0 0.0
        %1464 = vmatpush1.msra.mxu0 %v1446
        %1465 = vmatprep.subr.mxu0 0.0
        %1466 = vmatpush1.msra.mxu0 %v1447
        %1467 = vmatprep.subr.mxu0 0.0
        %1468 = vmatpush1.msra.mxu0 %v1448
        %1469 = vmatprep.subr.mxu0 0.0
        %1470 = vmatpush1.msra.mxu0 %v1449
        %1471 = vmatprep.subr.mxu0 0.0
        %1472 = vmatpush1.msra.mxu0 %v1450
        %1473 = vmatprep.subr.mxu0 0.0
        %1474 = vmatpush1.msra.mxu0 %v1451
        %1475 = vmatprep.subr.mxu0 0.0
        %1476 = vmatpush1.msra.mxu0 %v1452
        %1477 = vmatprep.subr.mxu0 0.0
        %1478 = vmatpush1.msra.mxu0 %v1453
        %1479 = vmatprep.subr.mxu0 0.0
        %1480 = vmatpush1.msra.mxu0 %v1454
        %1481 = vmatprep.subr.mxu0 0.0
        %1482 = vmatpush1.msra.mxu0 %v1455
        %1483 = vmatprep.subr.mxu0 0.0
        %1484 = vmatpush1.msra.mxu0 %v1456
        %1485 = vmatprep.subr.mxu0 0.0
        %1486 = vmatpush1.msra.mxu0 %v1457
        %1487 = vmatprep.subr.mxu0 0.0
        %1488 = vmatpush1.msra.mxu0 %v1458
        %1489 = vmatprep.subr.mxu0 0.0
        %1490 = vmatpush1.msra.mxu0 %v1459
        %1491 = vmatprep.subr.mxu0 0.0
        %1492 = vmatpush1.msra.mxu0 %v1460
        %1493 = vmatprep.subr.mxu0 0.0
        %1494 = vmatpush1.msra.mxu0 0.0
        %1495 = vmatprep.subr.mxu0 0.0
        %1496 = vmatpush1.msra.mxu0 0.0
        %1497 = vmatprep.subr.mxu0 0.0
        %1498 = vmatpush1.msra.mxu0 0.0
        %1499 = vmatprep.subr.mxu0 0.0
        %1500 = vmatpush1.msra.mxu0 0.0
        %1501 = vmatprep.subr.mxu0 0.0
        %1502 = vmatpush1.msra.mxu0 0.0
        %1503 = vmatprep.subr.mxu0 0.0
        %1504 = vmatpush1.msra.mxu0 0.0
        %1505 = vmatprep.subr.mxu0 0.0
        %1506 = vmatpush1.msra.mxu0 0.0
        %1507 = vmatprep.subr.mxu0 0.0
        %1508 = vmatpush1.msra.mxu0 0.0
        %1509 = vmatprep.subr.mxu0 0.0
        %1510 = vmatpush1.msra.mxu0 0.0
        %1511 = vmatprep.subr.mxu0 0.0
        %1512 = vmatpush1.msra.mxu0 0.0
        %1513 = vmatprep.subr.mxu0 0.0
        %1514 = vmatpush1.msra.mxu0 0.0
        %1515 = vmatprep.subr.mxu0 0.0
        %1516 = vmatpush1.msra.mxu0 0.0
        %1517 = vmatprep.subr.mxu0 0.0
        %1518 = vmatpush1.msra.mxu0 0.0
        %1519 = vmatprep.subr.mxu0 0.0
        %1520 = vmatpush1.msra.mxu0 0.0
        %1521 = vmatprep.subr.mxu0 0.0
        %1522 = vmatpush1.msra.mxu0 0.0
        %1523 = vmatprep.subr.mxu0 0.0
        %1524 = vmatpush1.msra.mxu0 0.0
        %1525 = vmatprep.mubr.f32.mxu0 0.0
        %1526 = vmatmul.mubr.f32.gmra.mrb[0].mxu0 %v1352
        %v1527 = vpop.f32.mrb[0].mxu0
        %v1528 = vadd.f32 0.0, %v1527
        %v1529 = vpop.f32.mrb[0].mxu0
        %1530 = vmatprep.mubr.f32.mxu0 0.0
        %1531 = vmatmul.mubr.f32.gmra.mrb[0].mxu0 %v1353
        %v1532 = vpop.f32.mrb[0].mxu0
        %v1533 = vadd.f32 0.0, %v1532
        %v1534 = vpop.f32.mrb[0].mxu0
        %1535 = vdwg.mxu0
        %v1536 = vld [vmem:[%s13] sm:$0x1]
        %v1538 = vlaneseq
        %v1539 = vshrl.u32 %v1538, 7
        %v1540 = vsub.s32 0, %v1539
        %v1541 = vrot.slane %v1536, %v1540
        %v1543 = vmul.f32 %v1437, %v1541
        %v1544 = vmul.f32 %v1442, %v1541
        %v1545 = vld [vmem:[%s15] sm:$0x1]
        %v1547 = vlaneseq
        %v1548 = vshrl.u32 %v1547, 7
        %v1549 = vsub.s32 0, %v1548
        %v1550 = vrot.slane %v1545, %v1549
        %v1552 = vadd.f32 %v1543, %v1550
        %v1553 = vadd.f32 %v1544, %v1550
        %v1554 = vmul.f32 %v1528, %v1541
        %v1555 = vmul.f32 %v1533, %v1541
        %v1556 = vadd.f32 %v1554, %v1550
        %v1557 = vadd.f32 %v1555, %v1550
        %v1558 = vmax.f32 %v1552, %v1556
        %v1559 = vmax.f32 %v1553, %v1557
        %1560 = vst [vmem:[#allocation2] sm:$0xff] %v1558
        %1561 = vst [vmem:[#allocation2 + $0x8] sm:$0xff] %v1559
        %v1562 = vld [vmem:[#allocation2] ss:$2 sm:$0xff]
        %s1563 = scalar_lea.vmem [#allocation2], 1
        %v1564 = vld [vmem:[%s1563] ss:$2 sm:$0xff]
        %v1565 = vmax.f32 %v1562, %v1564
        %1566 = vst [vmem:[%s1006] sm:$0xff] %v1565
        %v1568 = vrot.slane %v1565, 7
        %1569 = vrot.lane.b32.xlu0 %v1568, 16
        %v1570 = vpop.permute.xlu0 %1569
        %vm1572 = vcmask 1047681
        %1573 = vst.msk [vmem:[#allocation6] sm:$0xfe] %vm1572, %v1570
        %vm1574 = vcmask 130049
        %1575 = vst.msk [vmem:[#allocation6 + $0x8] sm:$0xfe] %vm1574, %v1570
        %vm1576 = vcmask 1040512
        %1577 = vst.msk [vmem:[#allocation6 + $0x10] sm:$0x1] %vm1576, %v1570
        %vm1578 = vcmask 122880
        %1579 = vst.msk [vmem:[#allocation6 + $0x18] sm:$0x1] %vm1578, %v1570
        %v1580 = vld [vmem:[#allocation6] sm:$0xff]
        %v1581 = vld [vmem:[%s17] sm:$0x1]
        %v1582 = vlaneseq
        %v1583 = vshrl.u32 %v1582, 7
        %v1584 = vsub.s32 0, %v1583
        %v1585 = vrot.slane %v1581, %v1584
        %v1586 = vmul.f32 %v1580, %v1585
        %v1587 = vadd.f32 %v1586, 0.0
        %v1588 = vld [vmem:[#allocation6 + $0x8] sm:$0xff]
        %v1589 = vld [vmem:[%s17 + $0x1] sm:$0x1]
        %v1590 = vlaneseq
        %v1591 = vshrl.u32 %v1590, 7
        %v1592 = vsub.s32 0, %v1591
        %v1593 = vrot.slane %v1589, %v1592
        %1595 = vrot.lane.b32.xlu0 %v1593, 16
        %v1596 = vpop.permute.xlu0 %1595
        %v1598 = vmul.f32 %v1580, %v1596
        %v1599 = vmul.f32 %v1588, %v1596
        %1602 = vrot.lane.b32.xlu0 %v1598, 112
        %v1603 = vpop.permute.xlu0 %1602
        %1604 = vrot.lane.b32.xlu0 %v1599, 112
        %v1605 = vpop.permute.xlu0 %1604
        %v1606 = vsel %vm1095, %v1603, %v1605
        %v1608 = vadd.f32 %v1587, %v1606
        %v1609 = vld [vmem:[%s17 + $0x2] sm:$0x1]
        %v1610 = vlaneseq
        %v1611 = vshrl.u32 %v1610, 7
        %v1612 = vsub.s32 0, %v1611
        %v1613 = vrot.slane %v1609, %v1612
        %1615 = vrot.lane.b32.xlu0 %v1613, 32
        %v1616 = vpop.permute.xlu0 %1615
        %v1618 = vmul.f32 %v1580, %v1616
        %v1619 = vmul.f32 %v1588, %v1616
        %1622 = vrot.lane.b32.xlu0 %v1618, 96
        %v1623 = vpop.permute.xlu0 %1622
        %1624 = vrot.lane.b32.xlu0 %v1619, 96
        %v1625 = vpop.permute.xlu0 %1624
        %vm1626 = vcmask 785408
        %v1627 = vsel %vm1626, %v1623, %v1625
        %v1629 = vadd.f32 %v1608, %v1627
        %v1630 = vld [vmem:[#allocation6] sm:$0xfe]
        %v1631 = vld [vmem:[#allocation6 + $0x10] sm:$0x1]
        %v1632 = vld [vmem:[%s17 + $0x3] sm:$0x1]
        %v1633 = vlaneseq
        %v1634 = vshrl.u32 %v1633, 7
        %v1635 = vsub.s32 0, %v1634
        %v1636 = vrot.slane %v1632, %v1635
        %v1637 = vmul.f32 %v1630, %v1636
        %v1638 = vmul.f32 %v1631, %v1636
        %v1641 = vrot.slane %v1637, 1
        %v1642 = vrot.slane %v1638, 1
        %v1643 = vsel %vm1115, %v1641, %v1642
        %v1645 = vadd.f32 %v1629, %v1643
        %v1646 = vld [vmem:[#allocation6 + $0x8] sm:$0xfe]
        %v1647 = vld [vmem:[#allocation6 + $0x18] sm:$0x1]
        %v1648 = vld [vmem:[%s17 + $0x4] sm:$0x1]
        %v1649 = vlaneseq
        %v1650 = vshrl.u32 %v1649, 7
        %v1651 = vsub.s32 0, %v1650
        %v1652 = vrot.slane %v1648, %v1651
        %1654 = vrot.lane.b32.xlu0 %v1652, 16
        %v1655 = vpop.permute.xlu0 %1654
        %v1657 = vmul.f32 %v1630, %v1655
        %v1658 = vmul.f32 %v1646, %v1655
        %v1659 = vmul.f32 %v1631, %v1655
        %v1660 = vmul.f32 %v1647, %v1655
        %v1665 = vrot.slane %v1657, 1
        %v1666 = vrot.slane %v1659, 1
        %v1667 = vsel %vm1115, %v1665, %v1666
        %v1668 = vrot.slane %v1658, 1
        %v1669 = vrot.slane %v1660, 1
        %v1670 = vsel %vm1115, %v1668, %v1669
        %1671 = vrot.lane.b32.xlu0 %v1667, 112
        %v1672 = vpop.permute.xlu0 %1671
        %1673 = vrot.lane.b32.xlu0 %v1670, 112
        %v1674 = vpop.permute.xlu0 %1673
        %v1675 = vsel %vm1095, %v1672, %v1674
        %v1677 = vadd.f32 %v1645, %v1675
        %v1678 = vld [vmem:[%s17 + $0x5] sm:$0x1]
        %v1679 = vlaneseq
        %v1680 = vshrl.u32 %v1679, 7
        %v1681 = vsub.s32 0, %v1680
        %v1682 = vrot.slane %v1678, %v1681
        %1684 = vrot.lane.b32.xlu0 %v1682, 32
        %v1685 = vpop.permute.xlu0 %1684
        %v1687 = vmul.f32 %v1630, %v1685
        %v1688 = vmul.f32 %v1646, %v1685
        %v1689 = vmul.f32 %v1631, %v1685
        %v1690 = vmul.f32 %v1647, %v1685
        %v1695 = vrot.slane %v1687, 1
        %v1696 = vrot.slane %v1689, 1
        %v1697 = vsel %vm1115, %v1695, %v1696
        %v1698 = vrot.slane %v1688, 1
        %v1699 = vrot.slane %v1690, 1
        %v1700 = vsel %vm1115, %v1698, %v1699
        %1701 = vrot.lane.b32.xlu0 %v1697, 96
        %v1702 = vpop.permute.xlu0 %1701
        %1703 = vrot.lane.b32.xlu0 %v1700, 96
        %v1704 = vpop.permute.xlu0 %1703
        %v1705 = vsel %vm1626, %v1702, %v1704
        %v1707 = vadd.f32 %v1677, %v1705
        %v1708 = vld [vmem:[#allocation6] sm:$0xfc]
        %v1709 = vld [vmem:[#allocation6 + $0x10] sm:$0x3]
        %v1710 = vld [vmem:[%s17 + $0x6] sm:$0x1]
        %v1711 = vlaneseq
        %v1712 = vshrl.u32 %v1711, 7
        %v1713 = vsub.s32 0, %v1712
        %v1714 = vrot.slane %v1710, %v1713
        %v1715 = vmul.f32 %v1708, %v1714
        %v1716 = vmul.f32 %v1709, %v1714
        %v1719 = vrot.slane %v1715, 2
        %v1720 = vrot.slane %v1716, 2
        %v1721 = vsel %vm1230, %v1719, %v1720
        %v1723 = vadd.f32 %v1707, %v1721
        %v1724 = vld [vmem:[#allocation6 + $0x8] sm:$0xfc]
        %v1725 = vld [vmem:[#allocation6 + $0x18] sm:$0x3]
        %v1726 = vld [vmem:[%s17 + $0x7] sm:$0x1]
        %v1727 = vlaneseq
        %v1728 = vshrl.u32 %v1727, 7
        %v1729 = vsub.s32 0, %v1728
        %v1730 = vrot.slane %v1726, %v1729
        %1732 = vrot.lane.b32.xlu0 %v1730, 16
        %v1733 = vpop.permute.xlu0 %1732
        %v1735 = vmul.f32 %v1708, %v1733
        %v1736 = vmul.f32 %v1724, %v1733
        %v1737 = vmul.f32 %v1709, %v1733
        %v1738 = vmul.f32 %v1725, %v1733
        %v1743 = vrot.slane %v1735, 2
        %v1744 = vrot.slane %v1737, 2
        %v1745 = vsel %vm1230, %v1743, %v1744
        %v1746 = vrot.slane %v1736, 2
        %v1747 = vrot.slane %v1738, 2
        %v1748 = vsel %vm1230, %v1746, %v1747
        %1749 = vrot.lane.b32.xlu0 %v1745, 112
        %v1750 = vpop.permute.xlu0 %1749
        %1751 = vrot.lane.b32.xlu0 %v1748, 112
        %v1752 = vpop.permute.xlu0 %1751
        %v1753 = vsel %vm1095, %v1750, %v1752
        %v1755 = vadd.f32 %v1723, %v1753
        %v1756 = vld [vmem:[%s17 + $0x8] sm:$0x1]
        %v1757 = vlaneseq
        %v1758 = vshrl.u32 %v1757, 7
        %v1759 = vsub.s32 0, %v1758
        %v1760 = vrot.slane %v1756, %v1759
        %1762 = vrot.lane.b32.xlu0 %v1760, 32
        %v1763 = vpop.permute.xlu0 %1762
        %v1765 = vmul.f32 %v1708, %v1763
        %v1766 = vmul.f32 %v1724, %v1763
        %v1767 = vmul.f32 %v1709, %v1763
        %v1768 = vmul.f32 %v1725, %v1763
        %v1773 = vrot.slane %v1765, 2
        %v1774 = vrot.slane %v1767, 2
        %v1775 = vsel %vm1230, %v1773, %v1774
        %v1776 = vrot.slane %v1766, 2
        %v1777 = vrot.slane %v1768, 2
        %v1778 = vsel %vm1230, %v1776, %v1777
        %1779 = vrot.lane.b32.xlu0 %v1775, 96
        %v1780 = vpop.permute.xlu0 %1779
        %1781 = vrot.lane.b32.xlu0 %v1778, 96
        %v1782 = vpop.permute.xlu0 %1781
        %v1783 = vsel %vm1626, %v1780, %v1782
        %v1785 = vadd.f32 %v1755, %v1783
        %v1786 = vld [vmem:[%s19] sm:$0x1]
        %v1788 = vlaneseq
        %v1789 = vshrl.u32 %v1788, 7
        %v1790 = vsub.s32 0, %v1789
        %v1791 = vrot.slane %v1786, %v1790
        %v1793 = vmul.f32 %v1785, %v1791
        %v1794 = vld [vmem:[%s21] sm:$0x1]
        %v1796 = vlaneseq
        %v1797 = vshrl.u32 %v1796, 7
        %v1798 = vsub.s32 0, %v1797
        %v1799 = vrot.slane %v1794, %v1798
        %v1801 = vadd.f32 %v1793, %v1799
        %v1802 = vmax.f32 %v1801, 0.0
        %v1803 = vmin.f32 %v1802, 6.0
        %v1804 = vld [vmem:[%s23] sm:$0xff]
        %v1805 = vld [vmem:[%s23 + $0x8] sm:$0xff]
        %v1806 = vld [vmem:[%s23 + $0x10] sm:$0xff]
        %v1807 = vld [vmem:[%s23 + $0x18] sm:$0xff]
        %v1808 = vld [vmem:[%s23 + $0x20] sm:$0xff]
        %v1809 = vld [vmem:[%s23 + $0x28] sm:$0xff]
        %v1810 = vld [vmem:[%s23 + $0x30] sm:$0xff]
        %v1811 = vld [vmem:[%s23 + $0x38] sm:$0xff]
        %v1812 = vld [vmem:[%s23 + $0x40] sm:$0xff]
        %v1813 = vld [vmem:[%s23 + $0x48] sm:$0xff]
        %v1814 = vld [vmem:[%s23 + $0x50] sm:$0xff]
        %v1815 = vld [vmem:[%s23 + $0x58] sm:$0xff]
        %v1816 = vld [vmem:[%s23 + $0x60] sm:$0xff]
        %v1817 = vld [vmem:[%s23 + $0x68] sm:$0xff]
        %v1818 = vld [vmem:[%s23 + $0x70] sm:$0xff]
        %v1819 = vld [vmem:[%s23 + $0x78] sm:$0xff]
        %1820 = vmatprep.subr.mxu0 0.0
        %1821 = vmatpush1.msra.mxu0 %v1804
        %1822 = vmatprep.subr.mxu0 0.0
        %1823 = vmatpush1.msra.mxu0 %v1805
        %1824 = vmatprep.subr.mxu0 0.0
        %1825 = vmatpush1.msra.mxu0 %v1806
        %1826 = vmatprep.subr.mxu0 0.0
        %1827 = vmatpush1.msra.mxu0 %v1807
        %1828 = vmatprep.subr.mxu0 0.0
        %1829 = vmatpush1.msra.mxu0 %v1808
        %1830 = vmatprep.subr.mxu0 0.0
        %1831 = vmatpush1.msra.mxu0 %v1809
        %1832 = vmatprep.subr.mxu0 0.0
        %1833 = vmatpush1.msra.mxu0 %v1810
        %1834 = vmatprep.subr.mxu0 0.0
        %1835 = vmatpush1.msra.mxu0 %v1811
        %1836 = vmatprep.subr.mxu0 0.0
        %1837 = vmatpush1.msra.mxu0 %v1812
        %1838 = vmatprep.subr.mxu0 0.0
        %1839 = vmatpush1.msra.mxu0 %v1813
        %1840 = vmatprep.subr.mxu0 0.0
        %1841 = vmatpush1.msra.mxu0 %v1814
        %1842 = vmatprep.subr.mxu0 0.0
        %1843 = vmatpush1.msra.mxu0 %v1815
        %1844 = vmatprep.subr.mxu0 0.0
        %1845 = vmatpush1.msra.mxu0 %v1816
        %1846 = vmatprep.subr.mxu0 0.0
        %1847 = vmatpush1.msra.mxu0 %v1817
        %1848 = vmatprep.subr.mxu0 0.0
        %1849 = vmatpush1.msra.mxu0 %v1818
        %1850 = vmatprep.subr.mxu0 0.0
        %1851 = vmatpush1.msra.mxu0 %v1819
        %1852 = vmatprep.subr.mxu0 0.0
        %1853 = vmatpush1.msra.mxu0 0.0
        %1854 = vmatprep.subr.mxu0 0.0
        %1855 = vmatpush1.msra.mxu0 0.0
        %1856 = vmatprep.subr.mxu0 0.0
        %1857 = vmatpush1.msra.mxu0 0.0
        %1858 = vmatprep.subr.mxu0 0.0
        %1859 = vmatpush1.msra.mxu0 0.0
        %1860 = vmatprep.subr.mxu0 0.0
        %1861 = vmatpush1.msra.mxu0 0.0
        %1862 = vmatprep.subr.mxu0 0.0
        %1863 = vmatpush1.msra.mxu0 0.0
        %1864 = vmatprep.subr.mxu0 0.0
        %1865 = vmatpush1.msra.mxu0 0.0
        %1866 = vmatprep.subr.mxu0 0.0
        %1867 = vmatpush1.msra.mxu0 0.0
        %1868 = vmatprep.subr.mxu0 0.0
        %1869 = vmatpush1.msra.mxu0 0.0
        %1870 = vmatprep.subr.mxu0 0.0
        %1871 = vmatpush1.msra.mxu0 0.0
        %1872 = vmatprep.subr.mxu0 0.0
        %1873 = vmatpush1.msra.mxu0 0.0
        %1874 = vmatprep.subr.mxu0 0.0
        %1875 = vmatpush1.msra.mxu0 0.0
        %1876 = vmatprep.subr.mxu0 0.0
        %1877 = vmatpush1.msra.mxu0 0.0
        %1878 = vmatprep.subr.mxu0 0.0
        %1879 = vmatpush1.msra.mxu0 0.0
        %1880 = vmatprep.subr.mxu0 0.0
        %1881 = vmatpush1.msra.mxu0 0.0
        %1882 = vmatprep.subr.mxu0 0.0
        %1883 = vmatpush1.msra.mxu0 0.0
        %1884 = vmatprep.mubr.f32.mxu0 0.0
        %1885 = vmatmul.mubr.f32.gmra.mrb[0].mxu0 %v1803
        %v1886 = vpop.f32.mrb[0].mxu0
        %v1887 = vadd.f32 0.0, %v1886
        %v1888 = vpop.f32.mrb[0].mxu0
        %1889 = vdwg.mxu0
        %v1890 = vld [vmem:[%s25] sm:$0xff]
        %v1891 = vld [vmem:[%s25 + $0x8] sm:$0xff]
        %v1892 = vld [vmem:[%s25 + $0x10] sm:$0xff]
        %v1893 = vld [vmem:[%s25 + $0x18] sm:$0xff]
        %v1894 = vld [vmem:[%s25 + $0x20] sm:$0xff]
        %v1895 = vld [vmem:[%s25 + $0x28] sm:$0xff]
        %v1896 = vld [vmem:[%s25 + $0x30] sm:$0xff]
        %v1897 = vld [vmem:[%s25 + $0x38] sm:$0xff]
        %v1898 = vld [vmem:[%s25 + $0x40] sm:$0xff]
        %v1899 = vld [vmem:[%s25 + $0x48] sm:$0xff]
        %v1900 = vld [vmem:[%s25 + $0x50] sm:$0xff]
        %v1901 = vld [vmem:[%s25 + $0x58] sm:$0xff]
        %v1902 = vld [vmem:[%s25 + $0x60] sm:$0xff]
        %v1903 = vld [vmem:[%s25 + $0x68] sm:$0xff]
        %v1904 = vld [vmem:[%s25 + $0x70] sm:$0xff]
        %v1905 = vld [vmem:[%s25 + $0x78] sm:$0xff]
        %1906 = vmatprep.subr.mxu0 0.0
        %1907 = vmatpush1.msra.mxu0 %v1890
        %1908 = vmatprep.subr.mxu0 0.0
        %1909 = vmatpush1.msra.mxu0 %v1891
        %1910 = vmatprep.subr.mxu0 0.0
        %1911 = vmatpush1.msra.mxu0 %v1892
        %1912 = vmatprep.subr.mxu0 0.0
        %1913 = vmatpush1.msra.mxu0 %v1893
        %1914 = vmatprep.subr.mxu0 0.0
        %1915 = vmatpush1.msra.mxu0 %v1894
        %1916 = vmatprep.subr.mxu0 0.0
        %1917 = vmatpush1.msra.mxu0 %v1895
        %1918 = vmatprep.subr.mxu0 0.0
        %1919 = vmatpush1.msra.mxu0 %v1896
        %1920 = vmatprep.subr.mxu0 0.0
        %1921 = vmatpush1.msra.mxu0 %v1897
        %1922 = vmatprep.subr.mxu0 0.0
        %1923 = vmatpush1.msra.mxu0 %v1898
        %1924 = vmatprep.subr.mxu0 0.0
        %1925 = vmatpush1.msra.mxu0 %v1899
        %1926 = vmatprep.subr.mxu0 0.0
        %1927 = vmatpush1.msra.mxu0 %v1900
        %1928 = vmatprep.subr.mxu0 0.0
        %1929 = vmatpush1.msra.mxu0 %v1901
        %1930 = vmatprep.subr.mxu0 0.0
        %1931 = vmatpush1.msra.mxu0 %v1902
        %1932 = vmatprep.subr.mxu0 0.0
        %1933 = vmatpush1.msra.mxu0 %v1903
        %1934 = vmatprep.subr.mxu0 0.0
        %1935 = vmatpush1.msra.mxu0 %v1904
        %1936 = vmatprep.subr.mxu0 0.0
        %1937 = vmatpush1.msra.mxu0 %v1905
        %1938 = vmatprep.subr.mxu0 0.0
        %1939 = vmatpush1.msra.mxu0 0.0
        %1940 = vmatprep.subr.mxu0 0.0
        %1941 = vmatpush1.msra.mxu0 0.0
        %1942 = vmatprep.subr.mxu0 0.0
        %1943 = vmatpush1.msra.mxu0 0.0
        %1944 = vmatprep.subr.mxu0 0.0
        %1945 = vmatpush1.msra.mxu0 0.0
        %1946 = vmatprep.subr.mxu0 0.0
        %1947 = vmatpush1.msra.mxu0 0.0
        %1948 = vmatprep.subr.mxu0 0.0
        %1949 = vmatpush1.msra.mxu0 0.0
        %1950 = vmatprep.subr.mxu0 0.0
        %1951 = vmatpush1.msra.mxu0 0.0
        %1952 = vmatprep.subr.mxu0 0.0
        %1953 = vmatpush1.msra.mxu0 0.0
        %1954 = vmatprep.subr.mxu0 0.0
        %1955 = vmatpush1.msra.mxu0 0.0
        %1956 = vmatprep.subr.mxu0 0.0
        %1957 = vmatpush1.msra.mxu0 0.0
        %1958 = vmatprep.subr.mxu0 0.0
        %1959 = vmatpush1.msra.mxu0 0.0
        %1960 = vmatprep.subr.mxu0 0.0
        %1961 = vmatpush1.msra.mxu0 0.0
        %1962 = vmatprep.subr.mxu0 0.0
        %1963 = vmatpush1.msra.mxu0 0.0
        %1964 = vmatprep.subr.mxu0 0.0
        %1965 = vmatpush1.msra.mxu0 0.0
        %1966 = vmatprep.subr.mxu0 0.0
        %1967 = vmatpush1.msra.mxu0 0.0
        %1968 = vmatprep.subr.mxu0 0.0
        %1969 = vmatpush1.msra.mxu0 0.0
        %1970 = vmatprep.mubr.f32.mxu0 0.0
        %1971 = vmatmul.mubr.f32.gmra.mrb[0].mxu0 %v1803
        %v1972 = vpop.f32.mrb[0].mxu0
        %v1973 = vadd.f32 0.0, %v1972
        %v1974 = vpop.f32.mrb[0].mxu0
        %1975 = vdwg.mxu0
        %v1976 = vld [vmem:[%s27] sm:$0x1]
        %v1978 = vlaneseq
        %v1979 = vshrl.u32 %v1978, 7
        %v1980 = vsub.s32 0, %v1979
        %v1981 = vrot.slane %v1976, %v1980
        %v1983 = vmul.f32 %v1887, %v1981
        %v1984 = vld [vmem:[%s29] sm:$0x1]
        %v1986 = vlaneseq
        %v1987 = vshrl.u32 %v1986, 7
        %v1988 = vsub.s32 0, %v1987
        %v1989 = vrot.slane %v1984, %v1988
        %v1991 = vadd.f32 %v1983, %v1989
        %v1992 = vmul.f32 %v1973, %v1981
        %v1993 = vadd.f32 %v1992, %v1989
        %v1994 = vmax.f32 %v1991, %v1993
        %1995 = vst [vmem:[#allocation3] sm:$0xff] %v1994
        %v1996 = vld [vmem:[#allocation3] ss:$2 sm:$0xf]
        %s1997 = scalar_lea.vmem [#allocation3], 1
        %v1998 = vld [vmem:[%s1997] ss:$2 sm:$0xf]
        %v1999 = vmax.f32 %v1996, %v1998
        %2000 = vst [vmem:[%s1010] sm:$0xf] %v1999
        %v2002 = vrot.slane %v1999, 7
        %2003 = vrot.lane.b32.xlu0 %v2002, 32
        %v2004 = vpop.permute.xlu0 %2003
        %vm2006 = vcmask 1044737
        %2007 = vst.msk [vmem:[#allocation7] sm:$0x1e] %vm2006, %v2004
        %vm2008 = vcmask 258049
        %2009 = vst.msk [vmem:[#allocation7 + $0x8] sm:$0x1e] %vm2008, %v2004
        %v2010 = vld [vmem:[#allocation7] sm:$0xf]
        %v2011 = vld [vmem:[%s31] sm:$0x1]
        %v2012 = vlaneseq
        %v2013 = vshrl.u32 %v2012, 7
        %v2014 = vsub.s32 0, %v2013
        %v2015 = vrot.slane %v2011, %v2014
        %v2016 = vmul.f32 %v2010, %v2015
        %v2017 = vadd.f32 %v2016, 0.0
        %v2018 = vld [vmem:[#allocation7 + $0x8] sm:$0xf]
        %v2019 = vld [vmem:[%s31 + $0x1] sm:$0x1]
        %v2020 = vlaneseq
        %v2021 = vshrl.u32 %v2020, 7
        %v2022 = vsub.s32 0, %v2021
        %v2023 = vrot.slane %v2019, %v2022
        %2025 = vrot.lane.b32.xlu0 %v2023, 32
        %v2026 = vpop.permute.xlu0 %2025
        %v2028 = vmul.f32 %v2010, %v2026
        %v2029 = vmul.f32 %v2018, %v2026
        %2032 = vrot.lane.b32.xlu0 %v2028, 96
        %v2033 = vpop.permute.xlu0 %2032
        %2034 = vrot.lane.b32.xlu0 %v2029, 96
        %v2035 = vpop.permute.xlu0 %2034
        %v2036 = vsel %vm1626, %v2033, %v2035
        %v2038 = vadd.f32 %v2017, %v2036
        %v2039 = vld [vmem:[%s31 + $0x2] sm:$0x1]
        %v2040 = vlaneseq
        %v2041 = vshrl.u32 %v2040, 7
        %v2042 = vsub.s32 0, %v2041
        %v2043 = vrot.slane %v2039, %v2042
        %2045 = vrot.lane.b32.xlu0 %v2043, 64
        %v2046 = vpop.permute.xlu0 %2045
        %v2048 = vmul.f32 %v2010, %v2046
        %v2049 = vmul.f32 %v2018, %v2046
        %2052 = vrot.lane.b32.xlu0 %v2048, 64
        %v2053 = vpop.permute.xlu0 %2052
        %2054 = vrot.lane.b32.xlu0 %v2049, 64
        %v2055 = vpop.permute.xlu0 %2054
        %vm2056 = vcmask 523264
        %v2057 = vsel %vm2056, %v2053, %v2055
        %v2059 = vadd.f32 %v2038, %v2057
        %v2060 = vld [vmem:[#allocation7] sm:$0x1e]
        %v2061 = vld [vmem:[%s31 + $0x3] sm:$0x1]
        %v2062 = vlaneseq
        %v2063 = vshrl.u32 %v2062, 7
        %v2064 = vsub.s32 0, %v2063
        %v2065 = vrot.slane %v2061, %v2064
        %v2066 = vmul.f32 %v2060, %v2065
        %v2068 = vrot.slane %v2066, 1
        %v2070 = vadd.f32 %v2059, %v2068
        %v2071 = vld [vmem:[#allocation7 + $0x8] sm:$0x1e]
        %v2072 = vld [vmem:[%s31 + $0x4] sm:$0x1]
        %v2073 = vlaneseq
        %v2074 = vshrl.u32 %v2073, 7
        %v2075 = vsub.s32 0, %v2074
        %v2076 = vrot.slane %v2072, %v2075
        %2078 = vrot.lane.b32.xlu0 %v2076, 32
        %v2079 = vpop.permute.xlu0 %2078
        %v2081 = vmul.f32 %v2060, %v2079
        %v2082 = vmul.f32 %v2071, %v2079
        %v2085 = vrot.slane %v2081, 1
        %v2086 = vrot.slane %v2082, 1
        %2087 = vrot.lane.b32.xlu0 %v2085, 96
        %v2088 = vpop.permute.xlu0 %2087
        %2089 = vrot.lane.b32.xlu0 %v2086, 96
        %v2090 = vpop.permute.xlu0 %2089
        %v2091 = vsel %vm1626, %v2088, %v2090
        %v2093 = vadd.f32 %v2070, %v2091
        %v2094 = vld [vmem:[%s31 + $0x5] sm:$0x1]
        %v2095 = vlaneseq
        %v2096 = vshrl.u32 %v2095, 7
        %v2097 = vsub.s32 0, %v2096
        %v2098 = vrot.slane %v2094, %v2097
        %2100 = vrot.lane.b32.xlu0 %v2098, 64
        %v2101 = vpop.permute.xlu0 %2100
        %v2103 = vmul.f32 %v2060, %v2101
        %v2104 = vmul.f32 %v2071, %v2101
        %v2107 = vrot.slane %v2103, 1
        %v2108 = vrot.slane %v2104, 1
        %2109 = vrot.lane.b32.xlu0 %v2107, 64
        %v2110 = vpop.permute.xlu0 %2109
        %2111 = vrot.lane.b32.xlu0 %v2108, 64
        %v2112 = vpop.permute.xlu0 %2111
        %v2113 = vsel %vm2056, %v2110, %v2112
        %v2115 = vadd.f32 %v2093, %v2113
        %v2116 = vld [vmem:[#allocation7] sm:$0x3c]
        %v2117 = vld [vmem:[%s31 + $0x6] sm:$0x1]
        %v2118 = vlaneseq
        %v2119 = vshrl.u32 %v2118, 7
        %v2120 = vsub.s32 0, %v2119
        %v2121 = vrot.slane %v2117, %v2120
        %v2122 = vmul.f32 %v2116, %v2121
        %v2124 = vrot.slane %v2122, 2
        %v2126 = vadd.f32 %v2115, %v2124
        %v2127 = vld [vmem:[#allocation7 + $0x8] sm:$0x3c]
        %v2128 = vld [vmem:[%s31 + $0x7] sm:$0x1]
        %v2129 = vlaneseq
        %v2130 = vshrl.u32 %v2129, 7
        %v2131 = vsub.s32 0, %v2130
        %v2132 = vrot.slane %v2128, %v2131
        %2134 = vrot.lane.b32.xlu0 %v2132, 32
        %v2135 = vpop.permute.xlu0 %2134
        %v2137 = vmul.f32 %v2116, %v2135
        %v2138 = vmul.f32 %v2127, %v2135
        %v2141 = vrot.slane %v2137, 2
        %v2142 = vrot.slane %v2138, 2
        %2143 = vrot.lane.b32.xlu0 %v2141, 96
        %v2144 = vpop.permute.xlu0 %2143
        %2145 = vrot.lane.b32.xlu0 %v2142, 96
        %v2146 = vpop.permute.xlu0 %2145
        %v2147 = vsel %vm1626, %v2144, %v2146
        %v2149 = vadd.f32 %v2126, %v2147
        %v2150 = vld [vmem:[%s31 + $0x8] sm:$0x1]
        %v2151 = vlaneseq
        %v2152 = vshrl.u32 %v2151, 7
        %v2153 = vsub.s32 0, %v2152
        %v2154 = vrot.slane %v2150, %v2153
        %2156 = vrot.lane.b32.xlu0 %v2154, 64
        %v2157 = vpop.permute.xlu0 %2156
        %v2159 = vmul.f32 %v2116, %v2157
        %v2160 = vmul.f32 %v2127, %v2157
        %v2163 = vrot.slane %v2159, 2
        %v2164 = vrot.slane %v2160, 2
        %2165 = vrot.lane.b32.xlu0 %v2163, 64
        %v2166 = vpop.permute.xlu0 %2165
        %2167 = vrot.lane.b32.xlu0 %v2164, 64
        %v2168 = vpop.permute.xlu0 %2167
        %v2169 = vsel %vm2056, %v2166, %v2168
        %v2171 = vadd.f32 %v2149, %v2169
        %v2172 = vld [vmem:[%s33] sm:$0x1]
        %v2174 = vlaneseq
        %v2175 = vshrl.u32 %v2174, 7
        %v2176 = vsub.s32 0, %v2175
        %v2177 = vrot.slane %v2172, %v2176
        %v2179 = vmul.f32 %v2171, %v2177
        %v2180 = vld [vmem:[%s35] sm:$0x1]
        %v2182 = vlaneseq
        %v2183 = vshrl.u32 %v2182, 7
        %v2184 = vsub.s32 0, %v2183
        %v2185 = vrot.slane %v2180, %v2184
        %v2187 = vadd.f32 %v2179, %v2185
        %v2188 = vmax.f32 %v2187, 0.0
        %v2189 = vmin.f32 %v2188, 6.0
        %v2190 = vld [vmem:[%s37] sm:$0xff]
        %v2191 = vld [vmem:[%s37 + $0x8] sm:$0xff]
        %v2192 = vld [vmem:[%s37 + $0x10] sm:$0xff]
        %v2193 = vld [vmem:[%s37 + $0x18] sm:$0xff]
        %v2194 = vld [vmem:[%s37 + $0x20] sm:$0xff]
        %v2195 = vld [vmem:[%s37 + $0x28] sm:$0xff]
        %v2196 = vld [vmem:[%s37 + $0x30] sm:$0xff]
        %v2197 = vld [vmem:[%s37 + $0x38] sm:$0xff]
        %v2198 = vld [vmem:[%s37 + $0x40] sm:$0xff]
        %v2199 = vld [vmem:[%s37 + $0x48] sm:$0xff]
        %v2200 = vld [vmem:[%s37 + $0x50] sm:$0xff]
        %v2201 = vld [vmem:[%s37 + $0x58] sm:$0xff]
        %v2202 = vld [vmem:[%s37 + $0x60] sm:$0xff]
        %v2203 = vld [vmem:[%s37 + $0x68] sm:$0xff]
        %v2204 = vld [vmem:[%s37 + $0x70] sm:$0xff]
        %v2205 = vld [vmem:[%s37 + $0x78] sm:$0xff]
        %2206 = vmatprep.subr.mxu0 0.0
        %2207 = vmatpush1.msra.mxu0 %v2190
        %2208 = vmatprep.subr.mxu0 0.0
        %2209 = vmatpush1.msra.mxu0 %v2191
        %2210 = vmatprep.subr.mxu0 0.0
        %2211 = vmatpush1.msra.mxu0 %v2192
        %2212 = vmatprep.subr.mxu0 0.0
        %2213 = vmatpush1.msra.mxu0 %v2193
        %2214 = vmatprep.subr.mxu0 0.0
        %2215 = vmatpush1.msra.mxu0 %v2194
        %2216 = vmatprep.subr.mxu0 0.0
        %2217 = vmatpush1.msra.mxu0 %v2195
        %2218 = vmatprep.subr.mxu0 0.0
        %2219 = vmatpush1.msra.mxu0 %v2196
        %2220 = vmatprep.subr.mxu0 0.0
        %2221 = vmatpush1.msra.mxu0 %v2197
        %2222 = vmatprep.subr.mxu0 0.0
        %2223 = vmatpush1.msra.mxu0 %v2198
        %2224 = vmatprep.subr.mxu0 0.0
        %2225 = vmatpush1.msra.mxu0 %v2199
        %2226 = vmatprep.subr.mxu0 0.0
        %2227 = vmatpush1.msra.mxu0 %v2200
        %2228 = vmatprep.subr.mxu0 0.0
        %2229 = vmatpush1.msra.mxu0 %v2201
        %2230 = vmatprep.subr.mxu0 0.0
        %2231 = vmatpush1.msra.mxu0 %v2202
        %2232 = vmatprep.subr.mxu0 0.0
        %2233 = vmatpush1.msra.mxu0 %v2203
        %2234 = vmatprep.subr.mxu0 0.0
        %2235 = vmatpush1.msra.mxu0 %v2204
        %2236 = vmatprep.subr.mxu0 0.0
        %2237 = vmatpush1.msra.mxu0 %v2205
        %2238 = vmatprep.subr.mxu0 0.0
        %2239 = vmatpush1.msra.mxu0 0.0
        %2240 = vmatprep.subr.mxu0 0.0
        %2241 = vmatpush1.msra.mxu0 0.0
        %2242 = vmatprep.subr.mxu0 0.0
        %2243 = vmatpush1.msra.mxu0 0.0
        %2244 = vmatprep.subr.mxu0 0.0
        %2245 = vmatpush1.msra.mxu0 0.0
        %2246 = vmatprep.subr.mxu0 0.0
        %2247 = vmatpush1.msra.mxu0 0.0
        %2248 = vmatprep.subr.mxu0 0.0
        %2249 = vmatpush1.msra.mxu0 0.0
        %2250 = vmatprep.subr.mxu0 0.0
        %2251 = vmatpush1.msra.mxu0 0.0
        %2252 = vmatprep.subr.mxu0 0.0
        %2253 = vmatpush1.msra.mxu0 0.0
        %2254 = vmatprep.subr.mxu0 0.0
        %2255 = vmatpush1.msra.mxu0 0.0
        %2256 = vmatprep.subr.mxu0 0.0
        %2257 = vmatpush1.msra.mxu0 0.0
        %2258 = vmatprep.subr.mxu0 0.0
        %2259 = vmatpush1.msra.mxu0 0.0
        %2260 = vmatprep.subr.mxu0 0.0
        %2261 = vmatpush1.msra.mxu0 0.0
        %2262 = vmatprep.subr.mxu0 0.0
        %2263 = vmatpush1.msra.mxu0 0.0
        %2264 = vmatprep.subr.mxu0 0.0
        %2265 = vmatpush1.msra.mxu0 0.0
        %2266 = vmatprep.subr.mxu0 0.0
        %2267 = vmatpush1.msra.mxu0 0.0
        %2268 = vmatprep.subr.mxu0 0.0
        %2269 = vmatpush1.msra.mxu0 0.0
        %2270 = vmatprep.mubr.f32.mxu0 0.0
        %2271 = vmatmul.mubr.f32.gmra.mrb[0].mxu0 %v2189
        %v2272 = vpop.f32.mrb[0].mxu0
        %v2273 = vadd.f32 0.0, %v2272
        %v2274 = vpop.f32.mrb[0].mxu0
        %2275 = vdwg.mxu0
        %v2276 = vld [vmem:[%s39] sm:$0xff]
        %v2277 = vld [vmem:[%s39 + $0x8] sm:$0xff]
        %v2278 = vld [vmem:[%s39 + $0x10] sm:$0xff]
        %v2279 = vld [vmem:[%s39 + $0x18] sm:$0xff]
        %v2280 = vld [vmem:[%s39 + $0x20] sm:$0xff]
        %v2281 = vld [vmem:[%s39 + $0x28] sm:$0xff]
        %v2282 = vld [vmem:[%s39 + $0x30] sm:$0xff]
        %v2283 = vld [vmem:[%s39 + $0x38] sm:$0xff]
        %v2284 = vld [vmem:[%s39 + $0x40] sm:$0xff]
        %v2285 = vld [vmem:[%s39 + $0x48] sm:$0xff]
        %v2286 = vld [vmem:[%s39 + $0x50] sm:$0xff]
        %v2287 = vld [vmem:[%s39 + $0x58] sm:$0xff]
        %v2288 = vld [vmem:[%s39 + $0x60] sm:$0xff]
        %v2289 = vld [vmem:[%s39 + $0x68] sm:$0xff]
        %v2290 = vld [vmem:[%s39 + $0x70] sm:$0xff]
        %v2291 = vld [vmem:[%s39 + $0x78] sm:$0xff]
        %2292 = vmatprep.subr.mxu0 0.0
        %2293 = vmatpush1.msra.mxu0 %v2276
        %2294 = vmatprep.subr.mxu0 0.0
        %2295 = vmatpush1.msra.mxu0 %v2277
        %2296 = vmatprep.subr.mxu0 0.0
        %2297 = vmatpush1.msra.mxu0 %v2278
        %2298 = vmatprep.subr.mxu0 0.0
        %2299 = vmatpush1.msra.mxu0 %v2279
        %2300 = vmatprep.subr.mxu0 0.0
        %2301 = vmatpush1.msra.mxu0 %v2280
        %2302 = vmatprep.subr.mxu0 0.0
        %2303 = vmatpush1.msra.mxu0 %v2281
        %2304 = vmatprep.subr.mxu0 0.0
        %2305 = vmatpush1.msra.mxu0 %v2282
        %2306 = vmatprep.subr.mxu0 0.0
        %2307 = vmatpush1.msra.mxu0 %v2283
        %2308 = vmatprep.subr.mxu0 0.0
        %2309 = vmatpush1.msra.mxu0 %v2284
        %2310 = vmatprep.subr.mxu0 0.0
        %2311 = vmatpush1.msra.mxu0 %v2285
        %2312 = vmatprep.subr.mxu0 0.0
        %2313 = vmatpush1.msra.mxu0 %v2286
        %2314 = vmatprep.subr.mxu0 0.0
        %2315 = vmatpush1.msra.mxu0 %v2287
        %2316 = vmatprep.subr.mxu0 0.0
        %2317 = vmatpush1.msra.mxu0 %v2288
        %2318 = vmatprep.subr.mxu0 0.0
        %2319 = vmatpush1.msra.mxu0 %v2289
        %2320 = vmatprep.subr.mxu0 0.0
        %2321 = vmatpush1.msra.mxu0 %v2290
        %2322 = vmatprep.subr.mxu0 0.0
        %2323 = vmatpush1.msra.mxu0 %v2291
        %2324 = vmatprep.subr.mxu0 0.0
        %2325 = vmatpush1.msra.mxu0 0.0
        %2326 = vmatprep.subr.mxu0 0.0
        %2327 = vmatpush1.msra.mxu0 0.0
        %2328 = vmatprep.subr.mxu0 0.0
        %2329 = vmatpush1.msra.mxu0 0.0
        %2330 = vmatprep.subr.mxu0 0.0
        %2331 = vmatpush1.msra.mxu0 0.0
        %2332 = vmatprep.subr.mxu0 0.0
        %2333 = vmatpush1.msra.mxu0 0.0
        %2334 = vmatprep.subr.mxu0 0.0
        %2335 = vmatpush1.msra.mxu0 0.0
        %2336 = vmatprep.subr.mxu0 0.0
        %2337 = vmatpush1.msra.mxu0 0.0
        %2338 = vmatprep.subr.mxu0 0.0
        %2339 = vmatpush1.msra.mxu0 0.0
        %2340 = vmatprep.subr.mxu0 0.0
        %2341 = vmatpush1.msra.mxu0 0.0
        %2342 = vmatprep.subr.mxu0 0.0
        %2343 = vmatpush1.msra.mxu0 0.0
        %2344 = vmatprep.subr.mxu0 0.0
        %2345 = vmatpush1.msra.mxu0 0.0
        %2346 = vmatprep.subr.mxu0 0.0
        %2347 = vmatpush1.msra.mxu0 0.0
        %2348 = vmatprep.subr.mxu0 0.0
        %2349 = vmatpush1.msra.mxu0 0.0
        %2350 = vmatprep.subr.mxu0 0.0
        %2351 = vmatpush1.msra.mxu0 0.0
        %2352 = vmatprep.subr.mxu0 0.0
        %2353 = vmatpush1.msra.mxu0 0.0
        %2354 = vmatprep.subr.mxu0 0.0
        %2355 = vmatpush1.msra.mxu0 0.0
        %2356 = vmatprep.mubr.f32.mxu0 0.0
        %2357 = vmatmul.mubr.f32.gmra.mrb[0].mxu0 %v2189
        %v2358 = vpop.f32.mrb[0].mxu0
        %v2359 = vadd.f32 0.0, %v2358
        %v2360 = vpop.f32.mrb[0].mxu0
        %2361 = vdwg.mxu0
        %v2362 = vld [vmem:[%s41] sm:$0x1]
        %v2364 = vlaneseq
        %v2365 = vshrl.u32 %v2364, 7
        %v2366 = vsub.s32 0, %v2365
        %v2367 = vrot.slane %v2362, %v2366
        %v2369 = vmul.f32 %v2273, %v2367
        %v2370 = vld [vmem:[%s43] sm:$0x1]
        %v2372 = vlaneseq
        %v2373 = vshrl.u32 %v2372, 7
        %v2374 = vsub.s32 0, %v2373
        %v2375 = vrot.slane %v2370, %v2374
        %v2377 = vadd.f32 %v2369, %v2375
        %v2378 = vmul.f32 %v2359, %v2367
        %v2379 = vadd.f32 %v2378, %v2375
        %v2380 = vmax.f32 %v2377, %v2379
        %2381 = vst [vmem:[#allocation4] sm:$0xf] %v2380
        %v2382 = vld [vmem:[#allocation4] ss:$2 sm:$0x3]
        %s2383 = scalar_lea.vmem [#allocation4], 1
        %v2384 = vld [vmem:[%s2383] ss:$2 sm:$0x3]
        %v2385 = vmax.f32 %v2382, %v2384
        %2386 = vst [vmem:[%s1014] sm:$0x3] %v2385
        %v2388 = vrot.slane %v2385, 7
        %2389 = vrot.lane.b32.xlu0 %v2388, 64
        %v2390 = vpop.permute.xlu0 %2389
        %v2391 = vrot.slane %v2390, 4
        %v2392 = vsel %vm2056, %v2391, %v2390
        %vm2394 = vcmask 1042945
        %vm2395 = vcmask 522245
        %vm2396 = vmor %vm2395, %vm2394
        %2397 = vst.msk [vmem:[#allocation8] sm:$0x66] %vm2396, %v2392
        %v2398 = vld [vmem:[#allocation8] sm:$0x3]
        %v2399 = vld [vmem:[%s45] sm:$0x1]
        %v2400 = vlaneseq
        %v2401 = vshrl.u32 %v2400, 7
        %v2402 = vsub.s32 0, %v2401
        %v2403 = vrot.slane %v2399, %v2402
        %v2404 = vmul.f32 %v2398, %v2403
        %v2405 = vadd.f32 %v2404, 0.0
        %v2406 = vld [vmem:[#allocation8] sm:$0x33]
        %v2407 = vld [vmem:[%s45 + $0x1] sm:$0x1]
        %v2408 = vlaneseq
        %v2409 = vshrl.u32 %v2408, 7
        %v2410 = vsub.s32 0, %v2409
        %v2411 = vrot.slane %v2407, %v2410
        %2413 = vrot.lane.b32.xlu0 %v2411, 64
        %v2414 = vpop.permute.xlu0 %2413
        %v2415 = vrot.slane %v2414, 4
        %v2416 = vsel %vm2056, %v2415, %v2414
        %v2418 = vmul.f32 %v2406, %v2416
        %2420 = vrot.lane.b32.xlu0 %v2418, 64
        %v2421 = vpop.permute.xlu0 %2420
        %v2422 = vrot.slane %v2421, 4
        %v2423 = vsel %vm2056, %v2421, %v2422
        %v2425 = vadd.f32 %v2405, %v2423
        %v2426 = vld [vmem:[#allocation8 + $0x4] sm:$0x3]
        %v2427 = vld [vmem:[%s45 + $0x2] sm:$0x1]
        %v2428 = vlaneseq
        %v2429 = vshrl.u32 %v2428, 7
        %v2430 = vsub.s32 0, %v2429
        %v2431 = vrot.slane %v2427, %v2430
        %v2432 = vmul.f32 %v2426, %v2431
        %v2433 = vadd.f32 %v2425, %v2432
        %v2434 = vld [vmem:[#allocation8] sm:$0x6]
        %v2435 = vld [vmem:[%s45 + $0x3] sm:$0x1]
        %v2436 = vlaneseq
        %v2437 = vshrl.u32 %v2436, 7
        %v2438 = vsub.s32 0, %v2437
        %v2439 = vrot.slane %v2435, %v2438
        %v2440 = vmul.f32 %v2434, %v2439
        %v2442 = vrot.slane %v2440, 5
        %v2443 = vrot.slane %v2442, 4
        %v2445 = vadd.f32 %v2433, %v2443
        %v2446 = vld [vmem:[#allocation8] sm:$0x66]
        %v2447 = vld [vmem:[%s45 + $0x4] sm:$0x1]
        %v2448 = vlaneseq
        %v2449 = vshrl.u32 %v2448, 7
        %v2450 = vsub.s32 0, %v2449
        %v2451 = vrot.slane %v2447, %v2450
        %v2453 = vrot.slane %v2451, 7
        %2454 = vrot.lane.b32.xlu0 %v2453, 64
        %v2455 = vpop.permute.xlu0 %2454
        %v2456 = vrot.slane %v2455, 4
        %v2457 = vsel %vm2056, %v2456, %v2455
        %v2459 = vmul.f32 %v2446, %v2457
        %v2461 = vrot.slane %v2459, 5
        %v2462 = vrot.slane %v2461, 4
        %2463 = vrot.lane.b32.xlu0 %v2462, 64
        %v2464 = vpop.permute.xlu0 %2463
        %v2465 = vrot.slane %v2464, 4
        %v2466 = vsel %vm2056, %v2464, %v2465
        %v2468 = vadd.f32 %v2445, %v2466
        %v2469 = vld [vmem:[#allocation8 + $0x4] sm:$0x6]
        %v2470 = vld [vmem:[%s45 + $0x5] sm:$0x1]
        %v2471 = vlaneseq
        %v2472 = vshrl.u32 %v2471, 7
        %v2473 = vsub.s32 0, %v2472
        %v2474 = vrot.slane %v2470, %v2473
        %v2475 = vmul.f32 %v2469, %v2474
        %v2477 = vrot.slane %v2475, 5
        %v2478 = vrot.slane %v2477, 4
        %v2480 = vadd.f32 %v2468, %v2478
        %v2481 = vld [vmem:[#allocation8] sm:$0xc]
        %v2482 = vld [vmem:[%s45 + $0x6] sm:$0x1]
        %v2483 = vlaneseq
        %v2484 = vshrl.u32 %v2483, 7
        %v2485 = vsub.s32 0, %v2484
        %v2486 = vrot.slane %v2482, %v2485
        %v2487 = vmul.f32 %v2481, %v2486
        %v2489 = vrot.slane %v2487, 6
        %v2490 = vrot.slane %v2489, 4
        %v2492 = vadd.f32 %v2480, %v2490
        %v2493 = vld [vmem:[#allocation8] sm:$0xcc]
        %v2494 = vld [vmem:[%s45 + $0x7] sm:$0x1]
        %v2495 = vlaneseq
        %v2496 = vshrl.u32 %v2495, 7
        %v2497 = vsub.s32 0, %v2496
        %v2498 = vrot.slane %v2494, %v2497
        %v2500 = vrot.slane %v2498, 6
        %2501 = vrot.lane.b32.xlu0 %v2500, 64
        %v2502 = vpop.permute.xlu0 %2501
        %v2503 = vrot.slane %v2502, 4
        %v2504 = vsel %vm2056, %v2503, %v2502
        %v2506 = vmul.f32 %v2493, %v2504
        %v2508 = vrot.slane %v2506, 6
        %v2509 = vrot.slane %v2508, 4
        %2510 = vrot.lane.b32.xlu0 %v2509, 64
        %v2511 = vpop.permute.xlu0 %2510
        %v2512 = vrot.slane %v2511, 4
        %v2513 = vsel %vm2056, %v2511, %v2512
        %v2515 = vadd.f32 %v2492, %v2513
        %v2516 = vld [vmem:[#allocation8 + $0x4] sm:$0xc]
        %v2517 = vld [vmem:[%s45 + $0x8] sm:$0x1]
        %v2518 = vlaneseq
        %v2519 = vshrl.u32 %v2518, 7
        %v2520 = vsub.s32 0, %v2519
        %v2521 = vrot.slane %v2517, %v2520
        %v2522 = vmul.f32 %v2516, %v2521
        %v2524 = vrot.slane %v2522, 6
        %v2525 = vrot.slane %v2524, 4
        %v2527 = vadd.f32 %v2515, %v2525
        %v2528 = vld [vmem:[%s47] sm:$0x1]
        %v2530 = vlaneseq
        %v2531 = vshrl.u32 %v2530, 7
        %v2532 = vsub.s32 0, %v2531
        %v2533 = vrot.slane %v2528, %v2532
        %v2535 = vmul.f32 %v2527, %v2533
        %v2536 = vld [vmem:[%s49] sm:$0x1]
        %v2538 = vlaneseq
        %v2539 = vshrl.u32 %v2538, 7
        %v2540 = vsub.s32 0, %v2539
        %v2541 = vrot.slane %v2536, %v2540
        %v2543 = vadd.f32 %v2535, %v2541
        %v2544 = vmax.f32 %v2543, 0.0
        %v2545 = vmin.f32 %v2544, 6.0
        %v2546 = vld [vmem:[%s51] sm:$0xff]
        %v2547 = vld [vmem:[%s51 + $0x8] sm:$0xff]
        %v2548 = vld [vmem:[%s51 + $0x10] sm:$0xff]
        %v2549 = vld [vmem:[%s51 + $0x18] sm:$0xff]
        %v2550 = vld [vmem:[%s51 + $0x20] sm:$0xff]
        %v2551 = vld [vmem:[%s51 + $0x28] sm:$0xff]
        %v2552 = vld [vmem:[%s51 + $0x30] sm:$0xff]
        %v2553 = vld [vmem:[%s51 + $0x38] sm:$0xff]
        %v2554 = vld [vmem:[%s51 + $0x40] sm:$0xff]
        %v2555 = vld [vmem:[%s51 + $0x48] sm:$0xff]
        %v2556 = vld [vmem:[%s51 + $0x50] sm:$0xff]
        %v2557 = vld [vmem:[%s51 + $0x58] sm:$0xff]
        %v2558 = vld [vmem:[%s51 + $0x60] sm:$0xff]
        %v2559 = vld [vmem:[%s51 + $0x68] sm:$0xff]
        %v2560 = vld [vmem:[%s51 + $0x70] sm:$0xff]
        %v2561 = vld [vmem:[%s51 + $0x78] sm:$0xff]
        %2562 = vmatprep.subr.mxu0 0.0
        %2563 = vmatpush1.msra.mxu0 %v2546
        %2564 = vmatprep.subr.mxu0 0.0
        %2565 = vmatpush1.msra.mxu0 %v2547
        %2566 = vmatprep.subr.mxu0 0.0
        %2567 = vmatpush1.msra.mxu0 %v2548
        %2568 = vmatprep.subr.mxu0 0.0
        %2569 = vmatpush1.msra.mxu0 %v2549
        %2570 = vmatprep.subr.mxu0 0.0
        %2571 = vmatpush1.msra.mxu0 %v2550
        %2572 = vmatprep.subr.mxu0 0.0
        %2573 = vmatpush1.msra.mxu0 %v2551
        %2574 = vmatprep.subr.mxu0 0.0
        %2575 = vmatpush1.msra.mxu0 %v2552
        %2576 = vmatprep.subr.mxu0 0.0
        %2577 = vmatpush1.msra.mxu0 %v2553
        %2578 = vmatprep.subr.mxu0 0.0
        %2579 = vmatpush1.msra.mxu0 %v2554
        %2580 = vmatprep.subr.mxu0 0.0
        %2581 = vmatpush1.msra.mxu0 %v2555
        %2582 = vmatprep.subr.mxu0 0.0
        %2583 = vmatpush1.msra.mxu0 %v2556
        %2584 = vmatprep.subr.mxu0 0.0
        %2585 = vmatpush1.msra.mxu0 %v2557
        %2586 = vmatprep.subr.mxu0 0.0
        %2587 = vmatpush1.msra.mxu0 %v2558
        %2588 = vmatprep.subr.mxu0 0.0
        %2589 = vmatpush1.msra.mxu0 %v2559
        %2590 = vmatprep.subr.mxu0 0.0
        %2591 = vmatpush1.msra.mxu0 %v2560
        %2592 = vmatprep.subr.mxu0 0.0
        %2593 = vmatpush1.msra.mxu0 %v2561
        %2594 = vmatprep.subr.mxu0 0.0
        %2595 = vmatpush1.msra.mxu0 0.0
        %2596 = vmatprep.subr.mxu0 0.0
        %2597 = vmatpush1.msra.mxu0 0.0
        %2598 = vmatprep.subr.mxu0 0.0
        %2599 = vmatpush1.msra.mxu0 0.0
        %2600 = vmatprep.subr.mxu0 0.0
        %2601 = vmatpush1.msra.mxu0 0.0
        %2602 = vmatprep.subr.mxu0 0.0
        %2603 = vmatpush1.msra.mxu0 0.0
        %2604 = vmatprep.subr.mxu0 0.0
        %2605 = vmatpush1.msra.mxu0 0.0
        %2606 = vmatprep.subr.mxu0 0.0
        %2607 = vmatpush1.msra.mxu0 0.0
        %2608 = vmatprep.subr.mxu0 0.0
        %2609 = vmatpush1.msra.mxu0 0.0
        %2610 = vmatprep.subr.mxu0 0.0
        %2611 = vmatpush1.msra.mxu0 0.0
        %2612 = vmatprep.subr.mxu0 0.0
        %2613 = vmatpush1.msra.mxu0 0.0
        %2614 = vmatprep.subr.mxu0 0.0
        %2615 = vmatpush1.msra.mxu0 0.0
        %2616 = vmatprep.subr.mxu0 0.0
        %2617 = vmatpush1.msra.mxu0 0.0
        %2618 = vmatprep.subr.mxu0 0.0
        %2619 = vmatpush1.msra.mxu0 0.0
        %2620 = vmatprep.subr.mxu0 0.0
        %2621 = vmatpush1.msra.mxu0 0.0
        %2622 = vmatprep.subr.mxu0 0.0
        %2623 = vmatpush1.msra.mxu0 0.0
        %2624 = vmatprep.subr.mxu0 0.0
        %2625 = vmatpush1.msra.mxu0 0.0
        %2626 = vmatprep.mubr.f32.mxu0 0.0
        %2627 = vmatmul.mubr.f32.gmra.mrb[0].mxu0 %v2545
        %v2628 = vpop.f32.mrb[0].mxu0
        %v2629 = vadd.f32 0.0, %v2628
        %v2630 = vpop.f32.mrb[0].mxu0
        %2631 = vdwg.mxu0
        %v2632 = vld [vmem:[%s53] sm:$0xff]
        %v2633 = vld [vmem:[%s53 + $0x8] sm:$0xff]
        %v2634 = vld [vmem:[%s53 + $0x10] sm:$0xff]
        %v2635 = vld [vmem:[%s53 + $0x18] sm:$0xff]
        %v2636 = vld [vmem:[%s53 + $0x20] sm:$0xff]
        %v2637 = vld [vmem:[%s53 + $0x28] sm:$0xff]
        %v2638 = vld [vmem:[%s53 + $0x30] sm:$0xff]
        %v2639 = vld [vmem:[%s53 + $0x38] sm:$0xff]
        %v2640 = vld [vmem:[%s53 + $0x40] sm:$0xff]
        %v2641 = vld [vmem:[%s53 + $0x48] sm:$0xff]
        %v2642 = vld [vmem:[%s53 + $0x50] sm:$0xff]
        %v2643 = vld [vmem:[%s53 + $0x58] sm:$0xff]
        %v2644 = vld [vmem:[%s53 + $0x60] sm:$0xff]
        %v2645 = vld [vmem:[%s53 + $0x68] sm:$0xff]
        %v2646 = vld [vmem:[%s53 + $0x70] sm:$0xff]
        %v2647 = vld [vmem:[%s53 + $0x78] sm:$0xff]
        %2648 = vmatprep.subr.mxu0 0.0
        %2649 = vmatpush1.msra.mxu0 %v2632
        %2650 = vmatprep.subr.mxu0 0.0
        %2651 = vmatpush1.msra.mxu0 %v2633
        %2652 = vmatprep.subr.mxu0 0.0
        %2653 = vmatpush1.msra.mxu0 %v2634
        %2654 = vmatprep.subr.mxu0 0.0
        %2655 = vmatpush1.msra.mxu0 %v2635
        %2656 = vmatprep.subr.mxu0 0.0
        %2657 = vmatpush1.msra.mxu0 %v2636
        %2658 = vmatprep.subr.mxu0 0.0
        %2659 = vmatpush1.msra.mxu0 %v2637
        %2660 = vmatprep.subr.mxu0 0.0
        %2661 = vmatpush1.msra.mxu0 %v2638
        %2662 = vmatprep.subr.mxu0 0.0
        %2663 = vmatpush1.msra.mxu0 %v2639
        %2664 = vmatprep.subr.mxu0 0.0
        %2665 = vmatpush1.msra.mxu0 %v2640
        %2666 = vmatprep.subr.mxu0 0.0
        %2667 = vmatpush1.msra.mxu0 %v2641
        %2668 = vmatprep.subr.mxu0 0.0
        %2669 = vmatpush1.msra.mxu0 %v2642
        %2670 = vmatprep.subr.mxu0 0.0
        %2671 = vmatpush1.msra.mxu0 %v2643
        %2672 = vmatprep.subr.mxu0 0.0
        %2673 = vmatpush1.msra.mxu0 %v2644
        %2674 = vmatprep.subr.mxu0 0.0
        %2675 = vmatpush1.msra.mxu0 %v2645
        %2676 = vmatprep.subr.mxu0 0.0
        %2677 = vmatpush1.msra.mxu0 %v2646
        %2678 = vmatprep.subr.mxu0 0.0
        %2679 = vmatpush1.msra.mxu0 %v2647
        %2680 = vmatprep.subr.mxu0 0.0
        %2681 = vmatpush1.msra.mxu0 0.0
        %2682 = vmatprep.subr.mxu0 0.0
        %2683 = vmatpush1.msra.mxu0 0.0
        %2684 = vmatprep.subr.mxu0 0.0
        %2685 = vmatpush1.msra.mxu0 0.0
        %2686 = vmatprep.subr.mxu0 0.0
        %2687 = vmatpush1.msra.mxu0 0.0
        %2688 = vmatprep.subr.mxu0 0.0
        %2689 = vmatpush1.msra.mxu0 0.0
        %2690 = vmatprep.subr.mxu0 0.0
        %2691 = vmatpush1.msra.mxu0 0.0
        %2692 = vmatprep.subr.mxu0 0.0
        %2693 = vmatpush1.msra.mxu0 0.0
        %2694 = vmatprep.subr.mxu0 0.0
        %2695 = vmatpush1.msra.mxu0 0.0
        %2696 = vmatprep.subr.mxu0 0.0
        %2697 = vmatpush1.msra.mxu0 0.0
        %2698 = vmatprep.subr.mxu0 0.0
        %2699 = vmatpush1.msra.mxu0 0.0
        %2700 = vmatprep.subr.mxu0 0.0
        %2701 = vmatpush1.msra.mxu0 0.0
        %2702 = vmatprep.subr.mxu0 0.0
        %2703 = vmatpush1.msra.mxu0 0.0
        %2704 = vmatprep.subr.mxu0 0.0
        %2705 = vmatpush1.msra.mxu0 0.0
        %2706 = vmatprep.subr.mxu0 0.0
        %2707 = vmatpush1.msra.mxu0 0.0
        %2708 = vmatprep.subr.mxu0 0.0
        %2709 = vmatpush1.msra.mxu0 0.0
        %2710 = vmatprep.subr.mxu0 0.0
        %2711 = vmatpush1.msra.mxu0 0.0
        %2712 = vmatprep.mubr.f32.mxu0 0.0
        %2713 = vmatmul.mubr.f32.gmra.mrb[0].mxu0 %v2545
        %v2714 = vpop.f32.mrb[0].mxu0
        %v2715 = vadd.f32 0.0, %v2714
        %v2716 = vpop.f32.mrb[0].mxu0
        %2717 = vdwg.mxu0
        %v2718 = vld [vmem:[%s55] sm:$0x1]
        %v2720 = vlaneseq
        %v2721 = vshrl.u32 %v2720, 7
        %v2722 = vsub.s32 0, %v2721
        %v2723 = vrot.slane %v2718, %v2722
        %v2725 = vmul.f32 %v2629, %v2723
        %v2726 = vld [vmem:[%s57] sm:$0x1]
        %v2728 = vlaneseq
        %v2729 = vshrl.u32 %v2728, 7
        %v2730 = vsub.s32 0, %v2729
        %v2731 = vrot.slane %v2726, %v2730
        %v2733 = vadd.f32 %v2725, %v2731
        %v2734 = vmul.f32 %v2715, %v2723
        %v2735 = vadd.f32 %v2734, %v2731
        %v2736 = vmax.f32 %v2733, %v2735
        %2737 = vst [vmem:[#allocation5] sm:$0x3] %v2736
        %v2738 = vld [vmem:[#allocation5] ss:$2 sm:$0x1]
        %s2739 = scalar_lea.vmem [#allocation5], 1
        %v2740 = vld [vmem:[%s2739] ss:$2 sm:$0x1]
        %v2741 = vmax.f32 %v2738, %v2740
        %2742 = vst [vmem:[%s997] sm:$0x1] %v2741
        %p2743 = scmp.lt.s32.totalorder %s80, 1
        %s2744 = scalar_select %p2743, %s80, 1
        %s2745 = smul.addr %s2744, 8
        %s2746 = scalar_lea.vmem %s59, %s2745
        %p2747 = scmp.lt.s32.totalorder %s80, 1
        %s2748 = scalar_select %p2747, %s80, 1
        %s2749 = smul.addr %s2748, 4
        %s2750 = scalar_lea.vmem %s61, %s2749
        %p2751 = scmp.lt.s32.totalorder %s80, 1
        %s2752 = scalar_select %p2751, %s80, 1
        %s2753 = smul.addr %s2752, 2
        %s2754 = scalar_lea.vmem %s63, %s2753
        %s2755 = sand.u32 %s780, 1
        %s2756 = scalar_lea.sflag [#allocation10], %s2755
        %s2757 = sand.u32 %s780, 1
        %s2758 = scalar_lea.vmem [#allocation9], %s2757
        // Predicated region
        $region137: #{base_encoder.1} parent=135 // pred_check
          %p2759 = pneg %p712
        $region138: #{base_encoder.1} parent=135 // pred_check_branch
          %2761 = sbr.rel (%p2759) target = $region140
        $region139: #{base_encoder.1} parent=135 // pred_region
          _
        $region140: #{base_encoder.1} parent=135 // pred_fallthru
          _
        // Predicated region
        $region141: #{base_encoder.1} parent=135 // pred_check
          %p2762 = pneg %p738
        $region142: #{base_encoder.1} parent=135 // pred_check_branch
          %2764 = sbr.rel (%p2762) target = $region144
        $region143: #{base_encoder.1} parent=135 // pred_region
          _
        $region144: #{base_encoder.1} parent=135 // pred_fallthru
          _
        // Predicated region
        $region145: #{base_encoder.1} parent=135 // pred_check
          %p2765 = pneg %p764
        $region146: #{base_encoder.1} parent=135 // pred_check_branch
          %2767 = sbr.rel (%p2765) target = $region148
        $region147: #{base_encoder.1} parent=135 // pred_region
          _
        $region148: #{base_encoder.1} parent=135 // pred_fallthru
          _
        // Predicated region
        $region149: #{base_encoder.1} parent=135 // pred_check
          %p2768 = pneg %p790
        $region150: #{base_encoder.1} parent=135 // pred_check_branch
          %2770 = sbr.rel (%p2768) target = $region152
        $region151: #{base_encoder.1} parent=135 // pred_region
          %s2772 = ssub.s32 16, 16
          %2773 = vsyncadd %s2756, %s2772
          %s2774 = smul.addr %s80, 16
          %s2775 = scalar_lea.hbm %s65, %s2774
          %s2777 = sshll.u32 %s2758, 4
          %s2778 = int_to_ptr.vmem [resolvable:$true] %s2777
          %2780 = dma.vmem_to_hbm [thread:$0]  %s2778, 16, %s2775, %s2756
        $region152: #{base_encoder.1} parent=135 // pred_fallthru
          _
      $region136: #{base_encoder.1} parent=5 // pred_fallthru
        _
      %p2781 = scmp.le.s32.totalorder 2, %s75
      // Predicated region
      $region153: #{base_encoder.1} parent=5 // pred_check
        %p2782 = pneg %p2781
      $region154: #{base_encoder.1} parent=5 // pred_check_branch
        %2784 = sbr.rel (%p2782) target = $region156
      $region155: #{base_encoder.1} parent=5 // pred_region
        %s2785 = ssub.s32 %s75, 2
        // Predicated region
        $region157: #{base_encoder.1} parent=155 // pred_check
          %p2786 = pneg %p718
        $region158: #{base_encoder.1} parent=155 // pred_check_branch
          %2788 = sbr.rel (%p2786) target = $region160
        $region159: #{base_encoder.1} parent=155 // pred_region
          %p2789 = scmp.lt.s32.totalorder %s81, 1
          %s2790 = scalar_select %p2789, %s81, 1
          %s2791 = smul.addr %s2790, 8
          %s2792 = scalar_lea.vmem %s59, %s2791
        $region160: #{base_encoder.1} parent=155 // pred_fallthru
          _
        // Predicated region
        $region161: #{base_encoder.1} parent=155 // pred_check
          %p2793 = pneg %p744
        $region162: #{base_encoder.1} parent=155 // pred_check_branch
          %2795 = sbr.rel (%p2793) target = $region164
        $region163: #{base_encoder.1} parent=155 // pred_region
          %p2796 = scmp.lt.s32.totalorder %s81, 1
          %s2797 = scalar_select %p2796, %s81, 1
          %s2798 = smul.addr %s2797, 4
          %s2799 = scalar_lea.vmem %s61, %s2798
        $region164: #{base_encoder.1} parent=155 // pred_fallthru
          _
        // Predicated region
        $region165: #{base_encoder.1} parent=155 // pred_check
          %p2800 = pneg %p770
        $region166: #{base_encoder.1} parent=155 // pred_check_branch
          %2802 = sbr.rel (%p2800) target = $region168
        $region167: #{base_encoder.1} parent=155 // pred_region
          %p2803 = scmp.lt.s32.totalorder %s81, 1
          %s2804 = scalar_select %p2803, %s81, 1
          %s2805 = smul.addr %s2804, 2
          %s2806 = scalar_lea.vmem %s63, %s2805
        $region168: #{base_encoder.1} parent=155 // pred_fallthru
          _
        // Predicated region
        $region169: #{base_encoder.1} parent=155 // pred_check
          %p2807 = pneg %p796
        $region170: #{base_encoder.1} parent=155 // pred_check_branch
          %2809 = sbr.rel (%p2807) target = $region172
        $region171: #{base_encoder.1} parent=155 // pred_region
          %s2810 = sand.u32 %s781, 1
          %s2811 = scalar_lea.sflag [#allocation10], %s2810
          %s2812 = sand.u32 %s781, 1
          %s2813 = scalar_lea.vmem [#allocation9], %s2812
          %2814 = dma.done %s2811, 16
        $region172: #{base_encoder.1} parent=155 // pred_fallthru
          _
      $region156: #{base_encoder.1} parent=5 // pred_fallthru
        _
    $region6: #{base_encoder.1} parent=1 // loop_footer
      %s79 = sadd.s32 1, %s75
    $region7: #{base_encoder.1} parent=1 // loop_footer_branch
      %74 = sbr.rel target = $region3
    $region8: #{base_encoder.1} parent=1 // loop_exit
      _
    %2815 = vsyncpa [#allocation10], 1
    %s2816 = scalar_lea.sflag [#allocation10], 1
    %2817 = vsyncpa %s2816, 1

</llo_original>
